<compile_context>
chip_gen: v7x
topology: tpu7x:2x2x1
jax: 0.10.0
libtpu: 0.0.40
codegen_flags: <defaults>
</compile_context>

<pallas_src>
import jax
import jax.numpy as jnp
from jax.experimental import pallas as pl
from jax.experimental.pallas import tpu as pltpu

LANES = 128  # lane width used to pad the decoder output block


def lstm_ae_kernel(x_ref,
                   wx1_ref, wh1_ref, b1_ref,
                   wx2_ref, wh2_ref, b2_ref,
                   wx3_ref, wh3_ref, b3_ref,
                   wd1_ref, bd1_ref,
                   wd2_ref, bd2_ref,
                   out_ref):
    f32 = jnp.float32
    bf16 = jnp.bfloat16

    B = out_ref.shape[0]
    TB, _ = x_ref.shape
    T = TB // B
    H1 = wh1_ref.shape[0]
    H2 = wh2_ref.shape[0]
    H3 = wh3_ref.shape[0]

    # ---- hoisted layer-1 input projection (no recurrent dependence) ----
    # x is time-major (T*B, F) bf16; one MXU matmul, bias folded in once.
    xg = jnp.dot(x_ref[...], wx1_ref[...],
                 preferred_element_type=f32) + b1_ref[...]        # (T*B, 4*H1) f32

    # biases broadcast exactly once (JAX does not CSE broadcast_in_dim)
    b2 = jnp.broadcast_to(b2_ref[...], (B, 4 * H2))
    b3 = jnp.broadcast_to(b3_ref[...], (B, 4 * H3))

    def cell(gates, c, H):
        # compact gate layout [i | f | g | o], each H lanes wide (static slices)
        i = jax.nn.sigmoid(gates[:, 0 * H:1 * H])
        f = jax.nn.sigmoid(gates[:, 1 * H:2 * H])
        g = jnp.tanh(gates[:, 2 * H:3 * H])
        o = jax.nn.sigmoid(gates[:, 3 * H:4 * H])
        c_new = f * c + i * g
        h_new = o * jnp.tanh(c_new)
        return h_new, c_new

    # compact f32 states (only h feeds matmuls; it is cast to bf16 at the dot)
    h1 = c1 = jnp.zeros((B, H1), f32)
    h2 = c2 = jnp.zeros((B, H2), f32)
    h3 = c3 = jnp.zeros((B, H3), f32)

    # Fully unrolled (T is small/static).  The recurrent products below only
    # depend on the previous step's state -> they are independent of this
    # step's layer chain and of each other (explicit ILP for the scheduler).
    for t in range(T):
        g1 = xg[t * B:(t + 1) * B, :]          # static contiguous row slice
        g2r = b2
        g3r = b3
        if t > 0:
            g1 = g1 + jnp.dot(h1.astype(bf16), wh1_ref[...],
                              preferred_element_type=f32)
            g2r = g2r + jnp.dot(h2.astype(bf16), wh2_ref[...],
                                preferred_element_type=f32)
            g3r = g3r + jnp.dot(h3.astype(bf16), wh3_ref[...],
                                preferred_element_type=f32)

        h1, c1 = cell(g1, c1, H1)

        g2 = jnp.dot(h1.astype(bf16), wx2_ref[...],
                     preferred_element_type=f32) + g2r
        h2, c2 = cell(g2, c2, H2)

        g3 = jnp.dot(h2.astype(bf16), wx3_ref[...],
                     preferred_element_type=f32) + g3r
        h3, c3 = cell(g3, c3, H3)

    # ---- decoder: dense1 + ReLU, dense2 into a lane-dense (128-wide) block ----
    d1 = jnp.dot(h3.astype(bf16), wd1_ref[...],
                 preferred_element_type=f32) + bd1_ref[...]
    d1 = jnp.maximum(d1, 0.0)
    out = jnp.dot(d1.astype(bf16), wd2_ref[...],
                  preferred_element_type=f32) + bd2_ref[...]
    out_ref[...] = out


def init_params(key, timesteps, num_features, hidden_size=32):
    """Logical f32 params mirroring PyTorch default init, in (in, out) layout."""
    H1, H2, H3 = hidden_size, hidden_size // 2, hidden_size // 4
    ks = list(jax.random.split(key, 16))

    def u(k, shape, bound):
        return jax.random.uniform(k, shape, jnp.float32, -bound, bound)

    def lstm_layer(kws, in_dim, hid):
        s = float(hid) ** -0.5
        w_ih = u(kws[0], (4 * hid, in_dim), s)   # PyTorch layout (4H, in)
        w_hh = u(kws[1], (4 * hid, hid), s)
        b_ih = u(kws[2], (4 * hid,), s)
        b_hh = u(kws[3], (4 * hid,), s)
        # pre-transpose for x @ W, fold the two biases
        return w_ih.T, w_hh.T, (b_ih + b_hh).reshape(1, 4 * hid)

    wx1, wh1, b1 = lstm_layer(ks[0:4], num_features, H1)
    wx2, wh2, b2 = lstm_layer(ks[4:8], H1, H2)
    wx3, wh3, b3 = lstm_layer(ks[8:12], H2, H3)

    s1 = float(H3) ** -0.5
    wd1 = u(ks[12], (H2, H3), s1).T                         # Linear(H3 -> H2)
    bd1 = u(ks[13], (H2,), s1).reshape(1, H2)
    s2 = float(H2) ** -0.5
    wd2 = u(ks[14], (timesteps * num_features, H2), s2).T   # Linear(H2 -> T*F)
    bd2 = u(ks[15], (timesteps * num_features,), s2).reshape(1, timesteps * num_features)

    return (wx1, wh1, b1, wx2, wh2, b2, wx3, wh3, b3, wd1, bd1, wd2, bd2)


def pack_params(params):
    """Cast weights to bf16 (f32 biases), lane-pad the decoder output to 128."""
    (wx1, wh1, b1, wx2, wh2, b2, wx3, wh3, b3, wd1, bd1, wd2, bd2) = params
    bf16 = jnp.bfloat16
    tf = wd2.shape[1]
    out_w = ((tf + LANES - 1) // LANES) * LANES
    wd2p = jnp.zeros((wd2.shape[0], out_w), jnp.float32).at[:, :tf].set(wd2)
    bd2p = jnp.zeros((1, out_w), jnp.float32).at[:, :tf].set(bd2)

    f32 = lambda a: a.astype(jnp.float32)
    return (wx1.astype(bf16), wh1.astype(bf16), f32(b1),
            wx2.astype(bf16), wh2.astype(bf16), f32(b2),
            wx3.astype(bf16), wh3.astype(bf16), f32(b3),
            wd1.astype(bf16), f32(bd1),
            wd2p.astype(bf16), f32(bd2p))


def lstm_autoencoder(x, packed_params, timesteps, num_features):
    """x: (B, T, F) batch-first like the PyTorch module. Returns (B, T, F)."""
    B, T, F = x.shape
    out_w = packed_params[-1].shape[1]            # lane-padded T*F
    # time-major flatten done in the wrapper (kernel never reshapes across
    # (8,128) tile boundaries); matmul LHS fed as bf16.
    x_tm = (x.astype(jnp.float32)
             .transpose(1, 0, 2)
             .reshape(T * B, F)
             .astype(jnp.bfloat16))

    vmem = pl.BlockSpec(memory_space=pltpu.MemorySpace.VMEM)
    n_in = 1 + len(packed_params)
    out = pl.pallas_call(
        lstm_ae_kernel,
        out_shape=jax.ShapeDtypeStruct((B, out_w), jnp.float32),
        in_specs=[vmem] * n_in,
        out_specs=vmem,
        # Grid-less: total footprint is ~50 KB, and at B=2 per-step grid
        # overhead dwarfs the work.  For large B, block the batch and add a
        # ("parallel",) grid axis (second TensorCore on v7x).
    )(x_tm, *packed_params)
    return out[:, :timesteps * num_features].reshape(B, timesteps, num_features)


def lstm_autoencoder_ref(x, params, timesteps, num_features):
    """Pure-JAX reference (bf16 matmul operands, f32 accumulate, f32 state)."""
    (wx1, wh1, b1, wx2, wh2, b2, wx3, wh3, b3, wd1, bd1, wd2, bd2) = params
    B = x.shape[0]
    bf16 = jnp.bfloat16

    def mm(a, b):
        return jnp.dot(a.astype(bf16), b.astype(bf16),
                       preferred_element_type=jnp.float32)

    def cell(x_t, h, c, wx, wh, b, H):
        g = mm(x_t, wx) + mm(h, wh) + b
        i = jax.nn.sigmoid(g[:, :H]);      f = jax.nn.sigmoid(g[:, H:2 * H])
        gg = jnp.tanh(g[:, 2 * H:3 * H]);  o = jax.nn.sigmoid(g[:, 3 * H:])
        c = f * c + i * gg
        return o * jnp.tanh(c), c

    H1, H2, H3 = wh1.shape[0], wh2.shape[0], wh3.shape[0]
    h1 = c1 = jnp.zeros((B, H1)); h2 = c2 = jnp.zeros((B, H2)); h3 = c3 = jnp.zeros((B, H3))
    for t in range(timesteps):
        h1, c1 = cell(x[:, t, :], h1, c1, wx1, wh1, b1, H1)
        h2, c2 = cell(h1, h2, c2, wx2, wh2, b2, H2)
        h3, c3 = cell(h2, h3, c3, wx3, wh3, b3, H3)
    d1 = jnp.maximum(mm(h3, wd1) + bd1, 0.0)
    return (mm(d1, wd2) + bd2).reshape(B, timesteps, num_features)


if __name__ == "__main__":
    timesteps, num_features, hidden_size = 8, 4, 32
    batch = 2

    key = jax.random.PRNGKey(0)
    kx, kp = jax.random.split(key)
    x = jax.random.normal(kx, (batch, timesteps, num_features), jnp.float32)
    params = init_params(kp, timesteps, num_features, hidden_size)
    packed = pack_params(params)

    y = lstm_autoencoder(x, packed, timesteps, num_features)
    y = jax.block_until_ready(y)

    y_ref = lstm_autoencoder_ref(x, params, timesteps, num_features)
    assert y.shape == (batch, timesteps, num_features)
    assert jnp.allclose(y, y_ref, atol=5e-3, rtol=5e-3), "mismatch vs reference"

    print("KERNEL_OK")
</pallas_src>

<mosaic_0001>
module attributes {stable_mosaic.version = 11 : i64} {
  func.func @lstm_ae_kernel(%arg0: memref<16x4xbf16, #tpu.memory_space<vmem>>, %arg1: memref<4x128xbf16, #tpu.memory_space<vmem>>, %arg2: memref<32x128xbf16, #tpu.memory_space<vmem>>, %arg3: memref<1x128xf32, #tpu.memory_space<vmem>>, %arg4: memref<32x64xbf16, #tpu.memory_space<vmem>>, %arg5: memref<16x64xbf16, #tpu.memory_space<vmem>>, %arg6: memref<1x64xf32, #tpu.memory_space<vmem>>, %arg7: memref<16x32xbf16, #tpu.memory_space<vmem>>, %arg8: memref<8x32xbf16, #tpu.memory_space<vmem>>, %arg9: memref<1x32xf32, #tpu.memory_space<vmem>>, %arg10: memref<8x16xbf16, #tpu.memory_space<vmem>>, %arg11: memref<1x16xf32, #tpu.memory_space<vmem>>, %arg12: memref<16x128xbf16, #tpu.memory_space<vmem>>, %arg13: memref<1x128xf32, #tpu.memory_space<vmem>>, %arg14: memref<2x128xf32, #tpu.memory_space<vmem>>) attributes {dimension_semantics = [], scalar_prefetch = 0 : i64, scratch_operands = 0 : i64, tpu.core_type = #tpu.core_type<tc>} {
    %c0 = arith.constant 0 : index
    %c0_0 = arith.constant 0 : index
    %0 = vector.load %arg0[%c0, %c0_0] : memref<16x4xbf16, #tpu.memory_space<vmem>>, vector<16x4xbf16>
    %c0_1 = arith.constant 0 : index
    %c0_2 = arith.constant 0 : index
    %1 = vector.load %arg1[%c0_1, %c0_2] : memref<4x128xbf16, #tpu.memory_space<vmem>>, vector<4x128xbf16>
    %cst = arith.constant dense<0.000000e+00> : vector<16x128xf32>
    %2 = tpu.matmul %0, %1, %cst {dimension_numbers = #tpu.dot_dimension_numbers<[1], [0], [0], [1], [0, 0, 1, 1], [], []>} : vector<16x4xbf16>, vector<4x128xbf16>, vector<16x128xf32> -> vector<16x128xf32>
    %c0_3 = arith.constant 0 : index
    %c0_4 = arith.constant 0 : index
    %3 = vector.load %arg3[%c0_3, %c0_4] : memref<1x128xf32, #tpu.memory_space<vmem>>, vector<1x128xf32>
    %4 = vector.broadcast %3 : vector<1x128xf32> to vector<16x128xf32>
    %5 = arith.addf %2, %4 : vector<16x128xf32>
    %c0_5 = arith.constant 0 : index
    %c0_6 = arith.constant 0 : index
    %6 = vector.load %arg6[%c0_5, %c0_6] : memref<1x64xf32, #tpu.memory_space<vmem>>, vector<1x64xf32>
    %7 = vector.shape_cast %6 : vector<1x64xf32> to vector<1x64xf32>
    %8 = vector.broadcast %7 : vector<1x64xf32> to vector<2x64xf32>
    %c0_7 = arith.constant 0 : index
    %c0_8 = arith.constant 0 : index
    %9 = vector.load %arg9[%c0_7, %c0_8] : memref<1x32xf32, #tpu.memory_space<vmem>>, vector<1x32xf32>
    %10 = vector.shape_cast %9 : vector<1x32xf32> to vector<1x32xf32>
    %11 = vector.broadcast %10 : vector<1x32xf32> to vector<2x32xf32>
    %cst_9 = arith.constant 0.000000e+00 : f32
    %12 = vector.broadcast %cst_9 : f32 to vector<2x32xf32>
    %cst_10 = arith.constant 0.000000e+00 : f32
    %13 = vector.broadcast %cst_10 : f32 to vector<2x16xf32>
    %cst_11 = arith.constant 0.000000e+00 : f32
    %14 = vector.broadcast %cst_11 : f32 to vector<2x8xf32>
    %15 = vector.extract_strided_slice %5 {offsets = [0, 0], sizes = [2, 128], strides = [1, 1]} : vector<16x128xf32> to vector<2x128xf32>
    %16 = vector.extract_strided_slice %15 {offsets = [0, 0], sizes = [2, 32], strides = [1, 1]} : vector<2x128xf32> to vector<2x32xf32>
    %17 = arith.negf %16 : vector<2x32xf32>
    %18 = math.exp %17 : vector<2x32xf32>
    %cst_12 = arith.constant 1.000000e+00 : f32
    %19 = vector.broadcast %cst_12 : f32 to vector<2x32xf32>
    %20 = arith.addf %19, %18 : vector<2x32xf32>
    %21 = arith.divf %19, %20 : vector<2x32xf32>
    %22 = vector.extract_strided_slice %15 {offsets = [0, 32], sizes = [2, 32], strides = [1, 1]} : vector<2x128xf32> to vector<2x32xf32>
    %23 = arith.negf %22 : vector<2x32xf32>
    %24 = math.exp %23 : vector<2x32xf32>
    %cst_13 = arith.constant 1.000000e+00 : f32
    %25 = vector.broadcast %cst_13 : f32 to vector<2x32xf32>
    %26 = arith.addf %25, %24 : vector<2x32xf32>
    %27 = arith.divf %25, %26 : vector<2x32xf32>
    %28 = vector.extract_strided_slice %15 {offsets = [0, 64], sizes = [2, 32], strides = [1, 1]} : vector<2x128xf32> to vector<2x32xf32>
    %29 = math.tanh %28 : vector<2x32xf32>
    %30 = vector.extract_strided_slice %15 {offsets = [0, 96], sizes = [2, 32], strides = [1, 1]} : vector<2x128xf32> to vector<2x32xf32>
    %31 = arith.negf %30 : vector<2x32xf32>
    %32 = math.exp %31 : vector<2x32xf32>
    %cst_14 = arith.constant 1.000000e+00 : f32
    %33 = vector.broadcast %cst_14 : f32 to vector<2x32xf32>
    %34 = arith.addf %33, %32 : vector<2x32xf32>
    %35 = arith.divf %33, %34 : vector<2x32xf32>
    %36 = arith.mulf %27, %12 : vector<2x32xf32>
    %37 = arith.mulf %21, %29 : vector<2x32xf32>
    %38 = arith.addf %36, %37 : vector<2x32xf32>
    %39 = math.tanh %38 : vector<2x32xf32>
    %40 = arith.mulf %35, %39 : vector<2x32xf32>
    %41 = arith.truncf %40 : vector<2x32xf32> to vector<2x32xbf16>
    %c0_15 = arith.constant 0 : index
    %c0_16 = arith.constant 0 : index
    %42 = vector.load %arg4[%c0_15, %c0_16] : memref<32x64xbf16, #tpu.memory_space<vmem>>, vector<32x64xbf16>
    %cst_17 = arith.constant dense<0.000000e+00> : vector<2x64xf32>
    %43 = tpu.matmul %41, %42, %cst_17 {dimension_numbers = #tpu.dot_dimension_numbers<[1], [0], [0], [1], [0, 0, 1, 1], [], []>} : vector<2x32xbf16>, vector<32x64xbf16>, vector<2x64xf32> -> vector<2x64xf32>
    %44 = arith.addf %43, %8 : vector<2x64xf32>
    %45 = vector.extract_strided_slice %44 {offsets = [0, 0], sizes = [2, 16], strides = [1, 1]} : vector<2x64xf32> to vector<2x16xf32>
    %46 = arith.negf %45 : vector<2x16xf32>
    %47 = math.exp %46 : vector<2x16xf32>
    %cst_18 = arith.constant 1.000000e+00 : f32
    %48 = vector.broadcast %cst_18 : f32 to vector<2x16xf32>
    %49 = arith.addf %48, %47 : vector<2x16xf32>
    %50 = arith.divf %48, %49 : vector<2x16xf32>
    %51 = vector.extract_strided_slice %44 {offsets = [0, 16], sizes = [2, 16], strides = [1, 1]} : vector<2x64xf32> to vector<2x16xf32>
    %52 = arith.negf %51 : vector<2x16xf32>
    %53 = math.exp %52 : vector<2x16xf32>
    %cst_19 = arith.constant 1.000000e+00 : f32
    %54 = vector.broadcast %cst_19 : f32 to vector<2x16xf32>
    %55 = arith.addf %54, %53 : vector<2x16xf32>
    %56 = arith.divf %54, %55 : vector<2x16xf32>
    %57 = vector.extract_strided_slice %44 {offsets = [0, 32], sizes = [2, 16], strides = [1, 1]} : vector<2x64xf32> to vector<2x16xf32>
    %58 = math.tanh %57 : vector<2x16xf32>
    %59 = vector.extract_strided_slice %44 {offsets = [0, 48], sizes = [2, 16], strides = [1, 1]} : vector<2x64xf32> to vector<2x16xf32>
    %60 = arith.negf %59 : vector<2x16xf32>
    %61 = math.exp %60 : vector<2x16xf32>
    %cst_20 = arith.constant 1.000000e+00 : f32
    %62 = vector.broadcast %cst_20 : f32 to vector<2x16xf32>
    %63 = arith.addf %62, %61 : vector<2x16xf32>
    %64 = arith.divf %62, %63 : vector<2x16xf32>
    %65 = arith.mulf %56, %13 : vector<2x16xf32>
    %66 = arith.mulf %50, %58 : vector<2x16xf32>
    %67 = arith.addf %65, %66 : vector<2x16xf32>
    %68 = math.tanh %67 : vector<2x16xf32>
    %69 = arith.mulf %64, %68 : vector<2x16xf32>
    %70 = arith.truncf %69 : vector<2x16xf32> to vector<2x16xbf16>
    %c0_21 = arith.constant 0 : index
    %c0_22 = arith.constant 0 : index
    %71 = vector.load %arg7[%c0_21, %c0_22] : memref<16x32xbf16, #tpu.memory_space<vmem>>, vector<16x32xbf16>
    %cst_23 = arith.constant dense<0.000000e+00> : vector<2x32xf32>
    %72 = tpu.matmul %70, %71, %cst_23 {dimension_numbers = #tpu.dot_dimension_numbers<[1], [0], [0], [1], [0, 0, 1, 1], [], []>} : vector<2x16xbf16>, vector<16x32xbf16>, vector<2x32xf32> -> vector<2x32xf32>
    %73 = arith.addf %72, %11 : vector<2x32xf32>
    %74 = vector.extract_strided_slice %73 {offsets = [0, 0], sizes = [2, 8], strides = [1, 1]} : vector<2x32xf32> to vector<2x8xf32>
    %75 = arith.negf %74 : vector<2x8xf32>
    %76 = math.exp %75 : vector<2x8xf32>
    %cst_24 = arith.constant 1.000000e+00 : f32
    %77 = vector.broadcast %cst_24 : f32 to vector<2x8xf32>
    %78 = arith.addf %77, %76 : vector<2x8xf32>
    %79 = arith.divf %77, %78 : vector<2x8xf32>
    %80 = vector.extract_strided_slice %73 {offsets = [0, 8], sizes = [2, 8], strides = [1, 1]} : vector<2x32xf32> to vector<2x8xf32>
    %81 = arith.negf %80 : vector<2x8xf32>
    %82 = math.exp %81 : vector<2x8xf32>
    %cst_25 = arith.constant 1.000000e+00 : f32
    %83 = vector.broadcast %cst_25 : f32 to vector<2x8xf32>
    %84 = arith.addf %83, %82 : vector<2x8xf32>
    %85 = arith.divf %83, %84 : vector<2x8xf32>
    %86 = vector.extract_strided_slice %73 {offsets = [0, 16], sizes = [2, 8], strides = [1, 1]} : vector<2x32xf32> to vector<2x8xf32>
    %87 = math.tanh %86 : vector<2x8xf32>
    %88 = vector.extract_strided_slice %73 {offsets = [0, 24], sizes = [2, 8], strides = [1, 1]} : vector<2x32xf32> to vector<2x8xf32>
    %89 = arith.negf %88 : vector<2x8xf32>
    %90 = math.exp %89 : vector<2x8xf32>
    %cst_26 = arith.constant 1.000000e+00 : f32
    %91 = vector.broadcast %cst_26 : f32 to vector<2x8xf32>
    %92 = arith.addf %91, %90 : vector<2x8xf32>
    %93 = arith.divf %91, %92 : vector<2x8xf32>
    %94 = arith.mulf %85, %14 : vector<2x8xf32>
    %95 = arith.mulf %79, %87 : vector<2x8xf32>
    %96 = arith.addf %94, %95 : vector<2x8xf32>
    %97 = math.tanh %96 : vector<2x8xf32>
    %98 = arith.mulf %93, %97 : vector<2x8xf32>
    %99 = vector.extract_strided_slice %5 {offsets = [2, 0], sizes = [2, 128], strides = [1, 1]} : vector<16x128xf32> to vector<2x128xf32>
    %100 = arith.truncf %40 : vector<2x32xf32> to vector<2x32xbf16>
    %c0_27 = arith.constant 0 : index
    %c0_28 = arith.constant 0 : index
    %101 = vector.load %arg2[%c0_27, %c0_28] : memref<32x128xbf16, #tpu.memory_space<vmem>>, vector<32x128xbf16>
    %cst_29 = arith.constant dense<0.000000e+00> : vector<2x128xf32>
    %102 = tpu.matmul %100, %101, %cst_29 {dimension_numbers = #tpu.dot_dimension_numbers<[1], [0], [0], [1], [0, 0, 1, 1], [], []>} : vector<2x32xbf16>, vector<32x128xbf16>, vector<2x128xf32> -> vector<2x128xf32>
    %103 = arith.addf %99, %102 : vector<2x128xf32>
    %104 = arith.truncf %69 : vector<2x16xf32> to vector<2x16xbf16>
    %c0_30 = arith.constant 0 : index
    %c0_31 = arith.constant 0 : index
    %105 = vector.load %arg5[%c0_30, %c0_31] : memref<16x64xbf16, #tpu.memory_space<vmem>>, vector<16x64xbf16>
    %cst_32 = arith.constant dense<0.000000e+00> : vector<2x64xf32>
    %106 = tpu.matmul %104, %105, %cst_32 {dimension_numbers = #tpu.dot_dimension_numbers<[1], [0], [0], [1], [0, 0, 1, 1], [], []>} : vector<2x16xbf16>, vector<16x64xbf16>, vector<2x64xf32> -> vector<2x64xf32>
    %107 = arith.addf %8, %106 : vector<2x64xf32>
    %108 = arith.truncf %98 : vector<2x8xf32> to vector<2x8xbf16>
    %c0_33 = arith.constant 0 : index
    %c0_34 = arith.constant 0 : index
    %109 = vector.load %arg8[%c0_33, %c0_34] : memref<8x32xbf16, #tpu.memory_space<vmem>>, vector<8x32xbf16>
    %cst_35 = arith.constant dense<0.000000e+00> : vector<2x32xf32>
    %110 = tpu.matmul %108, %109, %cst_35 {dimension_numbers = #tpu.dot_dimension_numbers<[1], [0], [0], [1], [0, 0, 1, 1], [], []>} : vector<2x8xbf16>, vector<8x32xbf16>, vector<2x32xf32> -> vector<2x32xf32>
    %111 = arith.addf %11, %110 : vector<2x32xf32>
    %112 = vector.extract_strided_slice %103 {offsets = [0, 0], sizes = [2, 32], strides = [1, 1]} : vector<2x128xf32> to vector<2x32xf32>
    %113 = arith.negf %112 : vector<2x32xf32>
    %114 = math.exp %113 : vector<2x32xf32>
    %cst_36 = arith.constant 1.000000e+00 : f32
    %115 = vector.broadcast %cst_36 : f32 to vector<2x32xf32>
    %116 = arith.addf %115, %114 : vector<2x32xf32>
    %117 = arith.divf %115, %116 : vector<2x32xf32>
    %118 = vector.extract_strided_slice %103 {offsets = [0, 32], sizes = [2, 32], strides = [1, 1]} : vector<2x128xf32> to vector<2x32xf32>
    %119 = arith.negf %118 : vector<2x32xf32>
    %120 = math.exp %119 : vector<2x32xf32>
    %cst_37 = arith.constant 1.000000e+00 : f32
    %121 = vector.broadcast %cst_37 : f32 to vector<2x32xf32>
    %122 = arith.addf %121, %120 : vector<2x32xf32>
    %123 = arith.divf %121, %122 : vector<2x32xf32>
    %124 = vector.extract_strided_slice %103 {offsets = [0, 64], sizes = [2, 32], strides = [1, 1]} : vector<2x128xf32> to vector<2x32xf32>
    %125 = math.tanh %124 : vector<2x32xf32>
    %126 = vector.extract_strided_slice %103 {offsets = [0, 96], sizes = [2, 32], strides = [1, 1]} : vector<2x128xf32> to vector<2x32xf32>
    %127 = arith.negf %126 : vector<2x32xf32>
    %128 = math.exp %127 : vector<2x32xf32>
    %cst_38 = arith.constant 1.000000e+00 : f32
    %129 = vector.broadcast %cst_38 : f32 to vector<2x32xf32>
    %130 = arith.addf %129, %128 : vector<2x32xf32>
    %131 = arith.divf %129, %130 : vector<2x32xf32>
    %132 = arith.mulf %123, %38 : vector<2x32xf32>
    %133 = arith.mulf %117, %125 : vector<2x32xf32>
    %134 = arith.addf %132, %133 : vector<2x32xf32>
    %135 = math.tanh %134 : vector<2x32xf32>
    %136 = arith.mulf %131, %135 : vector<2x32xf32>
    %137 = arith.truncf %136 : vector<2x32xf32> to vector<2x32xbf16>
    %c0_39 = arith.constant 0 : index
    %c0_40 = arith.constant 0 : index
    %138 = vector.load %arg4[%c0_39, %c0_40] : memref<32x64xbf16, #tpu.memory_space<vmem>>, vector<32x64xbf16>
    %cst_41 = arith.constant dense<0.000000e+00> : vector<2x64xf32>
    %139 = tpu.matmul %137, %138, %cst_41 {dimension_numbers = #tpu.dot_dimension_numbers<[1], [0], [0], [1], [0, 0, 1, 1], [], []>} : vector<2x32xbf16>, vector<32x64xbf16>, vector<2x64xf32> -> vector<2x64xf32>
    %140 = arith.addf %139, %107 : vector<2x64xf32>
    %141 = vector.extract_strided_slice %140 {offsets = [0, 0], sizes = [2, 16], strides = [1, 1]} : vector<2x64xf32> to vector<2x16xf32>
    %142 = arith.negf %141 : vector<2x16xf32>
    %143 = math.exp %142 : vector<2x16xf32>
    %cst_42 = arith.constant 1.000000e+00 : f32
    %144 = vector.broadcast %cst_42 : f32 to vector<2x16xf32>
    %145 = arith.addf %144, %143 : vector<2x16xf32>
    %146 = arith.divf %144, %145 : vector<2x16xf32>
    %147 = vector.extract_strided_slice %140 {offsets = [0, 16], sizes = [2, 16], strides = [1, 1]} : vector<2x64xf32> to vector<2x16xf32>
    %148 = arith.negf %147 : vector<2x16xf32>
    %149 = math.exp %148 : vector<2x16xf32>
    %cst_43 = arith.constant 1.000000e+00 : f32
    %150 = vector.broadcast %cst_43 : f32 to vector<2x16xf32>
    %151 = arith.addf %150, %149 : vector<2x16xf32>
    %152 = arith.divf %150, %151 : vector<2x16xf32>
    %153 = vector.extract_strided_slice %140 {offsets = [0, 32], sizes = [2, 16], strides = [1, 1]} : vector<2x64xf32> to vector<2x16xf32>
    %154 = math.tanh %153 : vector<2x16xf32>
    %155 = vector.extract_strided_slice %140 {offsets = [0, 48], sizes = [2, 16], strides = [1, 1]} : vector<2x64xf32> to vector<2x16xf32>
    %156 = arith.negf %155 : vector<2x16xf32>
    %157 = math.exp %156 : vector<2x16xf32>
    %cst_44 = arith.constant 1.000000e+00 : f32
    %158 = vector.broadcast %cst_44 : f32 to vector<2x16xf32>
    %159 = arith.addf %158, %157 : vector<2x16xf32>
    %160 = arith.divf %158, %159 : vector<2x16xf32>
    %161 = arith.mulf %152, %67 : vector<2x16xf32>
    %162 = arith.mulf %146, %154 : vector<2x16xf32>
    %163 = arith.addf %161, %162 : vector<2x16xf32>
    %164 = math.tanh %163 : vector<2x16xf32>
    %165 = arith.mulf %160, %164 : vector<2x16xf32>
    %166 = arith.truncf %165 : vector<2x16xf32> to vector<2x16xbf16>
    %c0_45 = arith.constant 0 : index
    %c0_46 = arith.constant 0 : index
    %167 = vector.load %arg7[%c0_45, %c0_46] : memref<16x32xbf16, #tpu.memory_space<vmem>>, vector<16x32xbf16>
    %cst_47 = arith.constant dense<0.000000e+00> : vector<2x32xf32>
    %168 = tpu.matmul %166, %167, %cst_47 {dimension_numbers = #tpu.dot_dimension_numbers<[1], [0], [0], [1], [0, 0, 1, 1], [], []>} : vector<2x16xbf16>, vector<16x32xbf16>, vector<2x32xf32> -> vector<2x32xf32>
    %169 = arith.addf %168, %111 : vector<2x32xf32>
    %170 = vector.extract_strided_slice %169 {offsets = [0, 0], sizes = [2, 8], strides = [1, 1]} : vector<2x32xf32> to vector<2x8xf32>
    %171 = arith.negf %170 : vector<2x8xf32>
    %172 = math.exp %171 : vector<2x8xf32>
    %cst_48 = arith.constant 1.000000e+00 : f32
    %173 = vector.broadcast %cst_48 : f32 to vector<2x8xf32>
    %174 = arith.addf %173, %172 : vector<2x8xf32>
    %175 = arith.divf %173, %174 : vector<2x8xf32>
    %176 = vector.extract_strided_slice %169 {offsets = [0, 8], sizes = [2, 8], strides = [1, 1]} : vector<2x32xf32> to vector<2x8xf32>
    %177 = arith.negf %176 : vector<2x8xf32>
    %178 = math.exp %177 : vector<2x8xf32>
    %cst_49 = arith.constant 1.000000e+00 : f32
    %179 = vector.broadcast %cst_49 : f32 to vector<2x8xf32>
    %180 = arith.addf %179, %178 : vector<2x8xf32>
    %181 = arith.divf %179, %180 : vector<2x8xf32>
    %182 = vector.extract_strided_slice %169 {offsets = [0, 16], sizes = [2, 8], strides = [1, 1]} : vector<2x32xf32> to vector<2x8xf32>
    %183 = math.tanh %182 : vector<2x8xf32>
    %184 = vector.extract_strided_slice %169 {offsets = [0, 24], sizes = [2, 8], strides = [1, 1]} : vector<2x32xf32> to vector<2x8xf32>
    %185 = arith.negf %184 : vector<2x8xf32>
    %186 = math.exp %185 : vector<2x8xf32>
    %cst_50 = arith.constant 1.000000e+00 : f32
    %187 = vector.broadcast %cst_50 : f32 to vector<2x8xf32>
    %188 = arith.addf %187, %186 : vector<2x8xf32>
    %189 = arith.divf %187, %188 : vector<2x8xf32>
    %190 = arith.mulf %181, %96 : vector<2x8xf32>
    %191 = arith.mulf %175, %183 : vector<2x8xf32>
    %192 = arith.addf %190, %191 : vector<2x8xf32>
    %193 = math.tanh %192 : vector<2x8xf32>
    %194 = arith.mulf %189, %193 : vector<2x8xf32>
    %195 = vector.extract_strided_slice %5 {offsets = [4, 0], sizes = [2, 128], strides = [1, 1]} : vector<16x128xf32> to vector<2x128xf32>
    %196 = arith.truncf %136 : vector<2x32xf32> to vector<2x32xbf16>
    %c0_51 = arith.constant 0 : index
    %c0_52 = arith.constant 0 : index
    %197 = vector.load %arg2[%c0_51, %c0_52] : memref<32x128xbf16, #tpu.memory_space<vmem>>, vector<32x128xbf16>
    %cst_53 = arith.constant dense<0.000000e+00> : vector<2x128xf32>
    %198 = tpu.matmul %196, %197, %cst_53 {dimension_numbers = #tpu.dot_dimension_numbers<[1], [0], [0], [1], [0, 0, 1, 1], [], []>} : vector<2x32xbf16>, vector<32x128xbf16>, vector<2x128xf32> -> vector<2x128xf32>
    %199 = arith.addf %195, %198 : vector<2x128xf32>
    %200 = arith.truncf %165 : vector<2x16xf32> to vector<2x16xbf16>
    %c0_54 = arith.constant 0 : index
    %c0_55 = arith.constant 0 : index
    %201 = vector.load %arg5[%c0_54, %c0_55] : memref<16x64xbf16, #tpu.memory_space<vmem>>, vector<16x64xbf16>
    %cst_56 = arith.constant dense<0.000000e+00> : vector<2x64xf32>
    %202 = tpu.matmul %200, %201, %cst_56 {dimension_numbers = #tpu.dot_dimension_numbers<[1], [0], [0], [1], [0, 0, 1, 1], [], []>} : vector<2x16xbf16>, vector<16x64xbf16>, vector<2x64xf32> -> vector<2x64xf32>
    %203 = arith.addf %8, %202 : vector<2x64xf32>
    %204 = arith.truncf %194 : vector<2x8xf32> to vector<2x8xbf16>
    %c0_57 = arith.constant 0 : index
    %c0_58 = arith.constant 0 : index
    %205 = vector.load %arg8[%c0_57, %c0_58] : memref<8x32xbf16, #tpu.memory_space<vmem>>, vector<8x32xbf16>
    %cst_59 = arith.constant dense<0.000000e+00> : vector<2x32xf32>
    %206 = tpu.matmul %204, %205, %cst_59 {dimension_numbers = #tpu.dot_dimension_numbers<[1], [0], [0], [1], [0, 0, 1, 1], [], []>} : vector<2x8xbf16>, vector<8x32xbf16>, vector<2x32xf32> -> vector<2x32xf32>
    %207 = arith.addf %11, %206 : vector<2x32xf32>
    %208 = vector.extract_strided_slice %199 {offsets = [0, 0], sizes = [2, 32], strides = [1, 1]} : vector<2x128xf32> to vector<2x32xf32>
    %209 = arith.negf %208 : vector<2x32xf32>
    %210 = math.exp %209 : vector<2x32xf32>
    %cst_60 = arith.constant 1.000000e+00 : f32
    %211 = vector.broadcast %cst_60 : f32 to vector<2x32xf32>
    %212 = arith.addf %211, %210 : vector<2x32xf32>
    %213 = arith.divf %211, %212 : vector<2x32xf32>
    %214 = vector.extract_strided_slice %199 {offsets = [0, 32], sizes = [2, 32], strides = [1, 1]} : vector<2x128xf32> to vector<2x32xf32>
    %215 = arith.negf %214 : vector<2x32xf32>
    %216 = math.exp %215 : vector<2x32xf32>
    %cst_61 = arith.constant 1.000000e+00 : f32
    %217 = vector.broadcast %cst_61 : f32 to vector<2x32xf32>
    %218 = arith.addf %217, %216 : vector<2x32xf32>
    %219 = arith.divf %217, %218 : vector<2x32xf32>
    %220 = vector.extract_strided_slice %199 {offsets = [0, 64], sizes = [2, 32], strides = [1, 1]} : vector<2x128xf32> to vector<2x32xf32>
    %221 = math.tanh %220 : vector<2x32xf32>
    %222 = vector.extract_strided_slice %199 {offsets = [0, 96], sizes = [2, 32], strides = [1, 1]} : vector<2x128xf32> to vector<2x32xf32>
    %223 = arith.negf %222 : vector<2x32xf32>
    %224 = math.exp %223 : vector<2x32xf32>
    %cst_62 = arith.constant 1.000000e+00 : f32
    %225 = vector.broadcast %cst_62 : f32 to vector<2x32xf32>
    %226 = arith.addf %225, %224 : vector<2x32xf32>
    %227 = arith.divf %225, %226 : vector<2x32xf32>
    %228 = arith.mulf %219, %134 : vector<2x32xf32>
    %229 = arith.mulf %213, %221 : vector<2x32xf32>
    %230 = arith.addf %228, %229 : vector<2x32xf32>
    %231 = math.tanh %230 : vector<2x32xf32>
    %232 = arith.mulf %227, %231 : vector<2x32xf32>
    %233 = arith.truncf %232 : vector<2x32xf32> to vector<2x32xbf16>
    %c0_63 = arith.constant 0 : index
    %c0_64 = arith.constant 0 : index
    %234 = vector.load %arg4[%c0_63, %c0_64] : memref<32x64xbf16, #tpu.memory_space<vmem>>, vector<32x64xbf16>
    %cst_65 = arith.constant dense<0.000000e+00> : vector<2x64xf32>
    %235 = tpu.matmul %233, %234, %cst_65 {dimension_numbers = #tpu.dot_dimension_numbers<[1], [0], [0], [1], [0, 0, 1, 1], [], []>} : vector<2x32xbf16>, vector<32x64xbf16>, vector<2x64xf32> -> vector<2x64xf32>
    %236 = arith.addf %235, %203 : vector<2x64xf32>
    %237 = vector.extract_strided_slice %236 {offsets = [0, 0], sizes = [2, 16], strides = [1, 1]} : vector<2x64xf32> to vector<2x16xf32>
    %238 = arith.negf %237 : vector<2x16xf32>
    %239 = math.exp %238 : vector<2x16xf32>
    %cst_66 = arith.constant 1.000000e+00 : f32
    %240 = vector.broadcast %cst_66 : f32 to vector<2x16xf32>
    %241 = arith.addf %240, %239 : vector<2x16xf32>
    %242 = arith.divf %240, %241 : vector<2x16xf32>
    %243 = vector.extract_strided_slice %236 {offsets = [0, 16], sizes = [2, 16], strides = [1, 1]} : vector<2x64xf32> to vector<2x16xf32>
    %244 = arith.negf %243 : vector<2x16xf32>
    %245 = math.exp %244 : vector<2x16xf32>
    %cst_67 = arith.constant 1.000000e+00 : f32
    %246 = vector.broadcast %cst_67 : f32 to vector<2x16xf32>
    %247 = arith.addf %246, %245 : vector<2x16xf32>
    %248 = arith.divf %246, %247 : vector<2x16xf32>
    %249 = vector.extract_strided_slice %236 {offsets = [0, 32], sizes = [2, 16], strides = [1, 1]} : vector<2x64xf32> to vector<2x16xf32>
    %250 = math.tanh %249 : vector<2x16xf32>
    %251 = vector.extract_strided_slice %236 {offsets = [0, 48], sizes = [2, 16], strides = [1, 1]} : vector<2x64xf32> to vector<2x16xf32>
    %252 = arith.negf %251 : vector<2x16xf32>
    %253 = math.exp %252 : vector<2x16xf32>
    %cst_68 = arith.constant 1.000000e+00 : f32
    %254 = vector.broadcast %cst_68 : f32 to vector<2x16xf32>
    %255 = arith.addf %254, %253 : vector<2x16xf32>
    %256 = arith.divf %254, %255 : vector<2x16xf32>
    %257 = arith.mulf %248, %163 : vector<2x16xf32>
    %258 = arith.mulf %242, %250 : vector<2x16xf32>
    %259 = arith.addf %257, %258 : vector<2x16xf32>
    %260 = math.tanh %259 : vector<2x16xf32>
    %261 = arith.mulf %256, %260 : vector<2x16xf32>
    %262 = arith.truncf %261 : vector<2x16xf32> to vector<2x16xbf16>
    %c0_69 = arith.constant 0 : index
    %c0_70 = arith.constant 0 : index
    %263 = vector.load %arg7[%c0_69, %c0_70] : memref<16x32xbf16, #tpu.memory_space<vmem>>, vector<16x32xbf16>
    %cst_71 = arith.constant dense<0.000000e+00> : vector<2x32xf32>
    %264 = tpu.matmul %262, %263, %cst_71 {dimension_numbers = #tpu.dot_dimension_numbers<[1], [0], [0], [1], [0, 0, 1, 1], [], []>} : vector<2x16xbf16>, vector<16x32xbf16>, vector<2x32xf32> -> vector<2x32xf32>
    %265 = arith.addf %264, %207 : vector<2x32xf32>
    %266 = vector.extract_strided_slice %265 {offsets = [0, 0], sizes = [2, 8], strides = [1, 1]} : vector<2x32xf32> to vector<2x8xf32>
    %267 = arith.negf %266 : vector<2x8xf32>
    %268 = math.exp %267 : vector<2x8xf32>
    %cst_72 = arith.constant 1.000000e+00 : f32
    %269 = vector.broadcast %cst_72 : f32 to vector<2x8xf32>
    %270 = arith.addf %269, %268 : vector<2x8xf32>
    %271 = arith.divf %269, %270 : vector<2x8xf32>
    %272 = vector.extract_strided_slice %265 {offsets = [0, 8], sizes = [2, 8], strides = [1, 1]} : vector<2x32xf32> to vector<2x8xf32>
    %273 = arith.negf %272 : vector<2x8xf32>
    %274 = math.exp %273 : vector<2x8xf32>
    %cst_73 = arith.constant 1.000000e+00 : f32
    %275 = vector.broadcast %cst_73 : f32 to vector<2x8xf32>
    %276 = arith.addf %275, %274 : vector<2x8xf32>
    %277 = arith.divf %275, %276 : vector<2x8xf32>
    %278 = vector.extract_strided_slice %265 {offsets = [0, 16], sizes = [2, 8], strides = [1, 1]} : vector<2x32xf32> to vector<2x8xf32>
    %279 = math.tanh %278 : vector<2x8xf32>
    %280 = vector.extract_strided_slice %265 {offsets = [0, 24], sizes = [2, 8], strides = [1, 1]} : vector<2x32xf32> to vector<2x8xf32>
    %281 = arith.negf %280 : vector<2x8xf32>
    %282 = math.exp %281 : vector<2x8xf32>
    %cst_74 = arith.constant 1.000000e+00 : f32
    %283 = vector.broadcast %cst_74 : f32 to vector<2x8xf32>
    %284 = arith.addf %283, %282 : vector<2x8xf32>
    %285 = arith.divf %283, %284 : vector<2x8xf32>
    %286 = arith.mulf %277, %192 : vector<2x8xf32>
    %287 = arith.mulf %271, %279 : vector<2x8xf32>
    %288 = arith.addf %286, %287 : vector<2x8xf32>
    %289 = math.tanh %288 : vector<2x8xf32>
    %290 = arith.mulf %285, %289 : vector<2x8xf32>
    %291 = vector.extract_strided_slice %5 {offsets = [6, 0], sizes = [2, 128], strides = [1, 1]} : vector<16x128xf32> to vector<2x128xf32>
    %292 = arith.truncf %232 : vector<2x32xf32> to vector<2x32xbf16>
    %c0_75 = arith.constant 0 : index
    %c0_76 = arith.constant 0 : index
    %293 = vector.load %arg2[%c0_75, %c0_76] : memref<32x128xbf16, #tpu.memory_space<vmem>>, vector<32x128xbf16>
    %cst_77 = arith.constant dense<0.000000e+00> : vector<2x128xf32>
    %294 = tpu.matmul %292, %293, %cst_77 {dimension_numbers = #tpu.dot_dimension_numbers<[1], [0], [0], [1], [0, 0, 1, 1], [], []>} : vector<2x32xbf16>, vector<32x128xbf16>, vector<2x128xf32> -> vector<2x128xf32>
    %295 = arith.addf %291, %294 : vector<2x128xf32>
    %296 = arith.truncf %261 : vector<2x16xf32> to vector<2x16xbf16>
    %c0_78 = arith.constant 0 : index
    %c0_79 = arith.constant 0 : index
    %297 = vector.load %arg5[%c0_78, %c0_79] : memref<16x64xbf16, #tpu.memory_space<vmem>>, vector<16x64xbf16>
    %cst_80 = arith.constant dense<0.000000e+00> : vector<2x64xf32>
    %298 = tpu.matmul %296, %297, %cst_80 {dimension_numbers = #tpu.dot_dimension_numbers<[1], [0], [0], [1], [0, 0, 1, 1], [], []>} : vector<2x16xbf16>, vector<16x64xbf16>, vector<2x64xf32> -> vector<2x64xf32>
    %299 = arith.addf %8, %298 : vector<2x64xf32>
    %300 = arith.truncf %290 : vector<2x8xf32> to vector<2x8xbf16>
    %c0_81 = arith.constant 0 : index
    %c0_82 = arith.constant 0 : index
    %301 = vector.load %arg8[%c0_81, %c0_82] : memref<8x32xbf16, #tpu.memory_space<vmem>>, vector<8x32xbf16>
    %cst_83 = arith.constant dense<0.000000e+00> : vector<2x32xf32>
    %302 = tpu.matmul %300, %301, %cst_83 {dimension_numbers = #tpu.dot_dimension_numbers<[1], [0], [0], [1], [0, 0, 1, 1], [], []>} : vector<2x8xbf16>, vector<8x32xbf16>, vector<2x32xf32> -> vector<2x32xf32>
    %303 = arith.addf %11, %302 : vector<2x32xf32>
    %304 = vector.extract_strided_slice %295 {offsets = [0, 0], sizes = [2, 32], strides = [1, 1]} : vector<2x128xf32> to vector<2x32xf32>
    %305 = arith.negf %304 : vector<2x32xf32>
    %306 = math.exp %305 : vector<2x32xf32>
    %cst_84 = arith.constant 1.000000e+00 : f32
    %307 = vector.broadcast %cst_84 : f32 to vector<2x32xf32>
    %308 = arith.addf %307, %306 : vector<2x32xf32>
    %309 = arith.divf %307, %308 : vector<2x32xf32>
    %310 = vector.extract_strided_slice %295 {offsets = [0, 32], sizes = [2, 32], strides = [1, 1]} : vector<2x128xf32> to vector<2x32xf32>
    %311 = arith.negf %310 : vector<2x32xf32>
    %312 = math.exp %311 : vector<2x32xf32>
    %cst_85 = arith.constant 1.000000e+00 : f32
    %313 = vector.broadcast %cst_85 : f32 to vector<2x32xf32>
    %314 = arith.addf %313, %312 : vector<2x32xf32>
    %315 = arith.divf %313, %314 : vector<2x32xf32>
    %316 = vector.extract_strided_slice %295 {offsets = [0, 64], sizes = [2, 32], strides = [1, 1]} : vector<2x128xf32> to vector<2x32xf32>
    %317 = math.tanh %316 : vector<2x32xf32>
    %318 = vector.extract_strided_slice %295 {offsets = [0, 96], sizes = [2, 32], strides = [1, 1]} : vector<2x128xf32> to vector<2x32xf32>
    %319 = arith.negf %318 : vector<2x32xf32>
    %320 = math.exp %319 : vector<2x32xf32>
    %cst_86 = arith.constant 1.000000e+00 : f32
    %321 = vector.broadcast %cst_86 : f32 to vector<2x32xf32>
    %322 = arith.addf %321, %320 : vector<2x32xf32>
    %323 = arith.divf %321, %322 : vector<2x32xf32>
    %324 = arith.mulf %315, %230 : vector<2x32xf32>
    %325 = arith.mulf %309, %317 : vector<2x32xf32>
    %326 = arith.addf %324, %325 : vector<2x32xf32>
    %327 = math.tanh %326 : vector<2x32xf32>
    %328 = arith.mulf %323, %327 : vector<2x32xf32>
    %329 = arith.truncf %328 : vector<2x32xf32> to vector<2x32xbf16>
    %c0_87 = arith.constant 0 : index
    %c0_88 = arith.constant 0 : index
    %330 = vector.load %arg4[%c0_87, %c0_88] : memref<32x64xbf16, #tpu.memory_space<vmem>>, vector<32x64xbf16>
    %cst_89 = arith.constant dense<0.000000e+00> : vector<2x64xf32>
    %331 = tpu.matmul %329, %330, %cst_89 {dimension_numbers = #tpu.dot_dimension_numbers<[1], [0], [0], [1], [0, 0, 1, 1], [], []>} : vector<2x32xbf16>, vector<32x64xbf16>, vector<2x64xf32> -> vector<2x64xf32>
    %332 = arith.addf %331, %299 : vector<2x64xf32>
    %333 = vector.extract_strided_slice %332 {offsets = [0, 0], sizes = [2, 16], strides = [1, 1]} : vector<2x64xf32> to vector<2x16xf32>
    %334 = arith.negf %333 : vector<2x16xf32>
    %335 = math.exp %334 : vector<2x16xf32>
    %cst_90 = arith.constant 1.000000e+00 : f32
    %336 = vector.broadcast %cst_90 : f32 to vector<2x16xf32>
    %337 = arith.addf %336, %335 : vector<2x16xf32>
    %338 = arith.divf %336, %337 : vector<2x16xf32>
    %339 = vector.extract_strided_slice %332 {offsets = [0, 16], sizes = [2, 16], strides = [1, 1]} : vector<2x64xf32> to vector<2x16xf32>
    %340 = arith.negf %339 : vector<2x16xf32>
    %341 = math.exp %340 : vector<2x16xf32>
    %cst_91 = arith.constant 1.000000e+00 : f32
    %342 = vector.broadcast %cst_91 : f32 to vector<2x16xf32>
    %343 = arith.addf %342, %341 : vector<2x16xf32>
    %344 = arith.divf %342, %343 : vector<2x16xf32>
    %345 = vector.extract_strided_slice %332 {offsets = [0, 32], sizes = [2, 16], strides = [1, 1]} : vector<2x64xf32> to vector<2x16xf32>
    %346 = math.tanh %345 : vector<2x16xf32>
    %347 = vector.extract_strided_slice %332 {offsets = [0, 48], sizes = [2, 16], strides = [1, 1]} : vector<2x64xf32> to vector<2x16xf32>
    %348 = arith.negf %347 : vector<2x16xf32>
    %349 = math.exp %348 : vector<2x16xf32>
    %cst_92 = arith.constant 1.000000e+00 : f32
    %350 = vector.broadcast %cst_92 : f32 to vector<2x16xf32>
    %351 = arith.addf %350, %349 : vector<2x16xf32>
    %352 = arith.divf %350, %351 : vector<2x16xf32>
    %353 = arith.mulf %344, %259 : vector<2x16xf32>
    %354 = arith.mulf %338, %346 : vector<2x16xf32>
    %355 = arith.addf %353, %354 : vector<2x16xf32>
    %356 = math.tanh %355 : vector<2x16xf32>
    %357 = arith.mulf %352, %356 : vector<2x16xf32>
    %358 = arith.truncf %357 : vector<2x16xf32> to vector<2x16xbf16>
    %c0_93 = arith.constant 0 : index
    %c0_94 = arith.constant 0 : index
    %359 = vector.load %arg7[%c0_93, %c0_94] : memref<16x32xbf16, #tpu.memory_space<vmem>>, vector<16x32xbf16>
    %cst_95 = arith.constant dense<0.000000e+00> : vector<2x32xf32>
    %360 = tpu.matmul %358, %359, %cst_95 {dimension_numbers = #tpu.dot_dimension_numbers<[1], [0], [0], [1], [0, 0, 1, 1], [], []>} : vector<2x16xbf16>, vector<16x32xbf16>, vector<2x32xf32> -> vector<2x32xf32>
    %361 = arith.addf %360, %303 : vector<2x32xf32>
    %362 = vector.extract_strided_slice %361 {offsets = [0, 0], sizes = [2, 8], strides = [1, 1]} : vector<2x32xf32> to vector<2x8xf32>
    %363 = arith.negf %362 : vector<2x8xf32>
    %364 = math.exp %363 : vector<2x8xf32>
    %cst_96 = arith.constant 1.000000e+00 : f32
    %365 = vector.broadcast %cst_96 : f32 to vector<2x8xf32>
    %366 = arith.addf %365, %364 : vector<2x8xf32>
    %367 = arith.divf %365, %366 : vector<2x8xf32>
    %368 = vector.extract_strided_slice %361 {offsets = [0, 8], sizes = [2, 8], strides = [1, 1]} : vector<2x32xf32> to vector<2x8xf32>
    %369 = arith.negf %368 : vector<2x8xf32>
    %370 = math.exp %369 : vector<2x8xf32>
    %cst_97 = arith.constant 1.000000e+00 : f32
    %371 = vector.broadcast %cst_97 : f32 to vector<2x8xf32>
    %372 = arith.addf %371, %370 : vector<2x8xf32>
    %373 = arith.divf %371, %372 : vector<2x8xf32>
    %374 = vector.extract_strided_slice %361 {offsets = [0, 16], sizes = [2, 8], strides = [1, 1]} : vector<2x32xf32> to vector<2x8xf32>
    %375 = math.tanh %374 : vector<2x8xf32>
    %376 = vector.extract_strided_slice %361 {offsets = [0, 24], sizes = [2, 8], strides = [1, 1]} : vector<2x32xf32> to vector<2x8xf32>
    %377 = arith.negf %376 : vector<2x8xf32>
    %378 = math.exp %377 : vector<2x8xf32>
    %cst_98 = arith.constant 1.000000e+00 : f32
    %379 = vector.broadcast %cst_98 : f32 to vector<2x8xf32>
    %380 = arith.addf %379, %378 : vector<2x8xf32>
    %381 = arith.divf %379, %380 : vector<2x8xf32>
    %382 = arith.mulf %373, %288 : vector<2x8xf32>
    %383 = arith.mulf %367, %375 : vector<2x8xf32>
    %384 = arith.addf %382, %383 : vector<2x8xf32>
    %385 = math.tanh %384 : vector<2x8xf32>
    %386 = arith.mulf %381, %385 : vector<2x8xf32>
    %387 = vector.extract_strided_slice %5 {offsets = [8, 0], sizes = [2, 128], strides = [1, 1]} : vector<16x128xf32> to vector<2x128xf32>
    %388 = arith.truncf %328 : vector<2x32xf32> to vector<2x32xbf16>
    %c0_99 = arith.constant 0 : index
    %c0_100 = arith.constant 0 : index
    %389 = vector.load %arg2[%c0_99, %c0_100] : memref<32x128xbf16, #tpu.memory_space<vmem>>, vector<32x128xbf16>
    %cst_101 = arith.constant dense<0.000000e+00> : vector<2x128xf32>
    %390 = tpu.matmul %388, %389, %cst_101 {dimension_numbers = #tpu.dot_dimension_numbers<[1], [0], [0], [1], [0, 0, 1, 1], [], []>} : vector<2x32xbf16>, vector<32x128xbf16>, vector<2x128xf32> -> vector<2x128xf32>
    %391 = arith.addf %387, %390 : vector<2x128xf32>
    %392 = arith.truncf %357 : vector<2x16xf32> to vector<2x16xbf16>
    %c0_102 = arith.constant 0 : index
    %c0_103 = arith.constant 0 : index
    %393 = vector.load %arg5[%c0_102, %c0_103] : memref<16x64xbf16, #tpu.memory_space<vmem>>, vector<16x64xbf16>
    %cst_104 = arith.constant dense<0.000000e+00> : vector<2x64xf32>
    %394 = tpu.matmul %392, %393, %cst_104 {dimension_numbers = #tpu.dot_dimension_numbers<[1], [0], [0], [1], [0, 0, 1, 1], [], []>} : vector<2x16xbf16>, vector<16x64xbf16>, vector<2x64xf32> -> vector<2x64xf32>
    %395 = arith.addf %8, %394 : vector<2x64xf32>
    %396 = arith.truncf %386 : vector<2x8xf32> to vector<2x8xbf16>
    %c0_105 = arith.constant 0 : index
    %c0_106 = arith.constant 0 : index
    %397 = vector.load %arg8[%c0_105, %c0_106] : memref<8x32xbf16, #tpu.memory_space<vmem>>, vector<8x32xbf16>
    %cst_107 = arith.constant dense<0.000000e+00> : vector<2x32xf32>
    %398 = tpu.matmul %396, %397, %cst_107 {dimension_numbers = #tpu.dot_dimension_numbers<[1], [0], [0], [1], [0, 0, 1, 1], [], []>} : vector<2x8xbf16>, vector<8x32xbf16>, vector<2x32xf32> -> vector<2x32xf32>
    %399 = arith.addf %11, %398 : vector<2x32xf32>
    %400 = vector.extract_strided_slice %391 {offsets = [0, 0], sizes = [2, 32], strides = [1, 1]} : vector<2x128xf32> to vector<2x32xf32>
    %401 = arith.negf %400 : vector<2x32xf32>
    %402 = math.exp %401 : vector<2x32xf32>
    %cst_108 = arith.constant 1.000000e+00 : f32
    %403 = vector.broadcast %cst_108 : f32 to vector<2x32xf32>
    %404 = arith.addf %403, %402 : vector<2x32xf32>
    %405 = arith.divf %403, %404 : vector<2x32xf32>
    %406 = vector.extract_strided_slice %391 {offsets = [0, 32], sizes = [2, 32], strides = [1, 1]} : vector<2x128xf32> to vector<2x32xf32>
    %407 = arith.negf %406 : vector<2x32xf32>
    %408 = math.exp %407 : vector<2x32xf32>
    %cst_109 = arith.constant 1.000000e+00 : f32
    %409 = vector.broadcast %cst_109 : f32 to vector<2x32xf32>
    %410 = arith.addf %409, %408 : vector<2x32xf32>
    %411 = arith.divf %409, %410 : vector<2x32xf32>
    %412 = vector.extract_strided_slice %391 {offsets = [0, 64], sizes = [2, 32], strides = [1, 1]} : vector<2x128xf32> to vector<2x32xf32>
    %413 = math.tanh %412 : vector<2x32xf32>
    %414 = vector.extract_strided_slice %391 {offsets = [0, 96], sizes = [2, 32], strides = [1, 1]} : vector<2x128xf32> to vector<2x32xf32>
    %415 = arith.negf %414 : vector<2x32xf32>
    %416 = math.exp %415 : vector<2x32xf32>
    %cst_110 = arith.constant 1.000000e+00 : f32
    %417 = vector.broadcast %cst_110 : f32 to vector<2x32xf32>
    %418 = arith.addf %417, %416 : vector<2x32xf32>
    %419 = arith.divf %417, %418 : vector<2x32xf32>
    %420 = arith.mulf %411, %326 : vector<2x32xf32>
    %421 = arith.mulf %405, %413 : vector<2x32xf32>
    %422 = arith.addf %420, %421 : vector<2x32xf32>
    %423 = math.tanh %422 : vector<2x32xf32>
    %424 = arith.mulf %419, %423 : vector<2x32xf32>
    %425 = arith.truncf %424 : vector<2x32xf32> to vector<2x32xbf16>
    %c0_111 = arith.constant 0 : index
    %c0_112 = arith.constant 0 : index
    %426 = vector.load %arg4[%c0_111, %c0_112] : memref<32x64xbf16, #tpu.memory_space<vmem>>, vector<32x64xbf16>
    %cst_113 = arith.constant dense<0.000000e+00> : vector<2x64xf32>
    %427 = tpu.matmul %425, %426, %cst_113 {dimension_numbers = #tpu.dot_dimension_numbers<[1], [0], [0], [1], [0, 0, 1, 1], [], []>} : vector<2x32xbf16>, vector<32x64xbf16>, vector<2x64xf32> -> vector<2x64xf32>
    %428 = arith.addf %427, %395 : vector<2x64xf32>
    %429 = vector.extract_strided_slice %428 {offsets = [0, 0], sizes = [2, 16], strides = [1, 1]} : vector<2x64xf32> to vector<2x16xf32>
    %430 = arith.negf %429 : vector<2x16xf32>
    %431 = math.exp %430 : vector<2x16xf32>
    %cst_114 = arith.constant 1.000000e+00 : f32
    %432 = vector.broadcast %cst_114 : f32 to vector<2x16xf32>
    %433 = arith.addf %432, %431 : vector<2x16xf32>
    %434 = arith.divf %432, %433 : vector<2x16xf32>
    %435 = vector.extract_strided_slice %428 {offsets = [0, 16], sizes = [2, 16], strides = [1, 1]} : vector<2x64xf32> to vector<2x16xf32>
    %436 = arith.negf %435 : vector<2x16xf32>
    %437 = math.exp %436 : vector<2x16xf32>
    %cst_115 = arith.constant 1.000000e+00 : f32
    %438 = vector.broadcast %cst_115 : f32 to vector<2x16xf32>
    %439 = arith.addf %438, %437 : vector<2x16xf32>
    %440 = arith.divf %438, %439 : vector<2x16xf32>
    %441 = vector.extract_strided_slice %428 {offsets = [0, 32], sizes = [2, 16], strides = [1, 1]} : vector<2x64xf32> to vector<2x16xf32>
    %442 = math.tanh %441 : vector<2x16xf32>
    %443 = vector.extract_strided_slice %428 {offsets = [0, 48], sizes = [2, 16], strides = [1, 1]} : vector<2x64xf32> to vector<2x16xf32>
    %444 = arith.negf %443 : vector<2x16xf32>
    %445 = math.exp %444 : vector<2x16xf32>
    %cst_116 = arith.constant 1.000000e+00 : f32
    %446 = vector.broadcast %cst_116 : f32 to vector<2x16xf32>
    %447 = arith.addf %446, %445 : vector<2x16xf32>
    %448 = arith.divf %446, %447 : vector<2x16xf32>
    %449 = arith.mulf %440, %355 : vector<2x16xf32>
    %450 = arith.mulf %434, %442 : vector<2x16xf32>
    %451 = arith.addf %449, %450 : vector<2x16xf32>
    %452 = math.tanh %451 : vector<2x16xf32>
    %453 = arith.mulf %448, %452 : vector<2x16xf32>
    %454 = arith.truncf %453 : vector<2x16xf32> to vector<2x16xbf16>
    %c0_117 = arith.constant 0 : index
    %c0_118 = arith.constant 0 : index
    %455 = vector.load %arg7[%c0_117, %c0_118] : memref<16x32xbf16, #tpu.memory_space<vmem>>, vector<16x32xbf16>
    %cst_119 = arith.constant dense<0.000000e+00> : vector<2x32xf32>
    %456 = tpu.matmul %454, %455, %cst_119 {dimension_numbers = #tpu.dot_dimension_numbers<[1], [0], [0], [1], [0, 0, 1, 1], [], []>} : vector<2x16xbf16>, vector<16x32xbf16>, vector<2x32xf32> -> vector<2x32xf32>
    %457 = arith.addf %456, %399 : vector<2x32xf32>
    %458 = vector.extract_strided_slice %457 {offsets = [0, 0], sizes = [2, 8], strides = [1, 1]} : vector<2x32xf32> to vector<2x8xf32>
    %459 = arith.negf %458 : vector<2x8xf32>
    %460 = math.exp %459 : vector<2x8xf32>
    %cst_120 = arith.constant 1.000000e+00 : f32
    %461 = vector.broadcast %cst_120 : f32 to vector<2x8xf32>
    %462 = arith.addf %461, %460 : vector<2x8xf32>
    %463 = arith.divf %461, %462 : vector<2x8xf32>
    %464 = vector.extract_strided_slice %457 {offsets = [0, 8], sizes = [2, 8], strides = [1, 1]} : vector<2x32xf32> to vector<2x8xf32>
    %465 = arith.negf %464 : vector<2x8xf32>
    %466 = math.exp %465 : vector<2x8xf32>
    %cst_121 = arith.constant 1.000000e+00 : f32
    %467 = vector.broadcast %cst_121 : f32 to vector<2x8xf32>
    %468 = arith.addf %467, %466 : vector<2x8xf32>
    %469 = arith.divf %467, %468 : vector<2x8xf32>
    %470 = vector.extract_strided_slice %457 {offsets = [0, 16], sizes = [2, 8], strides = [1, 1]} : vector<2x32xf32> to vector<2x8xf32>
    %471 = math.tanh %470 : vector<2x8xf32>
    %472 = vector.extract_strided_slice %457 {offsets = [0, 24], sizes = [2, 8], strides = [1, 1]} : vector<2x32xf32> to vector<2x8xf32>
    %473 = arith.negf %472 : vector<2x8xf32>
    %474 = math.exp %473 : vector<2x8xf32>
    %cst_122 = arith.constant 1.000000e+00 : f32
    %475 = vector.broadcast %cst_122 : f32 to vector<2x8xf32>
    %476 = arith.addf %475, %474 : vector<2x8xf32>
    %477 = arith.divf %475, %476 : vector<2x8xf32>
    %478 = arith.mulf %469, %384 : vector<2x8xf32>
    %479 = arith.mulf %463, %471 : vector<2x8xf32>
    %480 = arith.addf %478, %479 : vector<2x8xf32>
    %481 = math.tanh %480 : vector<2x8xf32>
    %482 = arith.mulf %477, %481 : vector<2x8xf32>
    %483 = vector.extract_strided_slice %5 {offsets = [10, 0], sizes = [2, 128], strides = [1, 1]} : vector<16x128xf32> to vector<2x128xf32>
    %484 = arith.truncf %424 : vector<2x32xf32> to vector<2x32xbf16>
    %c0_123 = arith.constant 0 : index
    %c0_124 = arith.constant 0 : index
    %485 = vector.load %arg2[%c0_123, %c0_124] : memref<32x128xbf16, #tpu.memory_space<vmem>>, vector<32x128xbf16>
    %cst_125 = arith.constant dense<0.000000e+00> : vector<2x128xf32>
    %486 = tpu.matmul %484, %485, %cst_125 {dimension_numbers = #tpu.dot_dimension_numbers<[1], [0], [0], [1], [0, 0, 1, 1], [], []>} : vector<2x32xbf16>, vector<32x128xbf16>, vector<2x128xf32> -> vector<2x128xf32>
    %487 = arith.addf %483, %486 : vector<2x128xf32>
    %488 = arith.truncf %453 : vector<2x16xf32> to vector<2x16xbf16>
    %c0_126 = arith.constant 0 : index
    %c0_127 = arith.constant 0 : index
    %489 = vector.load %arg5[%c0_126, %c0_127] : memref<16x64xbf16, #tpu.memory_space<vmem>>, vector<16x64xbf16>
    %cst_128 = arith.constant dense<0.000000e+00> : vector<2x64xf32>
    %490 = tpu.matmul %488, %489, %cst_128 {dimension_numbers = #tpu.dot_dimension_numbers<[1], [0], [0], [1], [0, 0, 1, 1], [], []>} : vector<2x16xbf16>, vector<16x64xbf16>, vector<2x64xf32> -> vector<2x64xf32>
    %491 = arith.addf %8, %490 : vector<2x64xf32>
    %492 = arith.truncf %482 : vector<2x8xf32> to vector<2x8xbf16>
    %c0_129 = arith.constant 0 : index
    %c0_130 = arith.constant 0 : index
    %493 = vector.load %arg8[%c0_129, %c0_130] : memref<8x32xbf16, #tpu.memory_space<vmem>>, vector<8x32xbf16>
    %cst_131 = arith.constant dense<0.000000e+00> : vector<2x32xf32>
    %494 = tpu.matmul %492, %493, %cst_131 {dimension_numbers = #tpu.dot_dimension_numbers<[1], [0], [0], [1], [0, 0, 1, 1], [], []>} : vector<2x8xbf16>, vector<8x32xbf16>, vector<2x32xf32> -> vector<2x32xf32>
    %495 = arith.addf %11, %494 : vector<2x32xf32>
    %496 = vector.extract_strided_slice %487 {offsets = [0, 0], sizes = [2, 32], strides = [1, 1]} : vector<2x128xf32> to vector<2x32xf32>
    %497 = arith.negf %496 : vector<2x32xf32>
    %498 = math.exp %497 : vector<2x32xf32>
    %cst_132 = arith.constant 1.000000e+00 : f32
    %499 = vector.broadcast %cst_132 : f32 to vector<2x32xf32>
    %500 = arith.addf %499, %498 : vector<2x32xf32>
    %501 = arith.divf %499, %500 : vector<2x32xf32>
    %502 = vector.extract_strided_slice %487 {offsets = [0, 32], sizes = [2, 32], strides = [1, 1]} : vector<2x128xf32> to vector<2x32xf32>
    %503 = arith.negf %502 : vector<2x32xf32>
    %504 = math.exp %503 : vector<2x32xf32>
    %cst_133 = arith.constant 1.000000e+00 : f32
    %505 = vector.broadcast %cst_133 : f32 to vector<2x32xf32>
    %506 = arith.addf %505, %504 : vector<2x32xf32>
    %507 = arith.divf %505, %506 : vector<2x32xf32>
    %508 = vector.extract_strided_slice %487 {offsets = [0, 64], sizes = [2, 32], strides = [1, 1]} : vector<2x128xf32> to vector<2x32xf32>
    %509 = math.tanh %508 : vector<2x32xf32>
    %510 = vector.extract_strided_slice %487 {offsets = [0, 96], sizes = [2, 32], strides = [1, 1]} : vector<2x128xf32> to vector<2x32xf32>
    %511 = arith.negf %510 : vector<2x32xf32>
    %512 = math.exp %511 : vector<2x32xf32>
    %cst_134 = arith.constant 1.000000e+00 : f32
    %513 = vector.broadcast %cst_134 : f32 to vector<2x32xf32>
    %514 = arith.addf %513, %512 : vector<2x32xf32>
    %515 = arith.divf %513, %514 : vector<2x32xf32>
    %516 = arith.mulf %507, %422 : vector<2x32xf32>
    %517 = arith.mulf %501, %509 : vector<2x32xf32>
    %518 = arith.addf %516, %517 : vector<2x32xf32>
    %519 = math.tanh %518 : vector<2x32xf32>
    %520 = arith.mulf %515, %519 : vector<2x32xf32>
    %521 = arith.truncf %520 : vector<2x32xf32> to vector<2x32xbf16>
    %c0_135 = arith.constant 0 : index
    %c0_136 = arith.constant 0 : index
    %522 = vector.load %arg4[%c0_135, %c0_136] : memref<32x64xbf16, #tpu.memory_space<vmem>>, vector<32x64xbf16>
    %cst_137 = arith.constant dense<0.000000e+00> : vector<2x64xf32>
    %523 = tpu.matmul %521, %522, %cst_137 {dimension_numbers = #tpu.dot_dimension_numbers<[1], [0], [0], [1], [0, 0, 1, 1], [], []>} : vector<2x32xbf16>, vector<32x64xbf16>, vector<2x64xf32> -> vector<2x64xf32>
    %524 = arith.addf %523, %491 : vector<2x64xf32>
    %525 = vector.extract_strided_slice %524 {offsets = [0, 0], sizes = [2, 16], strides = [1, 1]} : vector<2x64xf32> to vector<2x16xf32>
    %526 = arith.negf %525 : vector<2x16xf32>
    %527 = math.exp %526 : vector<2x16xf32>
    %cst_138 = arith.constant 1.000000e+00 : f32
    %528 = vector.broadcast %cst_138 : f32 to vector<2x16xf32>
    %529 = arith.addf %528, %527 : vector<2x16xf32>
    %530 = arith.divf %528, %529 : vector<2x16xf32>
    %531 = vector.extract_strided_slice %524 {offsets = [0, 16], sizes = [2, 16], strides = [1, 1]} : vector<2x64xf32> to vector<2x16xf32>
    %532 = arith.negf %531 : vector<2x16xf32>
    %533 = math.exp %532 : vector<2x16xf32>
    %cst_139 = arith.constant 1.000000e+00 : f32
    %534 = vector.broadcast %cst_139 : f32 to vector<2x16xf32>
    %535 = arith.addf %534, %533 : vector<2x16xf32>
    %536 = arith.divf %534, %535 : vector<2x16xf32>
    %537 = vector.extract_strided_slice %524 {offsets = [0, 32], sizes = [2, 16], strides = [1, 1]} : vector<2x64xf32> to vector<2x16xf32>
    %538 = math.tanh %537 : vector<2x16xf32>
    %539 = vector.extract_strided_slice %524 {offsets = [0, 48], sizes = [2, 16], strides = [1, 1]} : vector<2x64xf32> to vector<2x16xf32>
    %540 = arith.negf %539 : vector<2x16xf32>
    %541 = math.exp %540 : vector<2x16xf32>
    %cst_140 = arith.constant 1.000000e+00 : f32
    %542 = vector.broadcast %cst_140 : f32 to vector<2x16xf32>
    %543 = arith.addf %542, %541 : vector<2x16xf32>
    %544 = arith.divf %542, %543 : vector<2x16xf32>
    %545 = arith.mulf %536, %451 : vector<2x16xf32>
    %546 = arith.mulf %530, %538 : vector<2x16xf32>
    %547 = arith.addf %545, %546 : vector<2x16xf32>
    %548 = math.tanh %547 : vector<2x16xf32>
    %549 = arith.mulf %544, %548 : vector<2x16xf32>
    %550 = arith.truncf %549 : vector<2x16xf32> to vector<2x16xbf16>
    %c0_141 = arith.constant 0 : index
    %c0_142 = arith.constant 0 : index
    %551 = vector.load %arg7[%c0_141, %c0_142] : memref<16x32xbf16, #tpu.memory_space<vmem>>, vector<16x32xbf16>
    %cst_143 = arith.constant dense<0.000000e+00> : vector<2x32xf32>
    %552 = tpu.matmul %550, %551, %cst_143 {dimension_numbers = #tpu.dot_dimension_numbers<[1], [0], [0], [1], [0, 0, 1, 1], [], []>} : vector<2x16xbf16>, vector<16x32xbf16>, vector<2x32xf32> -> vector<2x32xf32>
    %553 = arith.addf %552, %495 : vector<2x32xf32>
    %554 = vector.extract_strided_slice %553 {offsets = [0, 0], sizes = [2, 8], strides = [1, 1]} : vector<2x32xf32> to vector<2x8xf32>
    %555 = arith.negf %554 : vector<2x8xf32>
    %556 = math.exp %555 : vector<2x8xf32>
    %cst_144 = arith.constant 1.000000e+00 : f32
    %557 = vector.broadcast %cst_144 : f32 to vector<2x8xf32>
    %558 = arith.addf %557, %556 : vector<2x8xf32>
    %559 = arith.divf %557, %558 : vector<2x8xf32>
    %560 = vector.extract_strided_slice %553 {offsets = [0, 8], sizes = [2, 8], strides = [1, 1]} : vector<2x32xf32> to vector<2x8xf32>
    %561 = arith.negf %560 : vector<2x8xf32>
    %562 = math.exp %561 : vector<2x8xf32>
    %cst_145 = arith.constant 1.000000e+00 : f32
    %563 = vector.broadcast %cst_145 : f32 to vector<2x8xf32>
    %564 = arith.addf %563, %562 : vector<2x8xf32>
    %565 = arith.divf %563, %564 : vector<2x8xf32>
    %566 = vector.extract_strided_slice %553 {offsets = [0, 16], sizes = [2, 8], strides = [1, 1]} : vector<2x32xf32> to vector<2x8xf32>
    %567 = math.tanh %566 : vector<2x8xf32>
    %568 = vector.extract_strided_slice %553 {offsets = [0, 24], sizes = [2, 8], strides = [1, 1]} : vector<2x32xf32> to vector<2x8xf32>
    %569 = arith.negf %568 : vector<2x8xf32>
    %570 = math.exp %569 : vector<2x8xf32>
    %cst_146 = arith.constant 1.000000e+00 : f32
    %571 = vector.broadcast %cst_146 : f32 to vector<2x8xf32>
    %572 = arith.addf %571, %570 : vector<2x8xf32>
    %573 = arith.divf %571, %572 : vector<2x8xf32>
    %574 = arith.mulf %565, %480 : vector<2x8xf32>
    %575 = arith.mulf %559, %567 : vector<2x8xf32>
    %576 = arith.addf %574, %575 : vector<2x8xf32>
    %577 = math.tanh %576 : vector<2x8xf32>
    %578 = arith.mulf %573, %577 : vector<2x8xf32>
    %579 = vector.extract_strided_slice %5 {offsets = [12, 0], sizes = [2, 128], strides = [1, 1]} : vector<16x128xf32> to vector<2x128xf32>
    %580 = arith.truncf %520 : vector<2x32xf32> to vector<2x32xbf16>
    %c0_147 = arith.constant 0 : index
    %c0_148 = arith.constant 0 : index
    %581 = vector.load %arg2[%c0_147, %c0_148] : memref<32x128xbf16, #tpu.memory_space<vmem>>, vector<32x128xbf16>
    %cst_149 = arith.constant dense<0.000000e+00> : vector<2x128xf32>
    %582 = tpu.matmul %580, %581, %cst_149 {dimension_numbers = #tpu.dot_dimension_numbers<[1], [0], [0], [1], [0, 0, 1, 1], [], []>} : vector<2x32xbf16>, vector<32x128xbf16>, vector<2x128xf32> -> vector<2x128xf32>
    %583 = arith.addf %579, %582 : vector<2x128xf32>
    %584 = arith.truncf %549 : vector<2x16xf32> to vector<2x16xbf16>
    %c0_150 = arith.constant 0 : index
    %c0_151 = arith.constant 0 : index
    %585 = vector.load %arg5[%c0_150, %c0_151] : memref<16x64xbf16, #tpu.memory_space<vmem>>, vector<16x64xbf16>
    %cst_152 = arith.constant dense<0.000000e+00> : vector<2x64xf32>
    %586 = tpu.matmul %584, %585, %cst_152 {dimension_numbers = #tpu.dot_dimension_numbers<[1], [0], [0], [1], [0, 0, 1, 1], [], []>} : vector<2x16xbf16>, vector<16x64xbf16>, vector<2x64xf32> -> vector<2x64xf32>
    %587 = arith.addf %8, %586 : vector<2x64xf32>
    %588 = arith.truncf %578 : vector<2x8xf32> to vector<2x8xbf16>
    %c0_153 = arith.constant 0 : index
    %c0_154 = arith.constant 0 : index
    %589 = vector.load %arg8[%c0_153, %c0_154] : memref<8x32xbf16, #tpu.memory_space<vmem>>, vector<8x32xbf16>
    %cst_155 = arith.constant dense<0.000000e+00> : vector<2x32xf32>
    %590 = tpu.matmul %588, %589, %cst_155 {dimension_numbers = #tpu.dot_dimension_numbers<[1], [0], [0], [1], [0, 0, 1, 1], [], []>} : vector<2x8xbf16>, vector<8x32xbf16>, vector<2x32xf32> -> vector<2x32xf32>
    %591 = arith.addf %11, %590 : vector<2x32xf32>
    %592 = vector.extract_strided_slice %583 {offsets = [0, 0], sizes = [2, 32], strides = [1, 1]} : vector<2x128xf32> to vector<2x32xf32>
    %593 = arith.negf %592 : vector<2x32xf32>
    %594 = math.exp %593 : vector<2x32xf32>
    %cst_156 = arith.constant 1.000000e+00 : f32
    %595 = vector.broadcast %cst_156 : f32 to vector<2x32xf32>
    %596 = arith.addf %595, %594 : vector<2x32xf32>
    %597 = arith.divf %595, %596 : vector<2x32xf32>
    %598 = vector.extract_strided_slice %583 {offsets = [0, 32], sizes = [2, 32], strides = [1, 1]} : vector<2x128xf32> to vector<2x32xf32>
    %599 = arith.negf %598 : vector<2x32xf32>
    %600 = math.exp %599 : vector<2x32xf32>
    %cst_157 = arith.constant 1.000000e+00 : f32
    %601 = vector.broadcast %cst_157 : f32 to vector<2x32xf32>
    %602 = arith.addf %601, %600 : vector<2x32xf32>
    %603 = arith.divf %601, %602 : vector<2x32xf32>
    %604 = vector.extract_strided_slice %583 {offsets = [0, 64], sizes = [2, 32], strides = [1, 1]} : vector<2x128xf32> to vector<2x32xf32>
    %605 = math.tanh %604 : vector<2x32xf32>
    %606 = vector.extract_strided_slice %583 {offsets = [0, 96], sizes = [2, 32], strides = [1, 1]} : vector<2x128xf32> to vector<2x32xf32>
    %607 = arith.negf %606 : vector<2x32xf32>
    %608 = math.exp %607 : vector<2x32xf32>
    %cst_158 = arith.constant 1.000000e+00 : f32
    %609 = vector.broadcast %cst_158 : f32 to vector<2x32xf32>
    %610 = arith.addf %609, %608 : vector<2x32xf32>
    %611 = arith.divf %609, %610 : vector<2x32xf32>
    %612 = arith.mulf %603, %518 : vector<2x32xf32>
    %613 = arith.mulf %597, %605 : vector<2x32xf32>
    %614 = arith.addf %612, %613 : vector<2x32xf32>
    %615 = math.tanh %614 : vector<2x32xf32>
    %616 = arith.mulf %611, %615 : vector<2x32xf32>
    %617 = arith.truncf %616 : vector<2x32xf32> to vector<2x32xbf16>
    %c0_159 = arith.constant 0 : index
    %c0_160 = arith.constant 0 : index
    %618 = vector.load %arg4[%c0_159, %c0_160] : memref<32x64xbf16, #tpu.memory_space<vmem>>, vector<32x64xbf16>
    %cst_161 = arith.constant dense<0.000000e+00> : vector<2x64xf32>
    %619 = tpu.matmul %617, %618, %cst_161 {dimension_numbers = #tpu.dot_dimension_numbers<[1], [0], [0], [1], [0, 0, 1, 1], [], []>} : vector<2x32xbf16>, vector<32x64xbf16>, vector<2x64xf32> -> vector<2x64xf32>
    %620 = arith.addf %619, %587 : vector<2x64xf32>
    %621 = vector.extract_strided_slice %620 {offsets = [0, 0], sizes = [2, 16], strides = [1, 1]} : vector<2x64xf32> to vector<2x16xf32>
    %622 = arith.negf %621 : vector<2x16xf32>
    %623 = math.exp %622 : vector<2x16xf32>
    %cst_162 = arith.constant 1.000000e+00 : f32
    %624 = vector.broadcast %cst_162 : f32 to vector<2x16xf32>
    %625 = arith.addf %624, %623 : vector<2x16xf32>
    %626 = arith.divf %624, %625 : vector<2x16xf32>
    %627 = vector.extract_strided_slice %620 {offsets = [0, 16], sizes = [2, 16], strides = [1, 1]} : vector<2x64xf32> to vector<2x16xf32>
    %628 = arith.negf %627 : vector<2x16xf32>
    %629 = math.exp %628 : vector<2x16xf32>
    %cst_163 = arith.constant 1.000000e+00 : f32
    %630 = vector.broadcast %cst_163 : f32 to vector<2x16xf32>
    %631 = arith.addf %630, %629 : vector<2x16xf32>
    %632 = arith.divf %630, %631 : vector<2x16xf32>
    %633 = vector.extract_strided_slice %620 {offsets = [0, 32], sizes = [2, 16], strides = [1, 1]} : vector<2x64xf32> to vector<2x16xf32>
    %634 = math.tanh %633 : vector<2x16xf32>
    %635 = vector.extract_strided_slice %620 {offsets = [0, 48], sizes = [2, 16], strides = [1, 1]} : vector<2x64xf32> to vector<2x16xf32>
    %636 = arith.negf %635 : vector<2x16xf32>
    %637 = math.exp %636 : vector<2x16xf32>
    %cst_164 = arith.constant 1.000000e+00 : f32
    %638 = vector.broadcast %cst_164 : f32 to vector<2x16xf32>
    %639 = arith.addf %638, %637 : vector<2x16xf32>
    %640 = arith.divf %638, %639 : vector<2x16xf32>
    %641 = arith.mulf %632, %547 : vector<2x16xf32>
    %642 = arith.mulf %626, %634 : vector<2x16xf32>
    %643 = arith.addf %641, %642 : vector<2x16xf32>
    %644 = math.tanh %643 : vector<2x16xf32>
    %645 = arith.mulf %640, %644 : vector<2x16xf32>
    %646 = arith.truncf %645 : vector<2x16xf32> to vector<2x16xbf16>
    %c0_165 = arith.constant 0 : index
    %c0_166 = arith.constant 0 : index
    %647 = vector.load %arg7[%c0_165, %c0_166] : memref<16x32xbf16, #tpu.memory_space<vmem>>, vector<16x32xbf16>
    %cst_167 = arith.constant dense<0.000000e+00> : vector<2x32xf32>
    %648 = tpu.matmul %646, %647, %cst_167 {dimension_numbers = #tpu.dot_dimension_numbers<[1], [0], [0], [1], [0, 0, 1, 1], [], []>} : vector<2x16xbf16>, vector<16x32xbf16>, vector<2x32xf32> -> vector<2x32xf32>
    %649 = arith.addf %648, %591 : vector<2x32xf32>
    %650 = vector.extract_strided_slice %649 {offsets = [0, 0], sizes = [2, 8], strides = [1, 1]} : vector<2x32xf32> to vector<2x8xf32>
    %651 = arith.negf %650 : vector<2x8xf32>
    %652 = math.exp %651 : vector<2x8xf32>
    %cst_168 = arith.constant 1.000000e+00 : f32
    %653 = vector.broadcast %cst_168 : f32 to vector<2x8xf32>
    %654 = arith.addf %653, %652 : vector<2x8xf32>
    %655 = arith.divf %653, %654 : vector<2x8xf32>
    %656 = vector.extract_strided_slice %649 {offsets = [0, 8], sizes = [2, 8], strides = [1, 1]} : vector<2x32xf32> to vector<2x8xf32>
    %657 = arith.negf %656 : vector<2x8xf32>
    %658 = math.exp %657 : vector<2x8xf32>
    %cst_169 = arith.constant 1.000000e+00 : f32
    %659 = vector.broadcast %cst_169 : f32 to vector<2x8xf32>
    %660 = arith.addf %659, %658 : vector<2x8xf32>
    %661 = arith.divf %659, %660 : vector<2x8xf32>
    %662 = vector.extract_strided_slice %649 {offsets = [0, 16], sizes = [2, 8], strides = [1, 1]} : vector<2x32xf32> to vector<2x8xf32>
    %663 = math.tanh %662 : vector<2x8xf32>
    %664 = vector.extract_strided_slice %649 {offsets = [0, 24], sizes = [2, 8], strides = [1, 1]} : vector<2x32xf32> to vector<2x8xf32>
    %665 = arith.negf %664 : vector<2x8xf32>
    %666 = math.exp %665 : vector<2x8xf32>
    %cst_170 = arith.constant 1.000000e+00 : f32
    %667 = vector.broadcast %cst_170 : f32 to vector<2x8xf32>
    %668 = arith.addf %667, %666 : vector<2x8xf32>
    %669 = arith.divf %667, %668 : vector<2x8xf32>
    %670 = arith.mulf %661, %576 : vector<2x8xf32>
    %671 = arith.mulf %655, %663 : vector<2x8xf32>
    %672 = arith.addf %670, %671 : vector<2x8xf32>
    %673 = math.tanh %672 : vector<2x8xf32>
    %674 = arith.mulf %669, %673 : vector<2x8xf32>
    %675 = vector.extract_strided_slice %5 {offsets = [14, 0], sizes = [2, 128], strides = [1, 1]} : vector<16x128xf32> to vector<2x128xf32>
    %676 = arith.truncf %616 : vector<2x32xf32> to vector<2x32xbf16>
    %c0_171 = arith.constant 0 : index
    %c0_172 = arith.constant 0 : index
    %677 = vector.load %arg2[%c0_171, %c0_172] : memref<32x128xbf16, #tpu.memory_space<vmem>>, vector<32x128xbf16>
    %cst_173 = arith.constant dense<0.000000e+00> : vector<2x128xf32>
    %678 = tpu.matmul %676, %677, %cst_173 {dimension_numbers = #tpu.dot_dimension_numbers<[1], [0], [0], [1], [0, 0, 1, 1], [], []>} : vector<2x32xbf16>, vector<32x128xbf16>, vector<2x128xf32> -> vector<2x128xf32>
    %679 = arith.addf %675, %678 : vector<2x128xf32>
    %680 = arith.truncf %645 : vector<2x16xf32> to vector<2x16xbf16>
    %c0_174 = arith.constant 0 : index
    %c0_175 = arith.constant 0 : index
    %681 = vector.load %arg5[%c0_174, %c0_175] : memref<16x64xbf16, #tpu.memory_space<vmem>>, vector<16x64xbf16>
    %cst_176 = arith.constant dense<0.000000e+00> : vector<2x64xf32>
    %682 = tpu.matmul %680, %681, %cst_176 {dimension_numbers = #tpu.dot_dimension_numbers<[1], [0], [0], [1], [0, 0, 1, 1], [], []>} : vector<2x16xbf16>, vector<16x64xbf16>, vector<2x64xf32> -> vector<2x64xf32>
    %683 = arith.addf %8, %682 : vector<2x64xf32>
    %684 = arith.truncf %674 : vector<2x8xf32> to vector<2x8xbf16>
    %c0_177 = arith.constant 0 : index
    %c0_178 = arith.constant 0 : index
    %685 = vector.load %arg8[%c0_177, %c0_178] : memref<8x32xbf16, #tpu.memory_space<vmem>>, vector<8x32xbf16>
    %cst_179 = arith.constant dense<0.000000e+00> : vector<2x32xf32>
    %686 = tpu.matmul %684, %685, %cst_179 {dimension_numbers = #tpu.dot_dimension_numbers<[1], [0], [0], [1], [0, 0, 1, 1], [], []>} : vector<2x8xbf16>, vector<8x32xbf16>, vector<2x32xf32> -> vector<2x32xf32>
    %687 = arith.addf %11, %686 : vector<2x32xf32>
    %688 = vector.extract_strided_slice %679 {offsets = [0, 0], sizes = [2, 32], strides = [1, 1]} : vector<2x128xf32> to vector<2x32xf32>
    %689 = arith.negf %688 : vector<2x32xf32>
    %690 = math.exp %689 : vector<2x32xf32>
    %cst_180 = arith.constant 1.000000e+00 : f32
    %691 = vector.broadcast %cst_180 : f32 to vector<2x32xf32>
    %692 = arith.addf %691, %690 : vector<2x32xf32>
    %693 = arith.divf %691, %692 : vector<2x32xf32>
    %694 = vector.extract_strided_slice %679 {offsets = [0, 32], sizes = [2, 32], strides = [1, 1]} : vector<2x128xf32> to vector<2x32xf32>
    %695 = arith.negf %694 : vector<2x32xf32>
    %696 = math.exp %695 : vector<2x32xf32>
    %cst_181 = arith.constant 1.000000e+00 : f32
    %697 = vector.broadcast %cst_181 : f32 to vector<2x32xf32>
    %698 = arith.addf %697, %696 : vector<2x32xf32>
    %699 = arith.divf %697, %698 : vector<2x32xf32>
    %700 = vector.extract_strided_slice %679 {offsets = [0, 64], sizes = [2, 32], strides = [1, 1]} : vector<2x128xf32> to vector<2x32xf32>
    %701 = math.tanh %700 : vector<2x32xf32>
    %702 = vector.extract_strided_slice %679 {offsets = [0, 96], sizes = [2, 32], strides = [1, 1]} : vector<2x128xf32> to vector<2x32xf32>
    %703 = arith.negf %702 : vector<2x32xf32>
    %704 = math.exp %703 : vector<2x32xf32>
    %cst_182 = arith.constant 1.000000e+00 : f32
    %705 = vector.broadcast %cst_182 : f32 to vector<2x32xf32>
    %706 = arith.addf %705, %704 : vector<2x32xf32>
    %707 = arith.divf %705, %706 : vector<2x32xf32>
    %708 = arith.mulf %699, %614 : vector<2x32xf32>
    %709 = arith.mulf %693, %701 : vector<2x32xf32>
    %710 = arith.addf %708, %709 : vector<2x32xf32>
    %711 = math.tanh %710 : vector<2x32xf32>
    %712 = arith.mulf %707, %711 : vector<2x32xf32>
    %713 = arith.truncf %712 : vector<2x32xf32> to vector<2x32xbf16>
    %c0_183 = arith.constant 0 : index
    %c0_184 = arith.constant 0 : index
    %714 = vector.load %arg4[%c0_183, %c0_184] : memref<32x64xbf16, #tpu.memory_space<vmem>>, vector<32x64xbf16>
    %cst_185 = arith.constant dense<0.000000e+00> : vector<2x64xf32>
    %715 = tpu.matmul %713, %714, %cst_185 {dimension_numbers = #tpu.dot_dimension_numbers<[1], [0], [0], [1], [0, 0, 1, 1], [], []>} : vector<2x32xbf16>, vector<32x64xbf16>, vector<2x64xf32> -> vector<2x64xf32>
    %716 = arith.addf %715, %683 : vector<2x64xf32>
    %717 = vector.extract_strided_slice %716 {offsets = [0, 0], sizes = [2, 16], strides = [1, 1]} : vector<2x64xf32> to vector<2x16xf32>
    %718 = arith.negf %717 : vector<2x16xf32>
    %719 = math.exp %718 : vector<2x16xf32>
    %cst_186 = arith.constant 1.000000e+00 : f32
    %720 = vector.broadcast %cst_186 : f32 to vector<2x16xf32>
    %721 = arith.addf %720, %719 : vector<2x16xf32>
    %722 = arith.divf %720, %721 : vector<2x16xf32>
    %723 = vector.extract_strided_slice %716 {offsets = [0, 16], sizes = [2, 16], strides = [1, 1]} : vector<2x64xf32> to vector<2x16xf32>
    %724 = arith.negf %723 : vector<2x16xf32>
    %725 = math.exp %724 : vector<2x16xf32>
    %cst_187 = arith.constant 1.000000e+00 : f32
    %726 = vector.broadcast %cst_187 : f32 to vector<2x16xf32>
    %727 = arith.addf %726, %725 : vector<2x16xf32>
    %728 = arith.divf %726, %727 : vector<2x16xf32>
    %729 = vector.extract_strided_slice %716 {offsets = [0, 32], sizes = [2, 16], strides = [1, 1]} : vector<2x64xf32> to vector<2x16xf32>
    %730 = math.tanh %729 : vector<2x16xf32>
    %731 = vector.extract_strided_slice %716 {offsets = [0, 48], sizes = [2, 16], strides = [1, 1]} : vector<2x64xf32> to vector<2x16xf32>
    %732 = arith.negf %731 : vector<2x16xf32>
    %733 = math.exp %732 : vector<2x16xf32>
    %cst_188 = arith.constant 1.000000e+00 : f32
    %734 = vector.broadcast %cst_188 : f32 to vector<2x16xf32>
    %735 = arith.addf %734, %733 : vector<2x16xf32>
    %736 = arith.divf %734, %735 : vector<2x16xf32>
    %737 = arith.mulf %728, %643 : vector<2x16xf32>
    %738 = arith.mulf %722, %730 : vector<2x16xf32>
    %739 = arith.addf %737, %738 : vector<2x16xf32>
    %740 = math.tanh %739 : vector<2x16xf32>
    %741 = arith.mulf %736, %740 : vector<2x16xf32>
    %742 = arith.truncf %741 : vector<2x16xf32> to vector<2x16xbf16>
    %c0_189 = arith.constant 0 : index
    %c0_190 = arith.constant 0 : index
    %743 = vector.load %arg7[%c0_189, %c0_190] : memref<16x32xbf16, #tpu.memory_space<vmem>>, vector<16x32xbf16>
    %cst_191 = arith.constant dense<0.000000e+00> : vector<2x32xf32>
    %744 = tpu.matmul %742, %743, %cst_191 {dimension_numbers = #tpu.dot_dimension_numbers<[1], [0], [0], [1], [0, 0, 1, 1], [], []>} : vector<2x16xbf16>, vector<16x32xbf16>, vector<2x32xf32> -> vector<2x32xf32>
    %745 = arith.addf %744, %687 : vector<2x32xf32>
    %746 = vector.extract_strided_slice %745 {offsets = [0, 0], sizes = [2, 8], strides = [1, 1]} : vector<2x32xf32> to vector<2x8xf32>
    %747 = arith.negf %746 : vector<2x8xf32>
    %748 = math.exp %747 : vector<2x8xf32>
    %cst_192 = arith.constant 1.000000e+00 : f32
    %749 = vector.broadcast %cst_192 : f32 to vector<2x8xf32>
    %750 = arith.addf %749, %748 : vector<2x8xf32>
    %751 = arith.divf %749, %750 : vector<2x8xf32>
    %752 = vector.extract_strided_slice %745 {offsets = [0, 8], sizes = [2, 8], strides = [1, 1]} : vector<2x32xf32> to vector<2x8xf32>
    %753 = arith.negf %752 : vector<2x8xf32>
    %754 = math.exp %753 : vector<2x8xf32>
    %cst_193 = arith.constant 1.000000e+00 : f32
    %755 = vector.broadcast %cst_193 : f32 to vector<2x8xf32>
    %756 = arith.addf %755, %754 : vector<2x8xf32>
    %757 = arith.divf %755, %756 : vector<2x8xf32>
    %758 = vector.extract_strided_slice %745 {offsets = [0, 16], sizes = [2, 8], strides = [1, 1]} : vector<2x32xf32> to vector<2x8xf32>
    %759 = math.tanh %758 : vector<2x8xf32>
    %760 = vector.extract_strided_slice %745 {offsets = [0, 24], sizes = [2, 8], strides = [1, 1]} : vector<2x32xf32> to vector<2x8xf32>
    %761 = arith.negf %760 : vector<2x8xf32>
    %762 = math.exp %761 : vector<2x8xf32>
    %cst_194 = arith.constant 1.000000e+00 : f32
    %763 = vector.broadcast %cst_194 : f32 to vector<2x8xf32>
    %764 = arith.addf %763, %762 : vector<2x8xf32>
    %765 = arith.divf %763, %764 : vector<2x8xf32>
    %766 = arith.mulf %757, %672 : vector<2x8xf32>
    %767 = arith.mulf %751, %759 : vector<2x8xf32>
    %768 = arith.addf %766, %767 : vector<2x8xf32>
    %769 = math.tanh %768 : vector<2x8xf32>
    %770 = arith.mulf %765, %769 : vector<2x8xf32>
    %771 = arith.truncf %770 : vector<2x8xf32> to vector<2x8xbf16>
    %c0_195 = arith.constant 0 : index
    %c0_196 = arith.constant 0 : index
    %772 = vector.load %arg10[%c0_195, %c0_196] : memref<8x16xbf16, #tpu.memory_space<vmem>>, vector<8x16xbf16>
    %cst_197 = arith.constant dense<0.000000e+00> : vector<2x16xf32>
    %773 = tpu.matmul %771, %772, %cst_197 {dimension_numbers = #tpu.dot_dimension_numbers<[1], [0], [0], [1], [0, 0, 1, 1], [], []>} : vector<2x8xbf16>, vector<8x16xbf16>, vector<2x16xf32> -> vector<2x16xf32>
    %c0_198 = arith.constant 0 : index
    %c0_199 = arith.constant 0 : index
    %774 = vector.load %arg11[%c0_198, %c0_199] : memref<1x16xf32, #tpu.memory_space<vmem>>, vector<1x16xf32>
    %775 = vector.broadcast %774 : vector<1x16xf32> to vector<2x16xf32>
    %776 = arith.addf %773, %775 : vector<2x16xf32>
    %cst_200 = arith.constant 0.000000e+00 : f32
    %777 = vector.broadcast %cst_200 : f32 to vector<2x16xf32>
    %778 = arith.maximumf %776, %777 : vector<2x16xf32>
    %779 = arith.truncf %778 : vector<2x16xf32> to vector<2x16xbf16>
    %c0_201 = arith.constant 0 : index
    %c0_202 = arith.constant 0 : index
    %780 = vector.load %arg12[%c0_201, %c0_202] : memref<16x128xbf16, #tpu.memory_space<vmem>>, vector<16x128xbf16>
    %cst_203 = arith.constant dense<0.000000e+00> : vector<2x128xf32>
    %781 = tpu.matmul %779, %780, %cst_203 {dimension_numbers = #tpu.dot_dimension_numbers<[1], [0], [0], [1], [0, 0, 1, 1], [], []>} : vector<2x16xbf16>, vector<16x128xbf16>, vector<2x128xf32> -> vector<2x128xf32>
    %c0_204 = arith.constant 0 : index
    %c0_205 = arith.constant 0 : index
    %782 = vector.load %arg13[%c0_204, %c0_205] : memref<1x128xf32, #tpu.memory_space<vmem>>, vector<1x128xf32>
    %783 = vector.broadcast %782 : vector<1x128xf32> to vector<2x128xf32>
    %784 = arith.addf %781, %783 : vector<2x128xf32>
    %c0_206 = arith.constant 0 : index
    %c0_207 = arith.constant 0 : index
    %785 = vector.load %arg14[%c0_206, %c0_207] : memref<2x128xf32, #tpu.memory_space<vmem>>, vector<2x128xf32>
    tpu.vector_store %arg14[%c0_206, %c0_207], %784 {strides = array<i32>} : memref<2x128xf32, #tpu.memory_space<vmem>>, vector<2x128xf32>,
    return
  }
}

</mosaic_0001>

<llo_original>
// kernel: tpu_custom_call.1
$region0: #{tpu_custom_call.1}
  #allocation0 [shape = 'u32[]', space=smem, size = 0x4, offset = 0x4, fixed_abs, tag = 'smem constant byte address 0x4 - core index']
  #allocation1 [shape = 'u32[144,128]{1,0:T(1,128)}', space=vmem, size = 0x12000, scoped, tag = 'internal scratch']
  %s0 = inlined_call_operand.vmem [shape: bf16[16,4], index: 0, kind: input, shape index: {}]
  %s1 = inlined_call_operand.hbm [shape: bf16[4,128], index: 1, kind: input, shape index: {}]
  %s2 = inlined_call_operand.vmem [shape: bf16[32,128], index: 2, kind: input, shape index: {}]
  %s3 = inlined_call_operand.hbm [shape: f32[1,128], index: 3, kind: input, shape index: {}]
  %s4 = inlined_call_operand.hbm [shape: bf16[32,64], index: 4, kind: input, shape index: {}]
  %s5 = inlined_call_operand.vmem [shape: bf16[16,64], index: 5, kind: input, shape index: {}]
  %s6 = inlined_call_operand.hbm [shape: f32[1,64], index: 6, kind: input, shape index: {}]
  %s7 = inlined_call_operand.vmem [shape: bf16[16,32], index: 7, kind: input, shape index: {}]
  %s8 = inlined_call_operand.hbm [shape: bf16[8,32], index: 8, kind: input, shape index: {}]
  %s9 = inlined_call_operand.hbm [shape: f32[1,32], index: 9, kind: input, shape index: {}]
  %s10 = inlined_call_operand.vmem [shape: bf16[8,16], index: 10, kind: input, shape index: {}]
  %s11 = inlined_call_operand.vmem [shape: f32[1,16], index: 11, kind: input, shape index: {}]
  %s12 = inlined_call_operand.vmem [shape: bf16[16,128], index: 12, kind: input, shape index: {}]
  %s13 = inlined_call_operand.vmem [shape: f32[1,128], index: 13, kind: input, shape index: {}]
  %s14 = inlined_call_operand.hbm [shape: f32[2,128], index: 14, kind: output, shape index: {}]
  %s15 = sld [smem:[#allocation0]]
  $region90: #{tpu_custom_call.1} parent=0
    _
  %s17 = ssub.s32 1, %s15
  %s18 = scalar_select 0, %s17, %s15
  $region1: #{tpu_custom_call.1} parent=0
    #allocation2 [shape = 'u8[1024]{0}', space=vmem, size = 0x400, scoped, tag = 'input window, operand 1, single buffered']
    #allocation3 [shape = 's32[1]{0}', space=sflag, size = 0x4, scoped, tag = 'scoped memory for tpu_custom_call.1']
    #allocation4 [shape = 's32[1]{0}', space=sflag, size = 0x4, scoped, tag = 'scoped memory for tpu_custom_call.1']
    #allocation5 [shape = 'u8[512]{0}', space=vmem, size = 0x400, scoped, tag = 'input window, operand 3, single buffered']
    #allocation6 [shape = 's32[1]{0}', space=sflag, size = 0x4, scoped, tag = 'scoped memory for tpu_custom_call.1']
    #allocation7 [shape = 'u8[8192]{0}', space=vmem, size = 0x2000, scoped, tag = 'input window, operand 4, single buffered']
    #allocation8 [shape = 'u8[512]{0}', space=vmem, size = 0x400, scoped, tag = 'input window, operand 6, single buffered']
    #allocation9 [shape = 's32[1]{0}', space=sflag, size = 0x4, scoped, tag = 'scoped memory for tpu_custom_call.1']
    #allocation10 [shape = 'u8[2048]{0}', space=vmem, size = 0x800, scoped, tag = 'input window, operand 8, single buffered']
    #allocation11 [shape = 'u8[512]{0}', space=vmem, size = 0x400, scoped, tag = 'input window, operand 9, single buffered']
    #allocation12 [shape = 's32[1]{0}', space=sflag, size = 0x4, scoped, tag = 'scoped memory for tpu_custom_call.1']
    #allocation13 [shape = 'u8[1024]{0}', space=vmem, size = 0x400, scoped, tag = 'output window, operand 0, single buffered']
    %19 = vsyncpa [#allocation3], 0
    %20 = vsyncpa [#allocation6], 0
    %21 = vsyncpa [#allocation9], 0
    %22 = vsyncpa [#allocation12], 0
    %23 = vsyncpa [#allocation4], 0
    // Predicated region
    $region2: #{tpu_custom_call.1} parent=1 // pred_check
      _
    $region3: #{tpu_custom_call.1} parent=1 // pred_check_branch
      %25 = sbr.rel (0) target = $region5
    $region4: #{tpu_custom_call.1} parent=1 // pred_region
      _
    $region5: #{tpu_custom_call.1} parent=1 // pred_fallthru
      _
    // Predicated region
    $region6: #{tpu_custom_call.1} parent=1 // pred_check
      _
    $region7: #{tpu_custom_call.1} parent=1 // pred_check_branch
      %27 = sbr.rel (0) target = $region9
    $region8: #{tpu_custom_call.1} parent=1 // pred_region
      %s29 = ssub.s32 32, 32
      %30 = vsyncadd [#allocation3], %s29
      %s32 = sshll.u32 [#allocation2], 4
      %s33 = int_to_ptr.vmem [resolvable:$true] %s32
      %35 = dma.hbm_to_vmem [thread:$0]  %s1, 32, %s33, [#allocation3]
    $region9: #{tpu_custom_call.1} parent=1 // pred_fallthru
      _
    // Predicated region
    $region10: #{tpu_custom_call.1} parent=1 // pred_check
      _
    $region11: #{tpu_custom_call.1} parent=1 // pred_check_branch
      %37 = sbr.rel (0) target = $region13
    $region12: #{tpu_custom_call.1} parent=1 // pred_region
      _
    $region13: #{tpu_custom_call.1} parent=1 // pred_fallthru
      _
    // Predicated region
    $region14: #{tpu_custom_call.1} parent=1 // pred_check
      _
    $region15: #{tpu_custom_call.1} parent=1 // pred_check_branch
      %39 = sbr.rel (0) target = $region17
    $region16: #{tpu_custom_call.1} parent=1 // pred_region
      %s41 = ssub.s32 16, 16
      %42 = vsyncadd [#allocation6], %s41
      %s44 = sshll.u32 [#allocation5], 4
      %s45 = int_to_ptr.vmem [resolvable:$true] %s44
      %47 = dma.hbm_to_vmem [thread:$0]  %s3, 16, %s45, [#allocation6]
    $region17: #{tpu_custom_call.1} parent=1 // pred_fallthru
      _
    // Predicated region
    $region18: #{tpu_custom_call.1} parent=1 // pred_check
      _
    $region19: #{tpu_custom_call.1} parent=1 // pred_check_branch
      %49 = sbr.rel (0) target = $region21
    $region20: #{tpu_custom_call.1} parent=1 // pred_region
      %s51 = ssub.s32 256, 256
      %52 = vsyncadd [#allocation6], %s51
      %s53 = sshll.u32 [#allocation7], 4
      %s54 = int_to_ptr.vmem [resolvable:$true] %s53
      %59 = dma.hbm_to_vmem [thread:$0]  %s4, 256, %s54, [#allocation6], 64, 64, 4
    $region21: #{tpu_custom_call.1} parent=1 // pred_fallthru
      _
    // Predicated region
    $region22: #{tpu_custom_call.1} parent=1 // pred_check
      _
    $region23: #{tpu_custom_call.1} parent=1 // pred_check_branch
      %61 = sbr.rel (0) target = $region25
    $region24: #{tpu_custom_call.1} parent=1 // pred_region
      _
    $region25: #{tpu_custom_call.1} parent=1 // pred_fallthru
      _
    // Predicated region
    $region26: #{tpu_custom_call.1} parent=1 // pred_check
      _
    $region27: #{tpu_custom_call.1} parent=1 // pred_check_branch
      %63 = sbr.rel (0) target = $region29
    $region28: #{tpu_custom_call.1} parent=1 // pred_region
      %s65 = ssub.s32 16, 16
      %66 = vsyncadd [#allocation9], %s65
      %s68 = sshll.u32 [#allocation8], 4
      %s69 = int_to_ptr.vmem [resolvable:$true] %s68
      %71 = dma.hbm_to_vmem [thread:$0]  %s6, 16, %s69, [#allocation9]
    $region29: #{tpu_custom_call.1} parent=1 // pred_fallthru
      _
    // Predicated region
    $region30: #{tpu_custom_call.1} parent=1 // pred_check
      _
    $region31: #{tpu_custom_call.1} parent=1 // pred_check_branch
      %73 = sbr.rel (0) target = $region33
    $region32: #{tpu_custom_call.1} parent=1 // pred_region
      _
    $region33: #{tpu_custom_call.1} parent=1 // pred_fallthru
      _
    // Predicated region
    $region34: #{tpu_custom_call.1} parent=1 // pred_check
      _
    $region35: #{tpu_custom_call.1} parent=1 // pred_check_branch
      %75 = sbr.rel (0) target = $region37
    $region36: #{tpu_custom_call.1} parent=1 // pred_region
      %s77 = ssub.s32 64, 64
      %78 = vsyncadd [#allocation9], %s77
      %s80 = sshll.u32 [#allocation10], 4
      %s81 = int_to_ptr.vmem [resolvable:$true] %s80
      %83 = dma.hbm_to_vmem [thread:$0]  %s8, 64, %s81, [#allocation9]
    $region37: #{tpu_custom_call.1} parent=1 // pred_fallthru
      _
    // Predicated region
    $region38: #{tpu_custom_call.1} parent=1 // pred_check
      _
    $region39: #{tpu_custom_call.1} parent=1 // pred_check_branch
      %85 = sbr.rel (0) target = $region41
    $region40: #{tpu_custom_call.1} parent=1 // pred_region
      %s87 = ssub.s32 16, 16
      %88 = vsyncadd [#allocation12], %s87
      %s90 = sshll.u32 [#allocation11], 4
      %s91 = int_to_ptr.vmem [resolvable:$true] %s90
      %93 = dma.hbm_to_vmem [thread:$0]  %s9, 16, %s91, [#allocation12]
    $region41: #{tpu_custom_call.1} parent=1 // pred_fallthru
      _
    // Predicated region
    $region42: #{tpu_custom_call.1} parent=1 // pred_check
      _
    $region43: #{tpu_custom_call.1} parent=1 // pred_check_branch
      %95 = sbr.rel (0) target = $region45
    $region44: #{tpu_custom_call.1} parent=1 // pred_region
      _
    $region45: #{tpu_custom_call.1} parent=1 // pred_fallthru
      _
    // Predicated region
    $region46: #{tpu_custom_call.1} parent=1 // pred_check
      _
    $region47: #{tpu_custom_call.1} parent=1 // pred_check_branch
      %97 = sbr.rel (0) target = $region49
    $region48: #{tpu_custom_call.1} parent=1 // pred_region
      _
    $region49: #{tpu_custom_call.1} parent=1 // pred_fallthru
      _
    // Predicated region
    $region50: #{tpu_custom_call.1} parent=1 // pred_check
      _
    $region51: #{tpu_custom_call.1} parent=1 // pred_check_branch
      %99 = sbr.rel (0) target = $region53
    $region52: #{tpu_custom_call.1} parent=1 // pred_region
      _
    $region53: #{tpu_custom_call.1} parent=1 // pred_fallthru
      _
    // Predicated region
    $region54: #{tpu_custom_call.1} parent=1 // pred_check
      _
    $region55: #{tpu_custom_call.1} parent=1 // pred_check_branch
      %101 = sbr.rel (0) target = $region57
    $region56: #{tpu_custom_call.1} parent=1 // pred_region
      _
    $region57: #{tpu_custom_call.1} parent=1 // pred_fallthru
      _
    // Predicated region
    $region58: #{tpu_custom_call.1} parent=1 // pred_check
      _
    $region59: #{tpu_custom_call.1} parent=1 // pred_check_branch
      %103 = sbr.rel (0) target = $region61
    $region60: #{tpu_custom_call.1} parent=1 // pred_region
      %104 = dma.done [#allocation3], 32
    $region61: #{tpu_custom_call.1} parent=1 // pred_fallthru
      _
    // Predicated region
    $region62: #{tpu_custom_call.1} parent=1 // pred_check
      _
    $region63: #{tpu_custom_call.1} parent=1 // pred_check_branch
      %106 = sbr.rel (0) target = $region65
    $region64: #{tpu_custom_call.1} parent=1 // pred_region
      %107 = dma.done [#allocation6], 16
    $region65: #{tpu_custom_call.1} parent=1 // pred_fallthru
      _
    // Predicated region
    $region66: #{tpu_custom_call.1} parent=1 // pred_check
      _
    $region67: #{tpu_custom_call.1} parent=1 // pred_check_branch
      %109 = sbr.rel (0) target = $region69
    $region68: #{tpu_custom_call.1} parent=1 // pred_region
      %110 = dma.done [#allocation6], 256
    $region69: #{tpu_custom_call.1} parent=1 // pred_fallthru
      _
    // Predicated region
    $region70: #{tpu_custom_call.1} parent=1 // pred_check
      _
    $region71: #{tpu_custom_call.1} parent=1 // pred_check_branch
      %112 = sbr.rel (0) target = $region73
    $region72: #{tpu_custom_call.1} parent=1 // pred_region
      %113 = dma.done [#allocation9], 16
    $region73: #{tpu_custom_call.1} parent=1 // pred_fallthru
      _
    // Predicated region
    $region74: #{tpu_custom_call.1} parent=1 // pred_check
      _
    $region75: #{tpu_custom_call.1} parent=1 // pred_check_branch
      %115 = sbr.rel (0) target = $region77
    $region76: #{tpu_custom_call.1} parent=1 // pred_region
      %116 = dma.done [#allocation9], 64
    $region77: #{tpu_custom_call.1} parent=1 // pred_fallthru
      _
    // Predicated region
    $region78: #{tpu_custom_call.1} parent=1 // pred_check
      _
    $region79: #{tpu_custom_call.1} parent=1 // pred_check_branch
      %118 = sbr.rel (0) target = $region81
    $region80: #{tpu_custom_call.1} parent=1 // pred_region
      %119 = dma.done [#allocation12], 16
    $region81: #{tpu_custom_call.1} parent=1 // pred_fallthru
      _
    %v121 = vld [vmem:[%s0] sm:$0xf]
    %v122 = vld [vmem:[%s0 + $0x4] sm:$0xf]
    %v123 = vld [vmem:[#allocation2] sm:$0x3]
    %v124 = vld [vmem:[#allocation5] sm:$0x1]
    %v126 = vlaneseq
    %v127 = vshrl.u32 %v126, 7
    %v128 = vsub.s32 0, %v127
    %v129 = vrot.slane %v124, %v128
    %v133 = vunpack.c.l.b16 %v121
    %v134 = vunpack.c.l.b16 %v122
    %v135 = vpack.c.b16 %v134, %v133
    %vm136 = vcmask 31744
    %v138 = vsel %vm136, %v135, 0
    %vm140 = vcmask 1041408
    %v142 = vsel %vm140, %v123, 0
    %144 = vmatprep.subr.bf16.mxu0 0
    %145 = vmatpush1.bf16.msra.mxu0 %v142
    %146 = vmatprep.subr.bf16.mxu0 0
    %147 = vmatpush1.bf16.msra.mxu0 0
    %148 = vmatprep.subr.bf16.mxu0 0
    %149 = vmatpush1.bf16.msra.mxu0 0
    %150 = vmatprep.subr.bf16.mxu0 0
    %151 = vmatpush1.bf16.msra.mxu0 0
    %152 = vmatprep.subr.bf16.mxu0 0
    %153 = vmatpush1.bf16.msra.mxu0 0
    %154 = vmatprep.subr.bf16.mxu0 0
    %155 = vmatpush1.bf16.msra.mxu0 0
    %156 = vmatprep.subr.bf16.mxu0 0
    %157 = vmatpush1.bf16.msra.mxu0 0
    %158 = vmatprep.subr.bf16.mxu0 0
    %159 = vmatpush1.bf16.msra.mxu0 0
    %160 = vmatprep.subr.bf16.mxu0 0
    %161 = vmatpush1.bf16.msra.mxu0 0
    %162 = vmatprep.subr.bf16.mxu0 0
    %163 = vmatpush1.bf16.msra.mxu0 0
    %164 = vmatprep.subr.bf16.mxu0 0
    %165 = vmatpush1.bf16.msra.mxu0 0
    %166 = vmatprep.subr.bf16.mxu0 0
    %167 = vmatpush1.bf16.msra.mxu0 0
    %168 = vmatprep.subr.bf16.mxu0 0
    %169 = vmatpush1.bf16.msra.mxu0 0
    %170 = vmatprep.subr.bf16.mxu0 0
    %171 = vmatpush1.bf16.msra.mxu0 0
    %172 = vmatprep.subr.bf16.mxu0 0
    %173 = vmatpush1.bf16.msra.mxu0 0
    %174 = vmatprep.subr.bf16.mxu0 0
    %175 = vmatpush1.bf16.msra.mxu0 0
    %176 = vmatprep.mubr.bf16.mxu0 0
    %177 = vmatmul.mubr.bf16.gmra.mrb[0].mxu0 %v138
    %v178 = vpop.f32.mrb[0].mxu0
    %v179 = vadd.f32 %v129, %v178
    %v180 = vpop.f32.mrb[0].mxu0
    %v181 = vpop.f32.mrb[0].mxu0
    %v182 = vadd.f32 %v129, %v181
    %v183 = vpop.f32.mrb[0].mxu0
    %184 = vdwg.mxu0
    %v185 = vld [vmem:[#allocation8] sm:$0x1]
    %v187 = vlaneseq
    %v188 = vshrl.u32 %v187, 7
    %v189 = vsub.s32 0, %v188
    %v190 = vrot.slane %v185, %v189
    %v192 = vld [vmem:[#allocation11] sm:$0x1]
    %v194 = vlaneseq
    %v195 = vshrl.u32 %v194, 7
    %v196 = vsub.s32 0, %v195
    %v197 = vrot.slane %v192, %v196
    %v199 = vxor.u32 %v179, 2147483648
    %v200 = vmul.f32 %v199, 1.442695
    %v201 = vpow.pop %v200
    %v202 = vadd.f32 %v201, 1.0
    %v203 = vrcp.pop %v202
    %v204 = vmul.f32 1.0, %v203
    %v205 = vtanh.pop %v179
    %v206 = vmul.f32 %v204, 0.0
    %208 = vrot.lane.b32.xlu0 %v205, 64
    %v209 = vpop.permute.xlu0 %208
    %v211 = vmul.f32 %v204, %v209
    %213 = vrot.lane.b32.xlu0 %v211, 32
    %v214 = vpop.permute.xlu0 %213
    %v216 = vadd.f32 %v206, %v214
    %v217 = vtanh.pop %v216
    %219 = vrot.lane.b32.xlu0 %v217, 64
    %v220 = vpop.permute.xlu0 %219
    %v222 = vmul.f32 %v204, %v220
    %v223 = vpack.c.bf16 %v222, %v222
    %v224 = vld [vmem:[#allocation7] sm:$0xf]
    %v225 = vld [vmem:[#allocation7 + $0x4] sm:$0xf]
    %v226 = vld [vmem:[#allocation7 + $0x8] sm:$0xf]
    %v227 = vld [vmem:[#allocation7 + $0xc] sm:$0xf]
    %229 = vrot.lane.b32.xlu0 %v223, 32
    %v230 = vpop.permute.xlu0 %229
    %v235 = vunpack.c.l.b16 %v224
    %v236 = vunpack.c.l.b16 %v225
    %v237 = vunpack.c.l.b16 %v226
    %v238 = vunpack.c.l.b16 %v227
    %v239 = vpack.c.b16 %v236, %v235
    %v240 = vpack.c.b16 %v238, %v237
    %vm243 = vcmask 261120
    %v245 = vsel %vm243, %v230, 0
    %247 = vmatprep.subr.bf16.mxu0 0
    %248 = vmatpush1.bf16.msra.mxu0 %v239
    %249 = vmatprep.subr.bf16.mxu0 0
    %250 = vmatpush1.bf16.msra.mxu0 %v240
    %251 = vmatprep.subr.bf16.mxu0 0
    %252 = vmatpush1.bf16.msra.mxu0 0
    %253 = vmatprep.subr.bf16.mxu0 0
    %254 = vmatpush1.bf16.msra.mxu0 0
    %255 = vmatprep.subr.bf16.mxu0 0
    %256 = vmatpush1.bf16.msra.mxu0 0
    %257 = vmatprep.subr.bf16.mxu0 0
    %258 = vmatpush1.bf16.msra.mxu0 0
    %259 = vmatprep.subr.bf16.mxu0 0
    %260 = vmatpush1.bf16.msra.mxu0 0
    %261 = vmatprep.subr.bf16.mxu0 0
    %262 = vmatpush1.bf16.msra.mxu0 0
    %263 = vmatprep.subr.bf16.mxu0 0
    %264 = vmatpush1.bf16.msra.mxu0 0
    %265 = vmatprep.subr.bf16.mxu0 0
    %266 = vmatpush1.bf16.msra.mxu0 0
    %267 = vmatprep.subr.bf16.mxu0 0
    %268 = vmatpush1.bf16.msra.mxu0 0
    %269 = vmatprep.subr.bf16.mxu0 0
    %270 = vmatpush1.bf16.msra.mxu0 0
    %271 = vmatprep.subr.bf16.mxu0 0
    %272 = vmatpush1.bf16.msra.mxu0 0
    %273 = vmatprep.subr.bf16.mxu0 0
    %274 = vmatpush1.bf16.msra.mxu0 0
    %275 = vmatprep.subr.bf16.mxu0 0
    %276 = vmatpush1.bf16.msra.mxu0 0
    %277 = vmatprep.subr.bf16.mxu0 0
    %278 = vmatpush1.bf16.msra.mxu0 0
    %279 = vmatprep.mubr.bf16.mxu0 0
    %280 = vmatmul.mubr.bf16.gmra.mrb[0].mxu0 %v245
    %v281 = vpop.f32.mrb[0].mxu0
    %v282 = vadd.f32 %v190, %v281
    %v283 = vpop.f32.mrb[0].mxu0
    %v284 = vpop.f32.mrb[0].mxu0
    %v285 = vpop.f32.mrb[0].mxu0
    %286 = vdwg.mxu0
    %v287 = vxor.u32 %v282, 2147483648
    %v288 = vmul.f32 %v287, 1.442695
    %v289 = vpow.pop %v288
    %v290 = vadd.f32 %v289, 1.0
    %v291 = vrcp.pop %v290
    %v292 = vmul.f32 1.0, %v291
    %v293 = vtanh.pop %v282
    %v294 = vmul.f32 %v292, 0.0
    %296 = vrot.lane.b32.xlu0 %v293, 96
    %v297 = vpop.permute.xlu0 %296
    %v299 = vmul.f32 %v292, %v297
    %301 = vrot.lane.b32.xlu0 %v299, 16
    %v302 = vpop.permute.xlu0 %301
    %v304 = vadd.f32 %v294, %v302
    %v305 = vtanh.pop %v304
    %307 = vrot.lane.b32.xlu0 %v305, 32
    %v308 = vpop.permute.xlu0 %307
    %v310 = vmul.f32 %v292, %v308
    %v311 = vpack.c.bf16 %v310, %v310
    %v312 = vld [vmem:[%s7] sm:$0xf]
    %v313 = vld [vmem:[%s7 + $0x4] sm:$0xf]
    %315 = vrot.lane.b32.xlu0 %v311, 80
    %v316 = vpop.permute.xlu0 %315
    %v319 = vunpack.c.l.b16 %v312
    %v320 = vunpack.c.l.b16 %v313
    %v321 = vpack.c.b16 %v320, %v319
    %vm323 = vcmask 130048
    %v325 = vsel %vm323, %v316, 0
    %327 = vmatprep.subr.bf16.mxu0 0
    %328 = vmatpush1.bf16.msra.mxu0 %v321
    %329 = vmatprep.subr.bf16.mxu0 0
    %330 = vmatpush1.bf16.msra.mxu0 0
    %331 = vmatprep.subr.bf16.mxu0 0
    %332 = vmatpush1.bf16.msra.mxu0 0
    %333 = vmatprep.subr.bf16.mxu0 0
    %334 = vmatpush1.bf16.msra.mxu0 0
    %335 = vmatprep.subr.bf16.mxu0 0
    %336 = vmatpush1.bf16.msra.mxu0 0
    %337 = vmatprep.subr.bf16.mxu0 0
    %338 = vmatpush1.bf16.msra.mxu0 0
    %339 = vmatprep.subr.bf16.mxu0 0
    %340 = vmatpush1.bf16.msra.mxu0 0
    %341 = vmatprep.subr.bf16.mxu0 0
    %342 = vmatpush1.bf16.msra.mxu0 0
    %343 = vmatprep.subr.bf16.mxu0 0
    %344 = vmatpush1.bf16.msra.mxu0 0
    %345 = vmatprep.subr.bf16.mxu0 0
    %346 = vmatpush1.bf16.msra.mxu0 0
    %347 = vmatprep.subr.bf16.mxu0 0
    %348 = vmatpush1.bf16.msra.mxu0 0
    %349 = vmatprep.subr.bf16.mxu0 0
    %350 = vmatpush1.bf16.msra.mxu0 0
    %351 = vmatprep.subr.bf16.mxu0 0
    %352 = vmatpush1.bf16.msra.mxu0 0
    %353 = vmatprep.subr.bf16.mxu0 0
    %354 = vmatpush1.bf16.msra.mxu0 0
    %355 = vmatprep.subr.bf16.mxu0 0
    %356 = vmatpush1.bf16.msra.mxu0 0
    %357 = vmatprep.subr.bf16.mxu0 0
    %358 = vmatpush1.bf16.msra.mxu0 0
    %359 = vmatprep.mubr.bf16.mxu0 0
    %360 = vmatmul.mubr.bf16.gmra.mrb[0].mxu0 %v325
    %v361 = vpop.f32.mrb[0].mxu0
    %v362 = vadd.f32 %v197, %v361
    %v363 = vpop.f32.mrb[0].mxu0
    %v364 = vpop.f32.mrb[0].mxu0
    %v365 = vpop.f32.mrb[0].mxu0
    %366 = vdwg.mxu0
    %v367 = vxor.u32 %v362, 2147483648
    %v368 = vmul.f32 %v367, 1.442695
    %v369 = vpow.pop %v368
    %v370 = vadd.f32 %v369, 1.0
    %v371 = vrcp.pop %v370
    %v372 = vmul.f32 1.0, %v371
    %v373 = vtanh.pop %v362
    %v374 = vmul.f32 %v372, 0.0
    %376 = vrot.lane.b32.xlu0 %v373, 112
    %v377 = vpop.permute.xlu0 %376
    %v379 = vmul.f32 %v372, %v377
    %381 = vrot.lane.b32.xlu0 %v379, 8
    %v382 = vpop.permute.xlu0 %381
    %v384 = vadd.f32 %v374, %v382
    %v385 = vtanh.pop %v384
    %387 = vrot.lane.b32.xlu0 %v385, 16
    %v388 = vpop.permute.xlu0 %387
    %v390 = vmul.f32 %v372, %v388
    %v391 = vld [vmem:[%s2] sm:$0xf]
    %v392 = vld [vmem:[%s2 + $0x4] sm:$0xf]
    %v393 = vld [vmem:[%s2 + $0x8] sm:$0xf]
    %v394 = vld [vmem:[%s2 + $0xc] sm:$0xf]
    %v399 = vunpack.c.l.b16 %v391
    %v400 = vunpack.c.l.b16 %v392
    %v401 = vunpack.c.l.b16 %v393
    %v402 = vunpack.c.l.b16 %v394
    %v403 = vpack.c.b16 %v400, %v399
    %v404 = vpack.c.b16 %v402, %v401
    %407 = vmatprep.subr.bf16.mxu0 0
    %408 = vmatpush1.bf16.msra.mxu0 %v403
    %409 = vmatprep.subr.bf16.mxu0 0
    %410 = vmatpush1.bf16.msra.mxu0 %v404
    %411 = vmatprep.subr.bf16.mxu0 0
    %412 = vmatpush1.bf16.msra.mxu0 0
    %413 = vmatprep.subr.bf16.mxu0 0
    %414 = vmatpush1.bf16.msra.mxu0 0
    %415 = vmatprep.subr.bf16.mxu0 0
    %416 = vmatpush1.bf16.msra.mxu0 0
    %417 = vmatprep.subr.bf16.mxu0 0
    %418 = vmatpush1.bf16.msra.mxu0 0
    %419 = vmatprep.subr.bf16.mxu0 0
    %420 = vmatpush1.bf16.msra.mxu0 0
    %421 = vmatprep.subr.bf16.mxu0 0
    %422 = vmatpush1.bf16.msra.mxu0 0
    %423 = vmatprep.subr.bf16.mxu0 0
    %424 = vmatpush1.bf16.msra.mxu0 0
    %425 = vmatprep.subr.bf16.mxu0 0
    %426 = vmatpush1.bf16.msra.mxu0 0
    %427 = vmatprep.subr.bf16.mxu0 0
    %428 = vmatpush1.bf16.msra.mxu0 0
    %429 = vmatprep.subr.bf16.mxu0 0
    %430 = vmatpush1.bf16.msra.mxu0 0
    %431 = vmatprep.subr.bf16.mxu0 0
    %432 = vmatpush1.bf16.msra.mxu0 0
    %433 = vmatprep.subr.bf16.mxu0 0
    %434 = vmatpush1.bf16.msra.mxu0 0
    %435 = vmatprep.subr.bf16.mxu0 0
    %436 = vmatpush1.bf16.msra.mxu0 0
    %437 = vmatprep.subr.bf16.mxu0 0
    %438 = vmatpush1.bf16.msra.mxu0 0
    %439 = vmatprep.mubr.bf16.mxu0 0
    %440 = vmatmul.mubr.bf16.gmra.mrb[0].mxu0 %v245
    %v441 = vpop.f32.mrb[0].mxu0
    %v442 = vadd.f32 0.0, %v441
    %v443 = vpop.f32.mrb[0].mxu0
    %v444 = vpop.f32.mrb[0].mxu0
    %v445 = vpop.f32.mrb[0].mxu0
    %446 = vdwg.mxu0
    %v448 = vrot.slane %v442, 6
    %v450 = vadd.f32 %v179, %v448
    %v451 = vld [vmem:[%s5] sm:$0xf]
    %v452 = vld [vmem:[%s5 + $0x4] sm:$0xf]
    %v455 = vunpack.c.l.b16 %v451
    %v456 = vunpack.c.l.b16 %v452
    %v457 = vpack.c.b16 %v456, %v455
    %459 = vmatprep.subr.bf16.mxu0 0
    %460 = vmatpush1.bf16.msra.mxu0 %v457
    %461 = vmatprep.subr.bf16.mxu0 0
    %462 = vmatpush1.bf16.msra.mxu0 0
    %463 = vmatprep.subr.bf16.mxu0 0
    %464 = vmatpush1.bf16.msra.mxu0 0
    %465 = vmatprep.subr.bf16.mxu0 0
    %466 = vmatpush1.bf16.msra.mxu0 0
    %467 = vmatprep.subr.bf16.mxu0 0
    %468 = vmatpush1.bf16.msra.mxu0 0
    %469 = vmatprep.subr.bf16.mxu0 0
    %470 = vmatpush1.bf16.msra.mxu0 0
    %471 = vmatprep.subr.bf16.mxu0 0
    %472 = vmatpush1.bf16.msra.mxu0 0
    %473 = vmatprep.subr.bf16.mxu0 0
    %474 = vmatpush1.bf16.msra.mxu0 0
    %475 = vmatprep.subr.bf16.mxu0 0
    %476 = vmatpush1.bf16.msra.mxu0 0
    %477 = vmatprep.subr.bf16.mxu0 0
    %478 = vmatpush1.bf16.msra.mxu0 0
    %479 = vmatprep.subr.bf16.mxu0 0
    %480 = vmatpush1.bf16.msra.mxu0 0
    %481 = vmatprep.subr.bf16.mxu0 0
    %482 = vmatpush1.bf16.msra.mxu0 0
    %483 = vmatprep.subr.bf16.mxu0 0
    %484 = vmatpush1.bf16.msra.mxu0 0
    %485 = vmatprep.subr.bf16.mxu0 0
    %486 = vmatpush1.bf16.msra.mxu0 0
    %487 = vmatprep.subr.bf16.mxu0 0
    %488 = vmatpush1.bf16.msra.mxu0 0
    %489 = vmatprep.subr.bf16.mxu0 0
    %490 = vmatpush1.bf16.msra.mxu0 0
    %491 = vmatprep.mubr.bf16.mxu0 0
    %492 = vmatmul.mubr.bf16.gmra.mrb[0].mxu0 %v325
    %v493 = vpop.f32.mrb[0].mxu0
    %v494 = vadd.f32 0.0, %v493
    %v495 = vpop.f32.mrb[0].mxu0
    %v496 = vpop.f32.mrb[0].mxu0
    %v497 = vpop.f32.mrb[0].mxu0
    %498 = vdwg.mxu0
    %v499 = vadd.f32 %v190, %v494
    %v500 = vpack.c.bf16 %v390, %v390
    %v501 = vld [vmem:[#allocation10] sm:$0xf]
    %503 = vrot.lane.b32.xlu0 %v500, 104
    %v504 = vpop.permute.xlu0 %503
    %vm505 = vcmask 64512
    %v507 = vsel %vm505, %v504, 0
    %vm509 = vcmask 1043456
    %v511 = vsel %vm509, %v501, 0
    %513 = vmatprep.subr.bf16.mxu0 0
    %514 = vmatpush1.bf16.msra.mxu0 %v511
    %515 = vmatprep.subr.bf16.mxu0 0
    %516 = vmatpush1.bf16.msra.mxu0 0
    %517 = vmatprep.subr.bf16.mxu0 0
    %518 = vmatpush1.bf16.msra.mxu0 0
    %519 = vmatprep.subr.bf16.mxu0 0
    %520 = vmatpush1.bf16.msra.mxu0 0
    %521 = vmatprep.subr.bf16.mxu0 0
    %522 = vmatpush1.bf16.msra.mxu0 0
    %523 = vmatprep.subr.bf16.mxu0 0
    %524 = vmatpush1.bf16.msra.mxu0 0
    %525 = vmatprep.subr.bf16.mxu0 0
    %526 = vmatpush1.bf16.msra.mxu0 0
    %527 = vmatprep.subr.bf16.mxu0 0
    %528 = vmatpush1.bf16.msra.mxu0 0
    %529 = vmatprep.subr.bf16.mxu0 0
    %530 = vmatpush1.bf16.msra.mxu0 0
    %531 = vmatprep.subr.bf16.mxu0 0
    %532 = vmatpush1.bf16.msra.mxu0 0
    %533 = vmatprep.subr.bf16.mxu0 0
    %534 = vmatpush1.bf16.msra.mxu0 0
    %535 = vmatprep.subr.bf16.mxu0 0
    %536 = vmatpush1.bf16.msra.mxu0 0
    %537 = vmatprep.subr.bf16.mxu0 0
    %538 = vmatpush1.bf16.msra.mxu0 0
    %539 = vmatprep.subr.bf16.mxu0 0
    %540 = vmatpush1.bf16.msra.mxu0 0
    %541 = vmatprep.subr.bf16.mxu0 0
    %542 = vmatpush1.bf16.msra.mxu0 0
    %543 = vmatprep.subr.bf16.mxu0 0
    %544 = vmatpush1.bf16.msra.mxu0 0
    %545 = vmatprep.mubr.bf16.mxu0 0
    %546 = vmatmul.mubr.bf16.gmra.mrb[0].mxu0 %v507
    %v547 = vpop.f32.mrb[0].mxu0
    %v548 = vadd.f32 0.0, %v547
    %v549 = vpop.f32.mrb[0].mxu0
    %v550 = vpop.f32.mrb[0].mxu0
    %v551 = vpop.f32.mrb[0].mxu0
    %552 = vdwg.mxu0
    %v553 = vadd.f32 %v197, %v548
    %v554 = vxor.u32 %v450, 2147483648
    %v555 = vmul.f32 %v554, 1.442695
    %v556 = vpow.pop %v555
    %v557 = vadd.f32 %v556, 1.0
    %v558 = vrcp.pop %v557
    %v559 = vmul.f32 1.0, %v558
    %v560 = vtanh.pop %v450
    %v562 = vrot.slane %v216, 6
    %v564 = vmul.f32 %v559, %v562
    %566 = vrot.lane.b32.xlu0 %v560, 64
    %v567 = vpop.permute.xlu0 %566
    %v569 = vmul.f32 %v559, %v567
    %571 = vrot.lane.b32.xlu0 %v569, 32
    %v572 = vpop.permute.xlu0 %571
    %v574 = vadd.f32 %v564, %v572
    %v575 = vtanh.pop %v574
    %577 = vrot.lane.b32.xlu0 %v575, 64
    %v578 = vpop.permute.xlu0 %577
    %v580 = vmul.f32 %v559, %v578
    %v581 = vpack.c.bf16 %v580, %v580
    %v583 = vrot.slane %v581, 1
    %584 = vrot.lane.b32.xlu0 %v583, 32
    %v585 = vpop.permute.xlu0 %584
    %v587 = vsel %vm243, %v585, 0
    %589 = vmatprep.subr.bf16.mxu0 0
    %590 = vmatpush1.bf16.msra.mxu0 %v239
    %591 = vmatprep.subr.bf16.mxu0 0
    %592 = vmatpush1.bf16.msra.mxu0 %v240
    %593 = vmatprep.subr.bf16.mxu0 0
    %594 = vmatpush1.bf16.msra.mxu0 0
    %595 = vmatprep.subr.bf16.mxu0 0
    %596 = vmatpush1.bf16.msra.mxu0 0
    %597 = vmatprep.subr.bf16.mxu0 0
    %598 = vmatpush1.bf16.msra.mxu0 0
    %599 = vmatprep.subr.bf16.mxu0 0
    %600 = vmatpush1.bf16.msra.mxu0 0
    %601 = vmatprep.subr.bf16.mxu0 0
    %602 = vmatpush1.bf16.msra.mxu0 0
    %603 = vmatprep.subr.bf16.mxu0 0
    %604 = vmatpush1.bf16.msra.mxu0 0
    %605 = vmatprep.subr.bf16.mxu0 0
    %606 = vmatpush1.bf16.msra.mxu0 0
    %607 = vmatprep.subr.bf16.mxu0 0
    %608 = vmatpush1.bf16.msra.mxu0 0
    %609 = vmatprep.subr.bf16.mxu0 0
    %610 = vmatpush1.bf16.msra.mxu0 0
    %611 = vmatprep.subr.bf16.mxu0 0
    %612 = vmatpush1.bf16.msra.mxu0 0
    %613 = vmatprep.subr.bf16.mxu0 0
    %614 = vmatpush1.bf16.msra.mxu0 0
    %615 = vmatprep.subr.bf16.mxu0 0
    %616 = vmatpush1.bf16.msra.mxu0 0
    %617 = vmatprep.subr.bf16.mxu0 0
    %618 = vmatpush1.bf16.msra.mxu0 0
    %619 = vmatprep.subr.bf16.mxu0 0
    %620 = vmatpush1.bf16.msra.mxu0 0
    %621 = vmatprep.mubr.bf16.mxu0 0
    %622 = vmatmul.mubr.bf16.gmra.mrb[0].mxu0 %v587
    %v623 = vpop.f32.mrb[0].mxu0
    %v624 = vadd.f32 %v499, %v623
    %v625 = vpop.f32.mrb[0].mxu0
    %v626 = vpop.f32.mrb[0].mxu0
    %v627 = vpop.f32.mrb[0].mxu0
    %628 = vdwg.mxu0
    %v629 = vxor.u32 %v624, 2147483648
    %v630 = vmul.f32 %v629, 1.442695
    %v631 = vpow.pop %v630
    %v632 = vadd.f32 %v631, 1.0
    %v633 = vrcp.pop %v632
    %v634 = vmul.f32 1.0, %v633
    %v635 = vtanh.pop %v624
    %v636 = vmul.f32 %v634, %v304
    %638 = vrot.lane.b32.xlu0 %v635, 96
    %v639 = vpop.permute.xlu0 %638
    %v641 = vmul.f32 %v634, %v639
    %643 = vrot.lane.b32.xlu0 %v641, 16
    %v644 = vpop.permute.xlu0 %643
    %v646 = vadd.f32 %v636, %v644
    %v647 = vtanh.pop %v646
    %649 = vrot.lane.b32.xlu0 %v647, 32
    %v650 = vpop.permute.xlu0 %649
    %v652 = vmul.f32 %v634, %v650
    %v653 = vpack.c.bf16 %v652, %v652
    %655 = vrot.lane.b32.xlu0 %v653, 80
    %v656 = vpop.permute.xlu0 %655
    %v658 = vsel %vm323, %v656, 0
    %660 = vmatprep.subr.bf16.mxu0 0
    %661 = vmatpush1.bf16.msra.mxu0 %v321
    %662 = vmatprep.subr.bf16.mxu0 0
    %663 = vmatpush1.bf16.msra.mxu0 0
    %664 = vmatprep.subr.bf16.mxu0 0
    %665 = vmatpush1.bf16.msra.mxu0 0
    %666 = vmatprep.subr.bf16.mxu0 0
    %667 = vmatpush1.bf16.msra.mxu0 0
    %668 = vmatprep.subr.bf16.mxu0 0
    %669 = vmatpush1.bf16.msra.mxu0 0
    %670 = vmatprep.subr.bf16.mxu0 0
    %671 = vmatpush1.bf16.msra.mxu0 0
    %672 = vmatprep.subr.bf16.mxu0 0
    %673 = vmatpush1.bf16.msra.mxu0 0
    %674 = vmatprep.subr.bf16.mxu0 0
    %675 = vmatpush1.bf16.msra.mxu0 0
    %676 = vmatprep.subr.bf16.mxu0 0
    %677 = vmatpush1.bf16.msra.mxu0 0
    %678 = vmatprep.subr.bf16.mxu0 0
    %679 = vmatpush1.bf16.msra.mxu0 0
    %680 = vmatprep.subr.bf16.mxu0 0
    %681 = vmatpush1.bf16.msra.mxu0 0
    %682 = vmatprep.subr.bf16.mxu0 0
    %683 = vmatpush1.bf16.msra.mxu0 0
    %684 = vmatprep.subr.bf16.mxu0 0
    %685 = vmatpush1.bf16.msra.mxu0 0
    %686 = vmatprep.subr.bf16.mxu0 0
    %687 = vmatpush1.bf16.msra.mxu0 0
    %688 = vmatprep.subr.bf16.mxu0 0
    %689 = vmatpush1.bf16.msra.mxu0 0
    %690 = vmatprep.subr.bf16.mxu0 0
    %691 = vmatpush1.bf16.msra.mxu0 0
    %692 = vmatprep.mubr.bf16.mxu0 0
    %693 = vmatmul.mubr.bf16.gmra.mrb[0].mxu0 %v658
    %v694 = vpop.f32.mrb[0].mxu0
    %v695 = vadd.f32 %v553, %v694
    %v696 = vpop.f32.mrb[0].mxu0
    %v697 = vpop.f32.mrb[0].mxu0
    %v698 = vpop.f32.mrb[0].mxu0
    %699 = vdwg.mxu0
    %v700 = vxor.u32 %v695, 2147483648
    %v701 = vmul.f32 %v700, 1.442695
    %v702 = vpow.pop %v701
    %v703 = vadd.f32 %v702, 1.0
    %v704 = vrcp.pop %v703
    %v705 = vmul.f32 1.0, %v704
    %v706 = vtanh.pop %v695
    %v707 = vmul.f32 %v705, %v384
    %709 = vrot.lane.b32.xlu0 %v706, 112
    %v710 = vpop.permute.xlu0 %709
    %v712 = vmul.f32 %v705, %v710
    %714 = vrot.lane.b32.xlu0 %v712, 8
    %v715 = vpop.permute.xlu0 %714
    %v717 = vadd.f32 %v707, %v715
    %v718 = vtanh.pop %v717
    %720 = vrot.lane.b32.xlu0 %v718, 16
    %v721 = vpop.permute.xlu0 %720
    %v723 = vmul.f32 %v705, %v721
    %724 = vmatprep.subr.bf16.mxu0 0
    %725 = vmatpush1.bf16.msra.mxu0 %v403
    %726 = vmatprep.subr.bf16.mxu0 0
    %727 = vmatpush1.bf16.msra.mxu0 %v404
    %728 = vmatprep.subr.bf16.mxu0 0
    %729 = vmatpush1.bf16.msra.mxu0 0
    %730 = vmatprep.subr.bf16.mxu0 0
    %731 = vmatpush1.bf16.msra.mxu0 0
    %732 = vmatprep.subr.bf16.mxu0 0
    %733 = vmatpush1.bf16.msra.mxu0 0
    %734 = vmatprep.subr.bf16.mxu0 0
    %735 = vmatpush1.bf16.msra.mxu0 0
    %736 = vmatprep.subr.bf16.mxu0 0
    %737 = vmatpush1.bf16.msra.mxu0 0
    %738 = vmatprep.subr.bf16.mxu0 0
    %739 = vmatpush1.bf16.msra.mxu0 0
    %740 = vmatprep.subr.bf16.mxu0 0
    %741 = vmatpush1.bf16.msra.mxu0 0
    %742 = vmatprep.subr.bf16.mxu0 0
    %743 = vmatpush1.bf16.msra.mxu0 0
    %744 = vmatprep.subr.bf16.mxu0 0
    %745 = vmatpush1.bf16.msra.mxu0 0
    %746 = vmatprep.subr.bf16.mxu0 0
    %747 = vmatpush1.bf16.msra.mxu0 0
    %748 = vmatprep.subr.bf16.mxu0 0
    %749 = vmatpush1.bf16.msra.mxu0 0
    %750 = vmatprep.subr.bf16.mxu0 0
    %751 = vmatpush1.bf16.msra.mxu0 0
    %752 = vmatprep.subr.bf16.mxu0 0
    %753 = vmatpush1.bf16.msra.mxu0 0
    %754 = vmatprep.subr.bf16.mxu0 0
    %755 = vmatpush1.bf16.msra.mxu0 0
    %756 = vmatprep.mubr.bf16.mxu0 0
    %757 = vmatmul.mubr.bf16.gmra.mrb[0].mxu0 %v587
    %v758 = vpop.f32.mrb[0].mxu0
    %v759 = vadd.f32 0.0, %v758
    %v760 = vpop.f32.mrb[0].mxu0
    %v761 = vpop.f32.mrb[0].mxu0
    %v762 = vpop.f32.mrb[0].mxu0
    %763 = vdwg.mxu0
    %v765 = vrot.slane %v759, 4
    %v767 = vadd.f32 %v179, %v765
    %768 = vmatprep.subr.bf16.mxu0 0
    %769 = vmatpush1.bf16.msra.mxu0 %v457
    %770 = vmatprep.subr.bf16.mxu0 0
    %771 = vmatpush1.bf16.msra.mxu0 0
    %772 = vmatprep.subr.bf16.mxu0 0
    %773 = vmatpush1.bf16.msra.mxu0 0
    %774 = vmatprep.subr.bf16.mxu0 0
    %775 = vmatpush1.bf16.msra.mxu0 0
    %776 = vmatprep.subr.bf16.mxu0 0
    %777 = vmatpush1.bf16.msra.mxu0 0
    %778 = vmatprep.subr.bf16.mxu0 0
    %779 = vmatpush1.bf16.msra.mxu0 0
    %780 = vmatprep.subr.bf16.mxu0 0
    %781 = vmatpush1.bf16.msra.mxu0 0
    %782 = vmatprep.subr.bf16.mxu0 0
    %783 = vmatpush1.bf16.msra.mxu0 0
    %784 = vmatprep.subr.bf16.mxu0 0
    %785 = vmatpush1.bf16.msra.mxu0 0
    %786 = vmatprep.subr.bf16.mxu0 0
    %787 = vmatpush1.bf16.msra.mxu0 0
    %788 = vmatprep.subr.bf16.mxu0 0
    %789 = vmatpush1.bf16.msra.mxu0 0
    %790 = vmatprep.subr.bf16.mxu0 0
    %791 = vmatpush1.bf16.msra.mxu0 0
    %792 = vmatprep.subr.bf16.mxu0 0
    %793 = vmatpush1.bf16.msra.mxu0 0
    %794 = vmatprep.subr.bf16.mxu0 0
    %795 = vmatpush1.bf16.msra.mxu0 0
    %796 = vmatprep.subr.bf16.mxu0 0
    %797 = vmatpush1.bf16.msra.mxu0 0
    %798 = vmatprep.subr.bf16.mxu0 0
    %799 = vmatpush1.bf16.msra.mxu0 0
    %800 = vmatprep.mubr.bf16.mxu0 0
    %801 = vmatmul.mubr.bf16.gmra.mrb[0].mxu0 %v658
    %v802 = vpop.f32.mrb[0].mxu0
    %v803 = vadd.f32 0.0, %v802
    %v804 = vpop.f32.mrb[0].mxu0
    %v805 = vpop.f32.mrb[0].mxu0
    %v806 = vpop.f32.mrb[0].mxu0
    %807 = vdwg.mxu0
    %v808 = vadd.f32 %v190, %v803
    %v809 = vpack.c.bf16 %v723, %v723
    %811 = vrot.lane.b32.xlu0 %v809, 104
    %v812 = vpop.permute.xlu0 %811
    %v814 = vsel %vm505, %v812, 0
    %816 = vmatprep.subr.bf16.mxu0 0
    %817 = vmatpush1.bf16.msra.mxu0 %v511
    %818 = vmatprep.subr.bf16.mxu0 0
    %819 = vmatpush1.bf16.msra.mxu0 0
    %820 = vmatprep.subr.bf16.mxu0 0
    %821 = vmatpush1.bf16.msra.mxu0 0
    %822 = vmatprep.subr.bf16.mxu0 0
    %823 = vmatpush1.bf16.msra.mxu0 0
    %824 = vmatprep.subr.bf16.mxu0 0
    %825 = vmatpush1.bf16.msra.mxu0 0
    %826 = vmatprep.subr.bf16.mxu0 0
    %827 = vmatpush1.bf16.msra.mxu0 0
    %828 = vmatprep.subr.bf16.mxu0 0
    %829 = vmatpush1.bf16.msra.mxu0 0
    %830 = vmatprep.subr.bf16.mxu0 0
    %831 = vmatpush1.bf16.msra.mxu0 0
    %832 = vmatprep.subr.bf16.mxu0 0
    %833 = vmatpush1.bf16.msra.mxu0 0
    %834 = vmatprep.subr.bf16.mxu0 0
    %835 = vmatpush1.bf16.msra.mxu0 0
    %836 = vmatprep.subr.bf16.mxu0 0
    %837 = vmatpush1.bf16.msra.mxu0 0
    %838 = vmatprep.subr.bf16.mxu0 0
    %839 = vmatpush1.bf16.msra.mxu0 0
    %840 = vmatprep.subr.bf16.mxu0 0
    %841 = vmatpush1.bf16.msra.mxu0 0
    %842 = vmatprep.subr.bf16.mxu0 0
    %843 = vmatpush1.bf16.msra.mxu0 0
    %844 = vmatprep.subr.bf16.mxu0 0
    %845 = vmatpush1.bf16.msra.mxu0 0
    %846 = vmatprep.subr.bf16.mxu0 0
    %847 = vmatpush1.bf16.msra.mxu0 0
    %848 = vmatprep.mubr.bf16.mxu0 0
    %849 = vmatmul.mubr.bf16.gmra.mrb[0].mxu0 %v814
    %v850 = vpop.f32.mrb[0].mxu0
    %v851 = vadd.f32 0.0, %v850
    %v852 = vpop.f32.mrb[0].mxu0
    %v853 = vpop.f32.mrb[0].mxu0
    %v854 = vpop.f32.mrb[0].mxu0
    %855 = vdwg.mxu0
    %v856 = vadd.f32 %v197, %v851
    %v857 = vxor.u32 %v767, 2147483648
    %v858 = vmul.f32 %v857, 1.442695
    %v859 = vpow.pop %v858
    %v860 = vadd.f32 %v859, 1.0
    %v861 = vrcp.pop %v860
    %v862 = vmul.f32 1.0, %v861
    %v863 = vtanh.pop %v767
    %v865 = vrot.slane %v574, 6
    %v867 = vmul.f32 %v862, %v865
    %869 = vrot.lane.b32.xlu0 %v863, 64
    %v870 = vpop.permute.xlu0 %869
    %v872 = vmul.f32 %v862, %v870
    %874 = vrot.lane.b32.xlu0 %v872, 32
    %v875 = vpop.permute.xlu0 %874
    %v877 = vadd.f32 %v867, %v875
    %v878 = vtanh.pop %v877
    %880 = vrot.lane.b32.xlu0 %v878, 64
    %v881 = vpop.permute.xlu0 %880
    %v883 = vmul.f32 %v862, %v881
    %v884 = vpack.c.bf16 %v883, %v883
    %v886 = vrot.slane %v884, 2
    %887 = vrot.lane.b32.xlu0 %v886, 32
    %v888 = vpop.permute.xlu0 %887
    %v890 = vsel %vm243, %v888, 0
    %892 = vmatprep.subr.bf16.mxu0 0
    %893 = vmatpush1.bf16.msra.mxu0 %v239
    %894 = vmatprep.subr.bf16.mxu0 0
    %895 = vmatpush1.bf16.msra.mxu0 %v240
    %896 = vmatprep.subr.bf16.mxu0 0
    %897 = vmatpush1.bf16.msra.mxu0 0
    %898 = vmatprep.subr.bf16.mxu0 0
    %899 = vmatpush1.bf16.msra.mxu0 0
    %900 = vmatprep.subr.bf16.mxu0 0
    %901 = vmatpush1.bf16.msra.mxu0 0
    %902 = vmatprep.subr.bf16.mxu0 0
    %903 = vmatpush1.bf16.msra.mxu0 0
    %904 = vmatprep.subr.bf16.mxu0 0
    %905 = vmatpush1.bf16.msra.mxu0 0
    %906 = vmatprep.subr.bf16.mxu0 0
    %907 = vmatpush1.bf16.msra.mxu0 0
    %908 = vmatprep.subr.bf16.mxu0 0
    %909 = vmatpush1.bf16.msra.mxu0 0
    %910 = vmatprep.subr.bf16.mxu0 0
    %911 = vmatpush1.bf16.msra.mxu0 0
    %912 = vmatprep.subr.bf16.mxu0 0
    %913 = vmatpush1.bf16.msra.mxu0 0
    %914 = vmatprep.subr.bf16.mxu0 0
    %915 = vmatpush1.bf16.msra.mxu0 0
    %916 = vmatprep.subr.bf16.mxu0 0
    %917 = vmatpush1.bf16.msra.mxu0 0
    %918 = vmatprep.subr.bf16.mxu0 0
    %919 = vmatpush1.bf16.msra.mxu0 0
    %920 = vmatprep.subr.bf16.mxu0 0
    %921 = vmatpush1.bf16.msra.mxu0 0
    %922 = vmatprep.subr.bf16.mxu0 0
    %923 = vmatpush1.bf16.msra.mxu0 0
    %924 = vmatprep.mubr.bf16.mxu0 0
    %925 = vmatmul.mubr.bf16.gmra.mrb[0].mxu0 %v890
    %v926 = vpop.f32.mrb[0].mxu0
    %v927 = vadd.f32 %v808, %v926
    %v928 = vpop.f32.mrb[0].mxu0
    %v929 = vpop.f32.mrb[0].mxu0
    %v930 = vpop.f32.mrb[0].mxu0
    %931 = vdwg.mxu0
    %v932 = vxor.u32 %v927, 2147483648
    %v933 = vmul.f32 %v932, 1.442695
    %v934 = vpow.pop %v933
    %v935 = vadd.f32 %v934, 1.0
    %v936 = vrcp.pop %v935
    %v937 = vmul.f32 1.0, %v936
    %v938 = vtanh.pop %v927
    %v939 = vmul.f32 %v937, %v646
    %941 = vrot.lane.b32.xlu0 %v938, 96
    %v942 = vpop.permute.xlu0 %941
    %v944 = vmul.f32 %v937, %v942
    %946 = vrot.lane.b32.xlu0 %v944, 16
    %v947 = vpop.permute.xlu0 %946
    %v949 = vadd.f32 %v939, %v947
    %v950 = vtanh.pop %v949
    %952 = vrot.lane.b32.xlu0 %v950, 32
    %v953 = vpop.permute.xlu0 %952
    %v955 = vmul.f32 %v937, %v953
    %v956 = vpack.c.bf16 %v955, %v955
    %958 = vrot.lane.b32.xlu0 %v956, 80
    %v959 = vpop.permute.xlu0 %958
    %v961 = vsel %vm323, %v959, 0
    %963 = vmatprep.subr.bf16.mxu0 0
    %964 = vmatpush1.bf16.msra.mxu0 %v321
    %965 = vmatprep.subr.bf16.mxu0 0
    %966 = vmatpush1.bf16.msra.mxu0 0
    %967 = vmatprep.subr.bf16.mxu0 0
    %968 = vmatpush1.bf16.msra.mxu0 0
    %969 = vmatprep.subr.bf16.mxu0 0
    %970 = vmatpush1.bf16.msra.mxu0 0
    %971 = vmatprep.subr.bf16.mxu0 0
    %972 = vmatpush1.bf16.msra.mxu0 0
    %973 = vmatprep.subr.bf16.mxu0 0
    %974 = vmatpush1.bf16.msra.mxu0 0
    %975 = vmatprep.subr.bf16.mxu0 0
    %976 = vmatpush1.bf16.msra.mxu0 0
    %977 = vmatprep.subr.bf16.mxu0 0
    %978 = vmatpush1.bf16.msra.mxu0 0
    %979 = vmatprep.subr.bf16.mxu0 0
    %980 = vmatpush1.bf16.msra.mxu0 0
    %981 = vmatprep.subr.bf16.mxu0 0
    %982 = vmatpush1.bf16.msra.mxu0 0
    %983 = vmatprep.subr.bf16.mxu0 0
    %984 = vmatpush1.bf16.msra.mxu0 0
    %985 = vmatprep.subr.bf16.mxu0 0
    %986 = vmatpush1.bf16.msra.mxu0 0
    %987 = vmatprep.subr.bf16.mxu0 0
    %988 = vmatpush1.bf16.msra.mxu0 0
    %989 = vmatprep.subr.bf16.mxu0 0
    %990 = vmatpush1.bf16.msra.mxu0 0
    %991 = vmatprep.subr.bf16.mxu0 0
    %992 = vmatpush1.bf16.msra.mxu0 0
    %993 = vmatprep.subr.bf16.mxu0 0
    %994 = vmatpush1.bf16.msra.mxu0 0
    %995 = vmatprep.mubr.bf16.mxu0 0
    %996 = vmatmul.mubr.bf16.gmra.mrb[0].mxu0 %v961
    %v997 = vpop.f32.mrb[0].mxu0
    %v998 = vadd.f32 %v856, %v997
    %v999 = vpop.f32.mrb[0].mxu0
    %v1000 = vpop.f32.mrb[0].mxu0
    %v1001 = vpop.f32.mrb[0].mxu0
    %1002 = vdwg.mxu0
    %v1003 = vxor.u32 %v998, 2147483648
    %v1004 = vmul.f32 %v1003, 1.442695
    %v1005 = vpow.pop %v1004
    %v1006 = vadd.f32 %v1005, 1.0
    %v1007 = vrcp.pop %v1006
    %v1008 = vmul.f32 1.0, %v1007
    %v1009 = vtanh.pop %v998
    %v1010 = vmul.f32 %v1008, %v717
    %1012 = vrot.lane.b32.xlu0 %v1009, 112
    %v1013 = vpop.permute.xlu0 %1012
    %v1015 = vmul.f32 %v1008, %v1013
    %1017 = vrot.lane.b32.xlu0 %v1015, 8
    %v1018 = vpop.permute.xlu0 %1017
    %v1020 = vadd.f32 %v1010, %v1018
    %v1021 = vtanh.pop %v1020
    %1023 = vrot.lane.b32.xlu0 %v1021, 16
    %v1024 = vpop.permute.xlu0 %1023
    %v1026 = vmul.f32 %v1008, %v1024
    %1027 = vmatprep.subr.bf16.mxu0 0
    %1028 = vmatpush1.bf16.msra.mxu0 %v403
    %1029 = vmatprep.subr.bf16.mxu0 0
    %1030 = vmatpush1.bf16.msra.mxu0 %v404
    %1031 = vmatprep.subr.bf16.mxu0 0
    %1032 = vmatpush1.bf16.msra.mxu0 0
    %1033 = vmatprep.subr.bf16.mxu0 0
    %1034 = vmatpush1.bf16.msra.mxu0 0
    %1035 = vmatprep.subr.bf16.mxu0 0
    %1036 = vmatpush1.bf16.msra.mxu0 0
    %1037 = vmatprep.subr.bf16.mxu0 0
    %1038 = vmatpush1.bf16.msra.mxu0 0
    %1039 = vmatprep.subr.bf16.mxu0 0
    %1040 = vmatpush1.bf16.msra.mxu0 0
    %1041 = vmatprep.subr.bf16.mxu0 0
    %1042 = vmatpush1.bf16.msra.mxu0 0
    %1043 = vmatprep.subr.bf16.mxu0 0
    %1044 = vmatpush1.bf16.msra.mxu0 0
    %1045 = vmatprep.subr.bf16.mxu0 0
    %1046 = vmatpush1.bf16.msra.mxu0 0
    %1047 = vmatprep.subr.bf16.mxu0 0
    %1048 = vmatpush1.bf16.msra.mxu0 0
    %1049 = vmatprep.subr.bf16.mxu0 0
    %1050 = vmatpush1.bf16.msra.mxu0 0
    %1051 = vmatprep.subr.bf16.mxu0 0
    %1052 = vmatpush1.bf16.msra.mxu0 0
    %1053 = vmatprep.subr.bf16.mxu0 0
    %1054 = vmatpush1.bf16.msra.mxu0 0
    %1055 = vmatprep.subr.bf16.mxu0 0
    %1056 = vmatpush1.bf16.msra.mxu0 0
    %1057 = vmatprep.subr.bf16.mxu0 0
    %1058 = vmatpush1.bf16.msra.mxu0 0
    %1059 = vmatprep.mubr.bf16.mxu0 0
    %1060 = vmatmul.mubr.bf16.gmra.mrb[0].mxu0 %v890
    %v1061 = vpop.f32.mrb[0].mxu0
    %v1062 = vadd.f32 0.0, %v1061
    %v1063 = vpop.f32.mrb[0].mxu0
    %v1064 = vpop.f32.mrb[0].mxu0
    %v1065 = vpop.f32.mrb[0].mxu0
    %1066 = vdwg.mxu0
    %v1068 = vrot.slane %v1062, 2
    %v1070 = vadd.f32 %v179, %v1068
    %1071 = vmatprep.subr.bf16.mxu0 0
    %1072 = vmatpush1.bf16.msra.mxu0 %v457
    %1073 = vmatprep.subr.bf16.mxu0 0
    %1074 = vmatpush1.bf16.msra.mxu0 0
    %1075 = vmatprep.subr.bf16.mxu0 0
    %1076 = vmatpush1.bf16.msra.mxu0 0
    %1077 = vmatprep.subr.bf16.mxu0 0
    %1078 = vmatpush1.bf16.msra.mxu0 0
    %1079 = vmatprep.subr.bf16.mxu0 0
    %1080 = vmatpush1.bf16.msra.mxu0 0
    %1081 = vmatprep.subr.bf16.mxu0 0
    %1082 = vmatpush1.bf16.msra.mxu0 0
    %1083 = vmatprep.subr.bf16.mxu0 0
    %1084 = vmatpush1.bf16.msra.mxu0 0
    %1085 = vmatprep.subr.bf16.mxu0 0
    %1086 = vmatpush1.bf16.msra.mxu0 0
    %1087 = vmatprep.subr.bf16.mxu0 0
    %1088 = vmatpush1.bf16.msra.mxu0 0
    %1089 = vmatprep.subr.bf16.mxu0 0
    %1090 = vmatpush1.bf16.msra.mxu0 0
    %1091 = vmatprep.subr.bf16.mxu0 0
    %1092 = vmatpush1.bf16.msra.mxu0 0
    %1093 = vmatprep.subr.bf16.mxu0 0
    %1094 = vmatpush1.bf16.msra.mxu0 0
    %1095 = vmatprep.subr.bf16.mxu0 0
    %1096 = vmatpush1.bf16.msra.mxu0 0
    %1097 = vmatprep.subr.bf16.mxu0 0
    %1098 = vmatpush1.bf16.msra.mxu0 0
    %1099 = vmatprep.subr.bf16.mxu0 0
    %1100 = vmatpush1.bf16.msra.mxu0 0
    %1101 = vmatprep.subr.bf16.mxu0 0
    %1102 = vmatpush1.bf16.msra.mxu0 0
    %1103 = vmatprep.mubr.bf16.mxu0 0
    %1104 = vmatmul.mubr.bf16.gmra.mrb[0].mxu0 %v961
    %v1105 = vpop.f32.mrb[0].mxu0
    %v1106 = vadd.f32 0.0, %v1105
    %v1107 = vpop.f32.mrb[0].mxu0
    %v1108 = vpop.f32.mrb[0].mxu0
    %v1109 = vpop.f32.mrb[0].mxu0
    %1110 = vdwg.mxu0
    %v1111 = vadd.f32 %v190, %v1106
    %v1112 = vpack.c.bf16 %v1026, %v1026
    %1114 = vrot.lane.b32.xlu0 %v1112, 104
    %v1115 = vpop.permute.xlu0 %1114
    %v1117 = vsel %vm505, %v1115, 0
    %1119 = vmatprep.subr.bf16.mxu0 0
    %1120 = vmatpush1.bf16.msra.mxu0 %v511
    %1121 = vmatprep.subr.bf16.mxu0 0
    %1122 = vmatpush1.bf16.msra.mxu0 0
    %1123 = vmatprep.subr.bf16.mxu0 0
    %1124 = vmatpush1.bf16.msra.mxu0 0
    %1125 = vmatprep.subr.bf16.mxu0 0
    %1126 = vmatpush1.bf16.msra.mxu0 0
    %1127 = vmatprep.subr.bf16.mxu0 0
    %1128 = vmatpush1.bf16.msra.mxu0 0
    %1129 = vmatprep.subr.bf16.mxu0 0
    %1130 = vmatpush1.bf16.msra.mxu0 0
    %1131 = vmatprep.subr.bf16.mxu0 0
    %1132 = vmatpush1.bf16.msra.mxu0 0
    %1133 = vmatprep.subr.bf16.mxu0 0
    %1134 = vmatpush1.bf16.msra.mxu0 0
    %1135 = vmatprep.subr.bf16.mxu0 0
    %1136 = vmatpush1.bf16.msra.mxu0 0
    %1137 = vmatprep.subr.bf16.mxu0 0
    %1138 = vmatpush1.bf16.msra.mxu0 0
    %1139 = vmatprep.subr.bf16.mxu0 0
    %1140 = vmatpush1.bf16.msra.mxu0 0
    %1141 = vmatprep.subr.bf16.mxu0 0
    %1142 = vmatpush1.bf16.msra.mxu0 0
    %1143 = vmatprep.subr.bf16.mxu0 0
    %1144 = vmatpush1.bf16.msra.mxu0 0
    %1145 = vmatprep.subr.bf16.mxu0 0
    %1146 = vmatpush1.bf16.msra.mxu0 0
    %1147 = vmatprep.subr.bf16.mxu0 0
    %1148 = vmatpush1.bf16.msra.mxu0 0
    %1149 = vmatprep.subr.bf16.mxu0 0
    %1150 = vmatpush1.bf16.msra.mxu0 0
    %1151 = vmatprep.mubr.bf16.mxu0 0
    %1152 = vmatmul.mubr.bf16.gmra.mrb[0].mxu0 %v1117
    %v1153 = vpop.f32.mrb[0].mxu0
    %v1154 = vadd.f32 0.0, %v1153
    %v1155 = vpop.f32.mrb[0].mxu0
    %v1156 = vpop.f32.mrb[0].mxu0
    %v1157 = vpop.f32.mrb[0].mxu0
    %1158 = vdwg.mxu0
    %v1159 = vadd.f32 %v197, %v1154
    %v1160 = vxor.u32 %v1070, 2147483648
    %v1161 = vmul.f32 %v1160, 1.442695
    %v1162 = vpow.pop %v1161
    %v1163 = vadd.f32 %v1162, 1.0
    %v1164 = vrcp.pop %v1163
    %v1165 = vmul.f32 1.0, %v1164
    %v1166 = vtanh.pop %v1070
    %v1168 = vrot.slane %v877, 6
    %v1170 = vmul.f32 %v1165, %v1168
    %1172 = vrot.lane.b32.xlu0 %v1166, 64
    %v1173 = vpop.permute.xlu0 %1172
    %v1175 = vmul.f32 %v1165, %v1173
    %1177 = vrot.lane.b32.xlu0 %v1175, 32
    %v1178 = vpop.permute.xlu0 %1177
    %v1180 = vadd.f32 %v1170, %v1178
    %v1181 = vtanh.pop %v1180
    %1183 = vrot.lane.b32.xlu0 %v1181, 64
    %v1184 = vpop.permute.xlu0 %1183
    %v1186 = vmul.f32 %v1165, %v1184
    %v1187 = vpack.c.bf16 %v1186, %v1186
    %v1189 = vrot.slane %v1187, 3
    %1190 = vrot.lane.b32.xlu0 %v1189, 32
    %v1191 = vpop.permute.xlu0 %1190
    %v1193 = vsel %vm243, %v1191, 0
    %1195 = vmatprep.subr.bf16.mxu0 0
    %1196 = vmatpush1.bf16.msra.mxu0 %v239
    %1197 = vmatprep.subr.bf16.mxu0 0
    %1198 = vmatpush1.bf16.msra.mxu0 %v240
    %1199 = vmatprep.subr.bf16.mxu0 0
    %1200 = vmatpush1.bf16.msra.mxu0 0
    %1201 = vmatprep.subr.bf16.mxu0 0
    %1202 = vmatpush1.bf16.msra.mxu0 0
    %1203 = vmatprep.subr.bf16.mxu0 0
    %1204 = vmatpush1.bf16.msra.mxu0 0
    %1205 = vmatprep.subr.bf16.mxu0 0
    %1206 = vmatpush1.bf16.msra.mxu0 0
    %1207 = vmatprep.subr.bf16.mxu0 0
    %1208 = vmatpush1.bf16.msra.mxu0 0
    %1209 = vmatprep.subr.bf16.mxu0 0
    %1210 = vmatpush1.bf16.msra.mxu0 0
    %1211 = vmatprep.subr.bf16.mxu0 0
    %1212 = vmatpush1.bf16.msra.mxu0 0
    %1213 = vmatprep.subr.bf16.mxu0 0
    %1214 = vmatpush1.bf16.msra.mxu0 0
    %1215 = vmatprep.subr.bf16.mxu0 0
    %1216 = vmatpush1.bf16.msra.mxu0 0
    %1217 = vmatprep.subr.bf16.mxu0 0
    %1218 = vmatpush1.bf16.msra.mxu0 0
    %1219 = vmatprep.subr.bf16.mxu0 0
    %1220 = vmatpush1.bf16.msra.mxu0 0
    %1221 = vmatprep.subr.bf16.mxu0 0
    %1222 = vmatpush1.bf16.msra.mxu0 0
    %1223 = vmatprep.subr.bf16.mxu0 0
    %1224 = vmatpush1.bf16.msra.mxu0 0
    %1225 = vmatprep.subr.bf16.mxu0 0
    %1226 = vmatpush1.bf16.msra.mxu0 0
    %1227 = vmatprep.mubr.bf16.mxu0 0
    %1228 = vmatmul.mubr.bf16.gmra.mrb[0].mxu0 %v1193
    %v1229 = vpop.f32.mrb[0].mxu0
    %v1230 = vadd.f32 %v1111, %v1229
    %v1231 = vpop.f32.mrb[0].mxu0
    %v1232 = vpop.f32.mrb[0].mxu0
    %v1233 = vpop.f32.mrb[0].mxu0
    %1234 = vdwg.mxu0
    %v1235 = vxor.u32 %v1230, 2147483648
    %v1236 = vmul.f32 %v1235, 1.442695
    %v1237 = vpow.pop %v1236
    %v1238 = vadd.f32 %v1237, 1.0
    %v1239 = vrcp.pop %v1238
    %v1240 = vmul.f32 1.0, %v1239
    %v1241 = vtanh.pop %v1230
    %v1242 = vmul.f32 %v1240, %v949
    %1244 = vrot.lane.b32.xlu0 %v1241, 96
    %v1245 = vpop.permute.xlu0 %1244
    %v1247 = vmul.f32 %v1240, %v1245
    %1249 = vrot.lane.b32.xlu0 %v1247, 16
    %v1250 = vpop.permute.xlu0 %1249
    %v1252 = vadd.f32 %v1242, %v1250
    %v1253 = vtanh.pop %v1252
    %1255 = vrot.lane.b32.xlu0 %v1253, 32
    %v1256 = vpop.permute.xlu0 %1255
    %v1258 = vmul.f32 %v1240, %v1256
    %v1259 = vpack.c.bf16 %v1258, %v1258
    %1261 = vrot.lane.b32.xlu0 %v1259, 80
    %v1262 = vpop.permute.xlu0 %1261
    %v1264 = vsel %vm323, %v1262, 0
    %1266 = vmatprep.subr.bf16.mxu0 0
    %1267 = vmatpush1.bf16.msra.mxu0 %v321
    %1268 = vmatprep.subr.bf16.mxu0 0
    %1269 = vmatpush1.bf16.msra.mxu0 0
    %1270 = vmatprep.subr.bf16.mxu0 0
    %1271 = vmatpush1.bf16.msra.mxu0 0
    %1272 = vmatprep.subr.bf16.mxu0 0
    %1273 = vmatpush1.bf16.msra.mxu0 0
    %1274 = vmatprep.subr.bf16.mxu0 0
    %1275 = vmatpush1.bf16.msra.mxu0 0
    %1276 = vmatprep.subr.bf16.mxu0 0
    %1277 = vmatpush1.bf16.msra.mxu0 0
    %1278 = vmatprep.subr.bf16.mxu0 0
    %1279 = vmatpush1.bf16.msra.mxu0 0
    %1280 = vmatprep.subr.bf16.mxu0 0
    %1281 = vmatpush1.bf16.msra.mxu0 0
    %1282 = vmatprep.subr.bf16.mxu0 0
    %1283 = vmatpush1.bf16.msra.mxu0 0
    %1284 = vmatprep.subr.bf16.mxu0 0
    %1285 = vmatpush1.bf16.msra.mxu0 0
    %1286 = vmatprep.subr.bf16.mxu0 0
    %1287 = vmatpush1.bf16.msra.mxu0 0
    %1288 = vmatprep.subr.bf16.mxu0 0
    %1289 = vmatpush1.bf16.msra.mxu0 0
    %1290 = vmatprep.subr.bf16.mxu0 0
    %1291 = vmatpush1.bf16.msra.mxu0 0
    %1292 = vmatprep.subr.bf16.mxu0 0
    %1293 = vmatpush1.bf16.msra.mxu0 0
    %1294 = vmatprep.subr.bf16.mxu0 0
    %1295 = vmatpush1.bf16.msra.mxu0 0
    %1296 = vmatprep.subr.bf16.mxu0 0
    %1297 = vmatpush1.bf16.msra.mxu0 0
    %1298 = vmatprep.mubr.bf16.mxu0 0
    %1299 = vmatmul.mubr.bf16.gmra.mrb[0].mxu0 %v1264
    %v1300 = vpop.f32.mrb[0].mxu0
    %v1301 = vadd.f32 %v1159, %v1300
    %v1302 = vpop.f32.mrb[0].mxu0
    %v1303 = vpop.f32.mrb[0].mxu0
    %v1304 = vpop.f32.mrb[0].mxu0
    %1305 = vdwg.mxu0
    %v1306 = vxor.u32 %v1301, 2147483648
    %v1307 = vmul.f32 %v1306, 1.442695
    %v1308 = vpow.pop %v1307
    %v1309 = vadd.f32 %v1308, 1.0
    %v1310 = vrcp.pop %v1309
    %v1311 = vmul.f32 1.0, %v1310
    %v1312 = vtanh.pop %v1301
    %v1313 = vmul.f32 %v1311, %v1020
    %1315 = vrot.lane.b32.xlu0 %v1312, 112
    %v1316 = vpop.permute.xlu0 %1315
    %v1318 = vmul.f32 %v1311, %v1316
    %1320 = vrot.lane.b32.xlu0 %v1318, 8
    %v1321 = vpop.permute.xlu0 %1320
    %v1323 = vadd.f32 %v1313, %v1321
    %v1324 = vtanh.pop %v1323
    %1326 = vrot.lane.b32.xlu0 %v1324, 16
    %v1327 = vpop.permute.xlu0 %1326
    %v1329 = vmul.f32 %v1311, %v1327
    %1330 = vmatprep.subr.bf16.mxu0 0
    %1331 = vmatpush1.bf16.msra.mxu0 %v403
    %1332 = vmatprep.subr.bf16.mxu0 0
    %1333 = vmatpush1.bf16.msra.mxu0 %v404
    %1334 = vmatprep.subr.bf16.mxu0 0
    %1335 = vmatpush1.bf16.msra.mxu0 0
    %1336 = vmatprep.subr.bf16.mxu0 0
    %1337 = vmatpush1.bf16.msra.mxu0 0
    %1338 = vmatprep.subr.bf16.mxu0 0
    %1339 = vmatpush1.bf16.msra.mxu0 0
    %1340 = vmatprep.subr.bf16.mxu0 0
    %1341 = vmatpush1.bf16.msra.mxu0 0
    %1342 = vmatprep.subr.bf16.mxu0 0
    %1343 = vmatpush1.bf16.msra.mxu0 0
    %1344 = vmatprep.subr.bf16.mxu0 0
    %1345 = vmatpush1.bf16.msra.mxu0 0
    %1346 = vmatprep.subr.bf16.mxu0 0
    %1347 = vmatpush1.bf16.msra.mxu0 0
    %1348 = vmatprep.subr.bf16.mxu0 0
    %1349 = vmatpush1.bf16.msra.mxu0 0
    %1350 = vmatprep.subr.bf16.mxu0 0
    %1351 = vmatpush1.bf16.msra.mxu0 0
    %1352 = vmatprep.subr.bf16.mxu0 0
    %1353 = vmatpush1.bf16.msra.mxu0 0
    %1354 = vmatprep.subr.bf16.mxu0 0
    %1355 = vmatpush1.bf16.msra.mxu0 0
    %1356 = vmatprep.subr.bf16.mxu0 0
    %1357 = vmatpush1.bf16.msra.mxu0 0
    %1358 = vmatprep.subr.bf16.mxu0 0
    %1359 = vmatpush1.bf16.msra.mxu0 0
    %1360 = vmatprep.subr.bf16.mxu0 0
    %1361 = vmatpush1.bf16.msra.mxu0 0
    %1362 = vmatprep.mubr.bf16.mxu0 0
    %1363 = vmatmul.mubr.bf16.gmra.mrb[0].mxu0 %v1193
    %v1364 = vpop.f32.mrb[0].mxu0
    %v1365 = vadd.f32 0.0, %v1364
    %v1366 = vpop.f32.mrb[0].mxu0
    %v1367 = vpop.f32.mrb[0].mxu0
    %v1368 = vpop.f32.mrb[0].mxu0
    %1369 = vdwg.mxu0
    %v1370 = vadd.f32 %v182, %v1365
    %1371 = vmatprep.subr.bf16.mxu0 0
    %1372 = vmatpush1.bf16.msra.mxu0 %v457
    %1373 = vmatprep.subr.bf16.mxu0 0
    %1374 = vmatpush1.bf16.msra.mxu0 0
    %1375 = vmatprep.subr.bf16.mxu0 0
    %1376 = vmatpush1.bf16.msra.mxu0 0
    %1377 = vmatprep.subr.bf16.mxu0 0
    %1378 = vmatpush1.bf16.msra.mxu0 0
    %1379 = vmatprep.subr.bf16.mxu0 0
    %1380 = vmatpush1.bf16.msra.mxu0 0
    %1381 = vmatprep.subr.bf16.mxu0 0
    %1382 = vmatpush1.bf16.msra.mxu0 0
    %1383 = vmatprep.subr.bf16.mxu0 0
    %1384 = vmatpush1.bf16.msra.mxu0 0
    %1385 = vmatprep.subr.bf16.mxu0 0
    %1386 = vmatpush1.bf16.msra.mxu0 0
    %1387 = vmatprep.subr.bf16.mxu0 0
    %1388 = vmatpush1.bf16.msra.mxu0 0
    %1389 = vmatprep.subr.bf16.mxu0 0
    %1390 = vmatpush1.bf16.msra.mxu0 0
    %1391 = vmatprep.subr.bf16.mxu0 0
    %1392 = vmatpush1.bf16.msra.mxu0 0
    %1393 = vmatprep.subr.bf16.mxu0 0
    %1394 = vmatpush1.bf16.msra.mxu0 0
    %1395 = vmatprep.subr.bf16.mxu0 0
    %1396 = vmatpush1.bf16.msra.mxu0 0
    %1397 = vmatprep.subr.bf16.mxu0 0
    %1398 = vmatpush1.bf16.msra.mxu0 0
    %1399 = vmatprep.subr.bf16.mxu0 0
    %1400 = vmatpush1.bf16.msra.mxu0 0
    %1401 = vmatprep.subr.bf16.mxu0 0
    %1402 = vmatpush1.bf16.msra.mxu0 0
    %1403 = vmatprep.mubr.bf16.mxu0 0
    %1404 = vmatmul.mubr.bf16.gmra.mrb[0].mxu0 %v1264
    %v1405 = vpop.f32.mrb[0].mxu0
    %v1406 = vadd.f32 0.0, %v1405
    %v1407 = vpop.f32.mrb[0].mxu0
    %v1408 = vpop.f32.mrb[0].mxu0
    %v1409 = vpop.f32.mrb[0].mxu0
    %1410 = vdwg.mxu0
    %v1411 = vadd.f32 %v190, %v1406
    %v1412 = vpack.c.bf16 %v1329, %v1329
    %1414 = vrot.lane.b32.xlu0 %v1412, 104
    %v1415 = vpop.permute.xlu0 %1414
    %v1417 = vsel %vm505, %v1415, 0
    %1419 = vmatprep.subr.bf16.mxu0 0
    %1420 = vmatpush1.bf16.msra.mxu0 %v511
    %1421 = vmatprep.subr.bf16.mxu0 0
    %1422 = vmatpush1.bf16.msra.mxu0 0
    %1423 = vmatprep.subr.bf16.mxu0 0
    %1424 = vmatpush1.bf16.msra.mxu0 0
    %1425 = vmatprep.subr.bf16.mxu0 0
    %1426 = vmatpush1.bf16.msra.mxu0 0
    %1427 = vmatprep.subr.bf16.mxu0 0
    %1428 = vmatpush1.bf16.msra.mxu0 0
    %1429 = vmatprep.subr.bf16.mxu0 0
    %1430 = vmatpush1.bf16.msra.mxu0 0
    %1431 = vmatprep.subr.bf16.mxu0 0
    %1432 = vmatpush1.bf16.msra.mxu0 0
    %1433 = vmatprep.subr.bf16.mxu0 0
    %1434 = vmatpush1.bf16.msra.mxu0 0
    %1435 = vmatprep.subr.bf16.mxu0 0
    %1436 = vmatpush1.bf16.msra.mxu0 0
    %1437 = vmatprep.subr.bf16.mxu0 0
    %1438 = vmatpush1.bf16.msra.mxu0 0
    %1439 = vmatprep.subr.bf16.mxu0 0
    %1440 = vmatpush1.bf16.msra.mxu0 0
    %1441 = vmatprep.subr.bf16.mxu0 0
    %1442 = vmatpush1.bf16.msra.mxu0 0
    %1443 = vmatprep.subr.bf16.mxu0 0
    %1444 = vmatpush1.bf16.msra.mxu0 0
    %1445 = vmatprep.subr.bf16.mxu0 0
    %1446 = vmatpush1.bf16.msra.mxu0 0
    %1447 = vmatprep.subr.bf16.mxu0 0
    %1448 = vmatpush1.bf16.msra.mxu0 0
    %1449 = vmatprep.subr.bf16.mxu0 0
    %1450 = vmatpush1.bf16.msra.mxu0 0
    %1451 = vmatprep.mubr.bf16.mxu0 0
    %1452 = vmatmul.mubr.bf16.gmra.mrb[0].mxu0 %v1417
    %v1453 = vpop.f32.mrb[0].mxu0
    %v1454 = vadd.f32 0.0, %v1453
    %v1455 = vpop.f32.mrb[0].mxu0
    %v1456 = vpop.f32.mrb[0].mxu0
    %v1457 = vpop.f32.mrb[0].mxu0
    %1458 = vdwg.mxu0
    %v1459 = vadd.f32 %v197, %v1454
    %v1460 = vxor.u32 %v1370, 2147483648
    %v1461 = vmul.f32 %v1460, 1.442695
    %v1462 = vpow.pop %v1461
    %v1463 = vadd.f32 %v1462, 1.0
    %v1464 = vrcp.pop %v1463
    %v1465 = vmul.f32 1.0, %v1464
    %v1466 = vtanh.pop %v1370
    %v1468 = vrot.slane %v1180, 6
    %v1470 = vmul.f32 %v1465, %v1468
    %1472 = vrot.lane.b32.xlu0 %v1466, 64
    %v1473 = vpop.permute.xlu0 %1472
    %v1475 = vmul.f32 %v1465, %v1473
    %1477 = vrot.lane.b32.xlu0 %v1475, 32
    %v1478 = vpop.permute.xlu0 %1477
    %v1480 = vadd.f32 %v1470, %v1478
    %v1481 = vtanh.pop %v1480
    %1483 = vrot.lane.b32.xlu0 %v1481, 64
    %v1484 = vpop.permute.xlu0 %1483
    %v1486 = vmul.f32 %v1465, %v1484
    %v1487 = vpack.c.bf16 %v1486, %v1486
    %1489 = vrot.lane.b32.xlu0 %v1487, 32
    %v1490 = vpop.permute.xlu0 %1489
    %v1492 = vsel %vm243, %v1490, 0
    %1494 = vmatprep.subr.bf16.mxu0 0
    %1495 = vmatpush1.bf16.msra.mxu0 %v239
    %1496 = vmatprep.subr.bf16.mxu0 0
    %1497 = vmatpush1.bf16.msra.mxu0 %v240
    %1498 = vmatprep.subr.bf16.mxu0 0
    %1499 = vmatpush1.bf16.msra.mxu0 0
    %1500 = vmatprep.subr.bf16.mxu0 0
    %1501 = vmatpush1.bf16.msra.mxu0 0
    %1502 = vmatprep.subr.bf16.mxu0 0
    %1503 = vmatpush1.bf16.msra.mxu0 0
    %1504 = vmatprep.subr.bf16.mxu0 0
    %1505 = vmatpush1.bf16.msra.mxu0 0
    %1506 = vmatprep.subr.bf16.mxu0 0
    %1507 = vmatpush1.bf16.msra.mxu0 0
    %1508 = vmatprep.subr.bf16.mxu0 0
    %1509 = vmatpush1.bf16.msra.mxu0 0
    %1510 = vmatprep.subr.bf16.mxu0 0
    %1511 = vmatpush1.bf16.msra.mxu0 0
    %1512 = vmatprep.subr.bf16.mxu0 0
    %1513 = vmatpush1.bf16.msra.mxu0 0
    %1514 = vmatprep.subr.bf16.mxu0 0
    %1515 = vmatpush1.bf16.msra.mxu0 0
    %1516 = vmatprep.subr.bf16.mxu0 0
    %1517 = vmatpush1.bf16.msra.mxu0 0
    %1518 = vmatprep.subr.bf16.mxu0 0
    %1519 = vmatpush1.bf16.msra.mxu0 0
    %1520 = vmatprep.subr.bf16.mxu0 0
    %1521 = vmatpush1.bf16.msra.mxu0 0
    %1522 = vmatprep.subr.bf16.mxu0 0
    %1523 = vmatpush1.bf16.msra.mxu0 0
    %1524 = vmatprep.subr.bf16.mxu0 0
    %1525 = vmatpush1.bf16.msra.mxu0 0
    %1526 = vmatprep.mubr.bf16.mxu0 0
    %1527 = vmatmul.mubr.bf16.gmra.mrb[0].mxu0 %v1492
    %v1528 = vpop.f32.mrb[0].mxu0
    %v1529 = vadd.f32 %v1411, %v1528
    %v1530 = vpop.f32.mrb[0].mxu0
    %v1531 = vpop.f32.mrb[0].mxu0
    %v1532 = vpop.f32.mrb[0].mxu0
    %1533 = vdwg.mxu0
    %v1534 = vxor.u32 %v1529, 2147483648
    %v1535 = vmul.f32 %v1534, 1.442695
    %v1536 = vpow.pop %v1535
    %v1537 = vadd.f32 %v1536, 1.0
    %v1538 = vrcp.pop %v1537
    %v1539 = vmul.f32 1.0, %v1538
    %v1540 = vtanh.pop %v1529
    %v1541 = vmul.f32 %v1539, %v1252
    %1543 = vrot.lane.b32.xlu0 %v1540, 96
    %v1544 = vpop.permute.xlu0 %1543
    %v1546 = vmul.f32 %v1539, %v1544
    %1548 = vrot.lane.b32.xlu0 %v1546, 16
    %v1549 = vpop.permute.xlu0 %1548
    %v1551 = vadd.f32 %v1541, %v1549
    %v1552 = vtanh.pop %v1551
    %1554 = vrot.lane.b32.xlu0 %v1552, 32
    %v1555 = vpop.permute.xlu0 %1554
    %v1557 = vmul.f32 %v1539, %v1555
    %v1558 = vpack.c.bf16 %v1557, %v1557
    %1560 = vrot.lane.b32.xlu0 %v1558, 80
    %v1561 = vpop.permute.xlu0 %1560
    %v1563 = vsel %vm323, %v1561, 0
    %1565 = vmatprep.subr.bf16.mxu0 0
    %1566 = vmatpush1.bf16.msra.mxu0 %v321
    %1567 = vmatprep.subr.bf16.mxu0 0
    %1568 = vmatpush1.bf16.msra.mxu0 0
    %1569 = vmatprep.subr.bf16.mxu0 0
    %1570 = vmatpush1.bf16.msra.mxu0 0
    %1571 = vmatprep.subr.bf16.mxu0 0
    %1572 = vmatpush1.bf16.msra.mxu0 0
    %1573 = vmatprep.subr.bf16.mxu0 0
    %1574 = vmatpush1.bf16.msra.mxu0 0
    %1575 = vmatprep.subr.bf16.mxu0 0
    %1576 = vmatpush1.bf16.msra.mxu0 0
    %1577 = vmatprep.subr.bf16.mxu0 0
    %1578 = vmatpush1.bf16.msra.mxu0 0
    %1579 = vmatprep.subr.bf16.mxu0 0
    %1580 = vmatpush1.bf16.msra.mxu0 0
    %1581 = vmatprep.subr.bf16.mxu0 0
    %1582 = vmatpush1.bf16.msra.mxu0 0
    %1583 = vmatprep.subr.bf16.mxu0 0
    %1584 = vmatpush1.bf16.msra.mxu0 0
    %1585 = vmatprep.subr.bf16.mxu0 0
    %1586 = vmatpush1.bf16.msra.mxu0 0
    %1587 = vmatprep.subr.bf16.mxu0 0
    %1588 = vmatpush1.bf16.msra.mxu0 0
    %1589 = vmatprep.subr.bf16.mxu0 0
    %1590 = vmatpush1.bf16.msra.mxu0 0
    %1591 = vmatprep.subr.bf16.mxu0 0
    %1592 = vmatpush1.bf16.msra.mxu0 0
    %1593 = vmatprep.subr.bf16.mxu0 0
    %1594 = vmatpush1.bf16.msra.mxu0 0
    %1595 = vmatprep.subr.bf16.mxu0 0
    %1596 = vmatpush1.bf16.msra.mxu0 0
    %1597 = vmatprep.mubr.bf16.mxu0 0
    %1598 = vmatmul.mubr.bf16.gmra.mrb[0].mxu0 %v1563
    %v1599 = vpop.f32.mrb[0].mxu0
    %v1600 = vadd.f32 %v1459, %v1599
    %v1601 = vpop.f32.mrb[0].mxu0
    %v1602 = vpop.f32.mrb[0].mxu0
    %v1603 = vpop.f32.mrb[0].mxu0
    %1604 = vdwg.mxu0
    %v1605 = vxor.u32 %v1600, 2147483648
    %v1606 = vmul.f32 %v1605, 1.442695
    %v1607 = vpow.pop %v1606
    %v1608 = vadd.f32 %v1607, 1.0
    %v1609 = vrcp.pop %v1608
    %v1610 = vmul.f32 1.0, %v1609
    %v1611 = vtanh.pop %v1600
    %v1612 = vmul.f32 %v1610, %v1323
    %1614 = vrot.lane.b32.xlu0 %v1611, 112
    %v1615 = vpop.permute.xlu0 %1614
    %v1617 = vmul.f32 %v1610, %v1615
    %1619 = vrot.lane.b32.xlu0 %v1617, 8
    %v1620 = vpop.permute.xlu0 %1619
    %v1622 = vadd.f32 %v1612, %v1620
    %v1623 = vtanh.pop %v1622
    %1625 = vrot.lane.b32.xlu0 %v1623, 16
    %v1626 = vpop.permute.xlu0 %1625
    %v1628 = vmul.f32 %v1610, %v1626
    %1629 = vmatprep.subr.bf16.mxu0 0
    %1630 = vmatpush1.bf16.msra.mxu0 %v403
    %1631 = vmatprep.subr.bf16.mxu0 0
    %1632 = vmatpush1.bf16.msra.mxu0 %v404
    %1633 = vmatprep.subr.bf16.mxu0 0
    %1634 = vmatpush1.bf16.msra.mxu0 0
    %1635 = vmatprep.subr.bf16.mxu0 0
    %1636 = vmatpush1.bf16.msra.mxu0 0
    %1637 = vmatprep.subr.bf16.mxu0 0
    %1638 = vmatpush1.bf16.msra.mxu0 0
    %1639 = vmatprep.subr.bf16.mxu0 0
    %1640 = vmatpush1.bf16.msra.mxu0 0
    %1641 = vmatprep.subr.bf16.mxu0 0
    %1642 = vmatpush1.bf16.msra.mxu0 0
    %1643 = vmatprep.subr.bf16.mxu0 0
    %1644 = vmatpush1.bf16.msra.mxu0 0
    %1645 = vmatprep.subr.bf16.mxu0 0
    %1646 = vmatpush1.bf16.msra.mxu0 0
    %1647 = vmatprep.subr.bf16.mxu0 0
    %1648 = vmatpush1.bf16.msra.mxu0 0
    %1649 = vmatprep.subr.bf16.mxu0 0
    %1650 = vmatpush1.bf16.msra.mxu0 0
    %1651 = vmatprep.subr.bf16.mxu0 0
    %1652 = vmatpush1.bf16.msra.mxu0 0
    %1653 = vmatprep.subr.bf16.mxu0 0
    %1654 = vmatpush1.bf16.msra.mxu0 0
    %1655 = vmatprep.subr.bf16.mxu0 0
    %1656 = vmatpush1.bf16.msra.mxu0 0
    %1657 = vmatprep.subr.bf16.mxu0 0
    %1658 = vmatpush1.bf16.msra.mxu0 0
    %1659 = vmatprep.subr.bf16.mxu0 0
    %1660 = vmatpush1.bf16.msra.mxu0 0
    %1661 = vmatprep.mubr.bf16.mxu0 0
    %1662 = vmatmul.mubr.bf16.gmra.mrb[0].mxu0 %v1492
    %v1663 = vpop.f32.mrb[0].mxu0
    %v1664 = vadd.f32 0.0, %v1663
    %v1665 = vpop.f32.mrb[0].mxu0
    %v1666 = vpop.f32.mrb[0].mxu0
    %v1667 = vpop.f32.mrb[0].mxu0
    %1668 = vdwg.mxu0
    %v1670 = vrot.slane %v1664, 6
    %v1672 = vadd.f32 %v182, %v1670
    %1673 = vmatprep.subr.bf16.mxu0 0
    %1674 = vmatpush1.bf16.msra.mxu0 %v457
    %1675 = vmatprep.subr.bf16.mxu0 0
    %1676 = vmatpush1.bf16.msra.mxu0 0
    %1677 = vmatprep.subr.bf16.mxu0 0
    %1678 = vmatpush1.bf16.msra.mxu0 0
    %1679 = vmatprep.subr.bf16.mxu0 0
    %1680 = vmatpush1.bf16.msra.mxu0 0
    %1681 = vmatprep.subr.bf16.mxu0 0
    %1682 = vmatpush1.bf16.msra.mxu0 0
    %1683 = vmatprep.subr.bf16.mxu0 0
    %1684 = vmatpush1.bf16.msra.mxu0 0
    %1685 = vmatprep.subr.bf16.mxu0 0
    %1686 = vmatpush1.bf16.msra.mxu0 0
    %1687 = vmatprep.subr.bf16.mxu0 0
    %1688 = vmatpush1.bf16.msra.mxu0 0
    %1689 = vmatprep.subr.bf16.mxu0 0
    %1690 = vmatpush1.bf16.msra.mxu0 0
    %1691 = vmatprep.subr.bf16.mxu0 0
    %1692 = vmatpush1.bf16.msra.mxu0 0
    %1693 = vmatprep.subr.bf16.mxu0 0
    %1694 = vmatpush1.bf16.msra.mxu0 0
    %1695 = vmatprep.subr.bf16.mxu0 0
    %1696 = vmatpush1.bf16.msra.mxu0 0
    %1697 = vmatprep.subr.bf16.mxu0 0
    %1698 = vmatpush1.bf16.msra.mxu0 0
    %1699 = vmatprep.subr.bf16.mxu0 0
    %1700 = vmatpush1.bf16.msra.mxu0 0
    %1701 = vmatprep.subr.bf16.mxu0 0
    %1702 = vmatpush1.bf16.msra.mxu0 0
    %1703 = vmatprep.subr.bf16.mxu0 0
    %1704 = vmatpush1.bf16.msra.mxu0 0
    %1705 = vmatprep.mubr.bf16.mxu0 0
    %1706 = vmatmul.mubr.bf16.gmra.mrb[0].mxu0 %v1563
    %v1707 = vpop.f32.mrb[0].mxu0
    %v1708 = vadd.f32 0.0, %v1707
    %v1709 = vpop.f32.mrb[0].mxu0
    %v1710 = vpop.f32.mrb[0].mxu0
    %v1711 = vpop.f32.mrb[0].mxu0
    %1712 = vdwg.mxu0
    %v1713 = vadd.f32 %v190, %v1708
    %v1714 = vpack.c.bf16 %v1628, %v1628
    %1716 = vrot.lane.b32.xlu0 %v1714, 104
    %v1717 = vpop.permute.xlu0 %1716
    %v1719 = vsel %vm505, %v1717, 0
    %1721 = vmatprep.subr.bf16.mxu0 0
    %1722 = vmatpush1.bf16.msra.mxu0 %v511
    %1723 = vmatprep.subr.bf16.mxu0 0
    %1724 = vmatpush1.bf16.msra.mxu0 0
    %1725 = vmatprep.subr.bf16.mxu0 0
    %1726 = vmatpush1.bf16.msra.mxu0 0
    %1727 = vmatprep.subr.bf16.mxu0 0
    %1728 = vmatpush1.bf16.msra.mxu0 0
    %1729 = vmatprep.subr.bf16.mxu0 0
    %1730 = vmatpush1.bf16.msra.mxu0 0
    %1731 = vmatprep.subr.bf16.mxu0 0
    %1732 = vmatpush1.bf16.msra.mxu0 0
    %1733 = vmatprep.subr.bf16.mxu0 0
    %1734 = vmatpush1.bf16.msra.mxu0 0
    %1735 = vmatprep.subr.bf16.mxu0 0
    %1736 = vmatpush1.bf16.msra.mxu0 0
    %1737 = vmatprep.subr.bf16.mxu0 0
    %1738 = vmatpush1.bf16.msra.mxu0 0
    %1739 = vmatprep.subr.bf16.mxu0 0
    %1740 = vmatpush1.bf16.msra.mxu0 0
    %1741 = vmatprep.subr.bf16.mxu0 0
    %1742 = vmatpush1.bf16.msra.mxu0 0
    %1743 = vmatprep.subr.bf16.mxu0 0
    %1744 = vmatpush1.bf16.msra.mxu0 0
    %1745 = vmatprep.subr.bf16.mxu0 0
    %1746 = vmatpush1.bf16.msra.mxu0 0
    %1747 = vmatprep.subr.bf16.mxu0 0
    %1748 = vmatpush1.bf16.msra.mxu0 0
    %1749 = vmatprep.subr.bf16.mxu0 0
    %1750 = vmatpush1.bf16.msra.mxu0 0
    %1751 = vmatprep.subr.bf16.mxu0 0
    %1752 = vmatpush1.bf16.msra.mxu0 0
    %1753 = vmatprep.mubr.bf16.mxu0 0
    %1754 = vmatmul.mubr.bf16.gmra.mrb[0].mxu0 %v1719
    %v1755 = vpop.f32.mrb[0].mxu0
    %v1756 = vadd.f32 0.0, %v1755
    %v1757 = vpop.f32.mrb[0].mxu0
    %v1758 = vpop.f32.mrb[0].mxu0
    %v1759 = vpop.f32.mrb[0].mxu0
    %1760 = vdwg.mxu0
    %v1761 = vadd.f32 %v197, %v1756
    %v1762 = vxor.u32 %v1672, 2147483648
    %v1763 = vmul.f32 %v1762, 1.442695
    %v1764 = vpow.pop %v1763
    %v1765 = vadd.f32 %v1764, 1.0
    %v1766 = vrcp.pop %v1765
    %v1767 = vmul.f32 1.0, %v1766
    %v1768 = vtanh.pop %v1672
    %v1770 = vrot.slane %v1480, 6
    %v1772 = vmul.f32 %v1767, %v1770
    %1774 = vrot.lane.b32.xlu0 %v1768, 64
    %v1775 = vpop.permute.xlu0 %1774
    %v1777 = vmul.f32 %v1767, %v1775
    %1779 = vrot.lane.b32.xlu0 %v1777, 32
    %v1780 = vpop.permute.xlu0 %1779
    %v1782 = vadd.f32 %v1772, %v1780
    %v1783 = vtanh.pop %v1782
    %1785 = vrot.lane.b32.xlu0 %v1783, 64
    %v1786 = vpop.permute.xlu0 %1785
    %v1788 = vmul.f32 %v1767, %v1786
    %v1789 = vpack.c.bf16 %v1788, %v1788
    %v1791 = vrot.slane %v1789, 1
    %1792 = vrot.lane.b32.xlu0 %v1791, 32
    %v1793 = vpop.permute.xlu0 %1792
    %v1795 = vsel %vm243, %v1793, 0
    %1797 = vmatprep.subr.bf16.mxu0 0
    %1798 = vmatpush1.bf16.msra.mxu0 %v239
    %1799 = vmatprep.subr.bf16.mxu0 0
    %1800 = vmatpush1.bf16.msra.mxu0 %v240
    %1801 = vmatprep.subr.bf16.mxu0 0
    %1802 = vmatpush1.bf16.msra.mxu0 0
    %1803 = vmatprep.subr.bf16.mxu0 0
    %1804 = vmatpush1.bf16.msra.mxu0 0
    %1805 = vmatprep.subr.bf16.mxu0 0
    %1806 = vmatpush1.bf16.msra.mxu0 0
    %1807 = vmatprep.subr.bf16.mxu0 0
    %1808 = vmatpush1.bf16.msra.mxu0 0
    %1809 = vmatprep.subr.bf16.mxu0 0
    %1810 = vmatpush1.bf16.msra.mxu0 0
    %1811 = vmatprep.subr.bf16.mxu0 0
    %1812 = vmatpush1.bf16.msra.mxu0 0
    %1813 = vmatprep.subr.bf16.mxu0 0
    %1814 = vmatpush1.bf16.msra.mxu0 0
    %1815 = vmatprep.subr.bf16.mxu0 0
    %1816 = vmatpush1.bf16.msra.mxu0 0
    %1817 = vmatprep.subr.bf16.mxu0 0
    %1818 = vmatpush1.bf16.msra.mxu0 0
    %1819 = vmatprep.subr.bf16.mxu0 0
    %1820 = vmatpush1.bf16.msra.mxu0 0
    %1821 = vmatprep.subr.bf16.mxu0 0
    %1822 = vmatpush1.bf16.msra.mxu0 0
    %1823 = vmatprep.subr.bf16.mxu0 0
    %1824 = vmatpush1.bf16.msra.mxu0 0
    %1825 = vmatprep.subr.bf16.mxu0 0
    %1826 = vmatpush1.bf16.msra.mxu0 0
    %1827 = vmatprep.subr.bf16.mxu0 0
    %1828 = vmatpush1.bf16.msra.mxu0 0
    %1829 = vmatprep.mubr.bf16.mxu0 0
    %1830 = vmatmul.mubr.bf16.gmra.mrb[0].mxu0 %v1795
    %v1831 = vpop.f32.mrb[0].mxu0
    %v1832 = vadd.f32 %v1713, %v1831
    %v1833 = vpop.f32.mrb[0].mxu0
    %v1834 = vpop.f32.mrb[0].mxu0
    %v1835 = vpop.f32.mrb[0].mxu0
    %1836 = vdwg.mxu0
    %v1837 = vxor.u32 %v1832, 2147483648
    %v1838 = vmul.f32 %v1837, 1.442695
    %v1839 = vpow.pop %v1838
    %v1840 = vadd.f32 %v1839, 1.0
    %v1841 = vrcp.pop %v1840
    %v1842 = vmul.f32 1.0, %v1841
    %v1843 = vtanh.pop %v1832
    %v1844 = vmul.f32 %v1842, %v1551
    %1846 = vrot.lane.b32.xlu0 %v1843, 96
    %v1847 = vpop.permute.xlu0 %1846
    %v1849 = vmul.f32 %v1842, %v1847
    %1851 = vrot.lane.b32.xlu0 %v1849, 16
    %v1852 = vpop.permute.xlu0 %1851
    %v1854 = vadd.f32 %v1844, %v1852
    %v1855 = vtanh.pop %v1854
    %1857 = vrot.lane.b32.xlu0 %v1855, 32
    %v1858 = vpop.permute.xlu0 %1857
    %v1860 = vmul.f32 %v1842, %v1858
    %v1861 = vpack.c.bf16 %v1860, %v1860
    %1863 = vrot.lane.b32.xlu0 %v1861, 80
    %v1864 = vpop.permute.xlu0 %1863
    %v1866 = vsel %vm323, %v1864, 0
    %1868 = vmatprep.subr.bf16.mxu0 0
    %1869 = vmatpush1.bf16.msra.mxu0 %v321
    %1870 = vmatprep.subr.bf16.mxu0 0
    %1871 = vmatpush1.bf16.msra.mxu0 0
    %1872 = vmatprep.subr.bf16.mxu0 0
    %1873 = vmatpush1.bf16.msra.mxu0 0
    %1874 = vmatprep.subr.bf16.mxu0 0
    %1875 = vmatpush1.bf16.msra.mxu0 0
    %1876 = vmatprep.subr.bf16.mxu0 0
    %1877 = vmatpush1.bf16.msra.mxu0 0
    %1878 = vmatprep.subr.bf16.mxu0 0
    %1879 = vmatpush1.bf16.msra.mxu0 0
    %1880 = vmatprep.subr.bf16.mxu0 0
    %1881 = vmatpush1.bf16.msra.mxu0 0
    %1882 = vmatprep.subr.bf16.mxu0 0
    %1883 = vmatpush1.bf16.msra.mxu0 0
    %1884 = vmatprep.subr.bf16.mxu0 0
    %1885 = vmatpush1.bf16.msra.mxu0 0
    %1886 = vmatprep.subr.bf16.mxu0 0
    %1887 = vmatpush1.bf16.msra.mxu0 0
    %1888 = vmatprep.subr.bf16.mxu0 0
    %1889 = vmatpush1.bf16.msra.mxu0 0
    %1890 = vmatprep.subr.bf16.mxu0 0
    %1891 = vmatpush1.bf16.msra.mxu0 0
    %1892 = vmatprep.subr.bf16.mxu0 0
    %1893 = vmatpush1.bf16.msra.mxu0 0
    %1894 = vmatprep.subr.bf16.mxu0 0
    %1895 = vmatpush1.bf16.msra.mxu0 0
    %1896 = vmatprep.subr.bf16.mxu0 0
    %1897 = vmatpush1.bf16.msra.mxu0 0
    %1898 = vmatprep.subr.bf16.mxu0 0
    %1899 = vmatpush1.bf16.msra.mxu0 0
    %1900 = vmatprep.mubr.bf16.mxu0 0
    %1901 = vmatmul.mubr.bf16.gmra.mrb[0].mxu0 %v1866
    %v1902 = vpop.f32.mrb[0].mxu0
    %v1903 = vadd.f32 %v1761, %v1902
    %v1904 = vpop.f32.mrb[0].mxu0
    %v1905 = vpop.f32.mrb[0].mxu0
    %v1906 = vpop.f32.mrb[0].mxu0
    %1907 = vdwg.mxu0
    %v1908 = vxor.u32 %v1903, 2147483648
    %v1909 = vmul.f32 %v1908, 1.442695
    %v1910 = vpow.pop %v1909
    %v1911 = vadd.f32 %v1910, 1.0
    %v1912 = vrcp.pop %v1911
    %v1913 = vmul.f32 1.0, %v1912
    %v1914 = vtanh.pop %v1903
    %v1915 = vmul.f32 %v1913, %v1622
    %1917 = vrot.lane.b32.xlu0 %v1914, 112
    %v1918 = vpop.permute.xlu0 %1917
    %v1920 = vmul.f32 %v1913, %v1918
    %1922 = vrot.lane.b32.xlu0 %v1920, 8
    %v1923 = vpop.permute.xlu0 %1922
    %v1925 = vadd.f32 %v1915, %v1923
    %v1926 = vtanh.pop %v1925
    %1928 = vrot.lane.b32.xlu0 %v1926, 16
    %v1929 = vpop.permute.xlu0 %1928
    %v1931 = vmul.f32 %v1913, %v1929
    %1932 = vmatprep.subr.bf16.mxu0 0
    %1933 = vmatpush1.bf16.msra.mxu0 %v403
    %1934 = vmatprep.subr.bf16.mxu0 0
    %1935 = vmatpush1.bf16.msra.mxu0 %v404
    %1936 = vmatprep.subr.bf16.mxu0 0
    %1937 = vmatpush1.bf16.msra.mxu0 0
    %1938 = vmatprep.subr.bf16.mxu0 0
    %1939 = vmatpush1.bf16.msra.mxu0 0
    %1940 = vmatprep.subr.bf16.mxu0 0
    %1941 = vmatpush1.bf16.msra.mxu0 0
    %1942 = vmatprep.subr.bf16.mxu0 0
    %1943 = vmatpush1.bf16.msra.mxu0 0
    %1944 = vmatprep.subr.bf16.mxu0 0
    %1945 = vmatpush1.bf16.msra.mxu0 0
    %1946 = vmatprep.subr.bf16.mxu0 0
    %1947 = vmatpush1.bf16.msra.mxu0 0
    %1948 = vmatprep.subr.bf16.mxu0 0
    %1949 = vmatpush1.bf16.msra.mxu0 0
    %1950 = vmatprep.subr.bf16.mxu0 0
    %1951 = vmatpush1.bf16.msra.mxu0 0
    %1952 = vmatprep.subr.bf16.mxu0 0
    %1953 = vmatpush1.bf16.msra.mxu0 0
    %1954 = vmatprep.subr.bf16.mxu0 0
    %1955 = vmatpush1.bf16.msra.mxu0 0
    %1956 = vmatprep.subr.bf16.mxu0 0
    %1957 = vmatpush1.bf16.msra.mxu0 0
    %1958 = vmatprep.subr.bf16.mxu0 0
    %1959 = vmatpush1.bf16.msra.mxu0 0
    %1960 = vmatprep.subr.bf16.mxu0 0
    %1961 = vmatpush1.bf16.msra.mxu0 0
    %1962 = vmatprep.subr.bf16.mxu0 0
    %1963 = vmatpush1.bf16.msra.mxu0 0
    %1964 = vmatprep.mubr.bf16.mxu0 0
    %1965 = vmatmul.mubr.bf16.gmra.mrb[0].mxu0 %v1795
    %v1966 = vpop.f32.mrb[0].mxu0
    %v1967 = vadd.f32 0.0, %v1966
    %v1968 = vpop.f32.mrb[0].mxu0
    %v1969 = vpop.f32.mrb[0].mxu0
    %v1970 = vpop.f32.mrb[0].mxu0
    %1971 = vdwg.mxu0
    %v1973 = vrot.slane %v1967, 4
    %v1975 = vadd.f32 %v182, %v1973
    %1976 = vmatprep.subr.bf16.mxu0 0
    %1977 = vmatpush1.bf16.msra.mxu0 %v457
    %1978 = vmatprep.subr.bf16.mxu0 0
    %1979 = vmatpush1.bf16.msra.mxu0 0
    %1980 = vmatprep.subr.bf16.mxu0 0
    %1981 = vmatpush1.bf16.msra.mxu0 0
    %1982 = vmatprep.subr.bf16.mxu0 0
    %1983 = vmatpush1.bf16.msra.mxu0 0
    %1984 = vmatprep.subr.bf16.mxu0 0
    %1985 = vmatpush1.bf16.msra.mxu0 0
    %1986 = vmatprep.subr.bf16.mxu0 0
    %1987 = vmatpush1.bf16.msra.mxu0 0
    %1988 = vmatprep.subr.bf16.mxu0 0
    %1989 = vmatpush1.bf16.msra.mxu0 0
    %1990 = vmatprep.subr.bf16.mxu0 0
    %1991 = vmatpush1.bf16.msra.mxu0 0
    %1992 = vmatprep.subr.bf16.mxu0 0
    %1993 = vmatpush1.bf16.msra.mxu0 0
    %1994 = vmatprep.subr.bf16.mxu0 0
    %1995 = vmatpush1.bf16.msra.mxu0 0
    %1996 = vmatprep.subr.bf16.mxu0 0
    %1997 = vmatpush1.bf16.msra.mxu0 0
    %1998 = vmatprep.subr.bf16.mxu0 0
    %1999 = vmatpush1.bf16.msra.mxu0 0
    %2000 = vmatprep.subr.bf16.mxu0 0
    %2001 = vmatpush1.bf16.msra.mxu0 0
    %2002 = vmatprep.subr.bf16.mxu0 0
    %2003 = vmatpush1.bf16.msra.mxu0 0
    %2004 = vmatprep.subr.bf16.mxu0 0
    %2005 = vmatpush1.bf16.msra.mxu0 0
    %2006 = vmatprep.subr.bf16.mxu0 0
    %2007 = vmatpush1.bf16.msra.mxu0 0
    %2008 = vmatprep.mubr.bf16.mxu0 0
    %2009 = vmatmul.mubr.bf16.gmra.mrb[0].mxu0 %v1866
    %v2010 = vpop.f32.mrb[0].mxu0
    %v2011 = vadd.f32 0.0, %v2010
    %v2012 = vpop.f32.mrb[0].mxu0
    %v2013 = vpop.f32.mrb[0].mxu0
    %v2014 = vpop.f32.mrb[0].mxu0
    %2015 = vdwg.mxu0
    %v2016 = vadd.f32 %v190, %v2011
    %v2017 = vpack.c.bf16 %v1931, %v1931
    %2019 = vrot.lane.b32.xlu0 %v2017, 104
    %v2020 = vpop.permute.xlu0 %2019
    %v2022 = vsel %vm505, %v2020, 0
    %2024 = vmatprep.subr.bf16.mxu0 0
    %2025 = vmatpush1.bf16.msra.mxu0 %v511
    %2026 = vmatprep.subr.bf16.mxu0 0
    %2027 = vmatpush1.bf16.msra.mxu0 0
    %2028 = vmatprep.subr.bf16.mxu0 0
    %2029 = vmatpush1.bf16.msra.mxu0 0
    %2030 = vmatprep.subr.bf16.mxu0 0
    %2031 = vmatpush1.bf16.msra.mxu0 0
    %2032 = vmatprep.subr.bf16.mxu0 0
    %2033 = vmatpush1.bf16.msra.mxu0 0
    %2034 = vmatprep.subr.bf16.mxu0 0
    %2035 = vmatpush1.bf16.msra.mxu0 0
    %2036 = vmatprep.subr.bf16.mxu0 0
    %2037 = vmatpush1.bf16.msra.mxu0 0
    %2038 = vmatprep.subr.bf16.mxu0 0
    %2039 = vmatpush1.bf16.msra.mxu0 0
    %2040 = vmatprep.subr.bf16.mxu0 0
    %2041 = vmatpush1.bf16.msra.mxu0 0
    %2042 = vmatprep.subr.bf16.mxu0 0
    %2043 = vmatpush1.bf16.msra.mxu0 0
    %2044 = vmatprep.subr.bf16.mxu0 0
    %2045 = vmatpush1.bf16.msra.mxu0 0
    %2046 = vmatprep.subr.bf16.mxu0 0
    %2047 = vmatpush1.bf16.msra.mxu0 0
    %2048 = vmatprep.subr.bf16.mxu0 0
    %2049 = vmatpush1.bf16.msra.mxu0 0
    %2050 = vmatprep.subr.bf16.mxu0 0
    %2051 = vmatpush1.bf16.msra.mxu0 0
    %2052 = vmatprep.subr.bf16.mxu0 0
    %2053 = vmatpush1.bf16.msra.mxu0 0
    %2054 = vmatprep.subr.bf16.mxu0 0
    %2055 = vmatpush1.bf16.msra.mxu0 0
    %2056 = vmatprep.mubr.bf16.mxu0 0
    %2057 = vmatmul.mubr.bf16.gmra.mrb[0].mxu0 %v2022
    %v2058 = vpop.f32.mrb[0].mxu0
    %v2059 = vadd.f32 0.0, %v2058
    %v2060 = vpop.f32.mrb[0].mxu0
    %v2061 = vpop.f32.mrb[0].mxu0
    %v2062 = vpop.f32.mrb[0].mxu0
    %2063 = vdwg.mxu0
    %v2064 = vadd.f32 %v197, %v2059
    %v2065 = vxor.u32 %v1975, 2147483648
    %v2066 = vmul.f32 %v2065, 1.442695
    %v2067 = vpow.pop %v2066
    %v2068 = vadd.f32 %v2067, 1.0
    %v2069 = vrcp.pop %v2068
    %v2070 = vmul.f32 1.0, %v2069
    %v2071 = vtanh.pop %v1975
    %v2073 = vrot.slane %v1782, 6
    %v2075 = vmul.f32 %v2070, %v2073
    %2077 = vrot.lane.b32.xlu0 %v2071, 64
    %v2078 = vpop.permute.xlu0 %2077
    %v2080 = vmul.f32 %v2070, %v2078
    %2082 = vrot.lane.b32.xlu0 %v2080, 32
    %v2083 = vpop.permute.xlu0 %2082
    %v2085 = vadd.f32 %v2075, %v2083
    %v2086 = vtanh.pop %v2085
    %2088 = vrot.lane.b32.xlu0 %v2086, 64
    %v2089 = vpop.permute.xlu0 %2088
    %v2091 = vmul.f32 %v2070, %v2089
    %v2092 = vpack.c.bf16 %v2091, %v2091
    %v2094 = vrot.slane %v2092, 2
    %2095 = vrot.lane.b32.xlu0 %v2094, 32
    %v2096 = vpop.permute.xlu0 %2095
    %v2098 = vsel %vm243, %v2096, 0
    %2100 = vmatprep.subr.bf16.mxu0 0
    %2101 = vmatpush1.bf16.msra.mxu0 %v239
    %2102 = vmatprep.subr.bf16.mxu0 0
    %2103 = vmatpush1.bf16.msra.mxu0 %v240
    %2104 = vmatprep.subr.bf16.mxu0 0
    %2105 = vmatpush1.bf16.msra.mxu0 0
    %2106 = vmatprep.subr.bf16.mxu0 0
    %2107 = vmatpush1.bf16.msra.mxu0 0
    %2108 = vmatprep.subr.bf16.mxu0 0
    %2109 = vmatpush1.bf16.msra.mxu0 0
    %2110 = vmatprep.subr.bf16.mxu0 0
    %2111 = vmatpush1.bf16.msra.mxu0 0
    %2112 = vmatprep.subr.bf16.mxu0 0
    %2113 = vmatpush1.bf16.msra.mxu0 0
    %2114 = vmatprep.subr.bf16.mxu0 0
    %2115 = vmatpush1.bf16.msra.mxu0 0
    %2116 = vmatprep.subr.bf16.mxu0 0
    %2117 = vmatpush1.bf16.msra.mxu0 0
    %2118 = vmatprep.subr.bf16.mxu0 0
    %2119 = vmatpush1.bf16.msra.mxu0 0
    %2120 = vmatprep.subr.bf16.mxu0 0
    %2121 = vmatpush1.bf16.msra.mxu0 0
    %2122 = vmatprep.subr.bf16.mxu0 0
    %2123 = vmatpush1.bf16.msra.mxu0 0
    %2124 = vmatprep.subr.bf16.mxu0 0
    %2125 = vmatpush1.bf16.msra.mxu0 0
    %2126 = vmatprep.subr.bf16.mxu0 0
    %2127 = vmatpush1.bf16.msra.mxu0 0
    %2128 = vmatprep.subr.bf16.mxu0 0
    %2129 = vmatpush1.bf16.msra.mxu0 0
    %2130 = vmatprep.subr.bf16.mxu0 0
    %2131 = vmatpush1.bf16.msra.mxu0 0
    %2132 = vmatprep.mubr.bf16.mxu0 0
    %2133 = vmatmul.mubr.bf16.gmra.mrb[0].mxu0 %v2098
    %v2134 = vpop.f32.mrb[0].mxu0
    %v2135 = vadd.f32 %v2016, %v2134
    %v2136 = vpop.f32.mrb[0].mxu0
    %v2137 = vpop.f32.mrb[0].mxu0
    %v2138 = vpop.f32.mrb[0].mxu0
    %2139 = vdwg.mxu0
    %v2140 = vxor.u32 %v2135, 2147483648
    %v2141 = vmul.f32 %v2140, 1.442695
    %v2142 = vpow.pop %v2141
    %v2143 = vadd.f32 %v2142, 1.0
    %v2144 = vrcp.pop %v2143
    %v2145 = vmul.f32 1.0, %v2144
    %v2146 = vtanh.pop %v2135
    %v2147 = vmul.f32 %v2145, %v1854
    %2149 = vrot.lane.b32.xlu0 %v2146, 96
    %v2150 = vpop.permute.xlu0 %2149
    %v2152 = vmul.f32 %v2145, %v2150
    %2154 = vrot.lane.b32.xlu0 %v2152, 16
    %v2155 = vpop.permute.xlu0 %2154
    %v2157 = vadd.f32 %v2147, %v2155
    %v2158 = vtanh.pop %v2157
    %2160 = vrot.lane.b32.xlu0 %v2158, 32
    %v2161 = vpop.permute.xlu0 %2160
    %v2163 = vmul.f32 %v2145, %v2161
    %v2164 = vpack.c.bf16 %v2163, %v2163
    %2166 = vrot.lane.b32.xlu0 %v2164, 80
    %v2167 = vpop.permute.xlu0 %2166
    %v2169 = vsel %vm323, %v2167, 0
    %2171 = vmatprep.subr.bf16.mxu0 0
    %2172 = vmatpush1.bf16.msra.mxu0 %v321
    %2173 = vmatprep.subr.bf16.mxu0 0
    %2174 = vmatpush1.bf16.msra.mxu0 0
    %2175 = vmatprep.subr.bf16.mxu0 0
    %2176 = vmatpush1.bf16.msra.mxu0 0
    %2177 = vmatprep.subr.bf16.mxu0 0
    %2178 = vmatpush1.bf16.msra.mxu0 0
    %2179 = vmatprep.subr.bf16.mxu0 0
    %2180 = vmatpush1.bf16.msra.mxu0 0
    %2181 = vmatprep.subr.bf16.mxu0 0
    %2182 = vmatpush1.bf16.msra.mxu0 0
    %2183 = vmatprep.subr.bf16.mxu0 0
    %2184 = vmatpush1.bf16.msra.mxu0 0
    %2185 = vmatprep.subr.bf16.mxu0 0
    %2186 = vmatpush1.bf16.msra.mxu0 0
    %2187 = vmatprep.subr.bf16.mxu0 0
    %2188 = vmatpush1.bf16.msra.mxu0 0
    %2189 = vmatprep.subr.bf16.mxu0 0
    %2190 = vmatpush1.bf16.msra.mxu0 0
    %2191 = vmatprep.subr.bf16.mxu0 0
    %2192 = vmatpush1.bf16.msra.mxu0 0
    %2193 = vmatprep.subr.bf16.mxu0 0
    %2194 = vmatpush1.bf16.msra.mxu0 0
    %2195 = vmatprep.subr.bf16.mxu0 0
    %2196 = vmatpush1.bf16.msra.mxu0 0
    %2197 = vmatprep.subr.bf16.mxu0 0
    %2198 = vmatpush1.bf16.msra.mxu0 0
    %2199 = vmatprep.subr.bf16.mxu0 0
    %2200 = vmatpush1.bf16.msra.mxu0 0
    %2201 = vmatprep.subr.bf16.mxu0 0
    %2202 = vmatpush1.bf16.msra.mxu0 0
    %2203 = vmatprep.mubr.bf16.mxu0 0
    %2204 = vmatmul.mubr.bf16.gmra.mrb[0].mxu0 %v2169
    %v2205 = vpop.f32.mrb[0].mxu0
    %v2206 = vadd.f32 %v2064, %v2205
    %v2207 = vpop.f32.mrb[0].mxu0
    %v2208 = vpop.f32.mrb[0].mxu0
    %v2209 = vpop.f32.mrb[0].mxu0
    %2210 = vdwg.mxu0
    %v2211 = vxor.u32 %v2206, 2147483648
    %v2212 = vmul.f32 %v2211, 1.442695
    %v2213 = vpow.pop %v2212
    %v2214 = vadd.f32 %v2213, 1.0
    %v2215 = vrcp.pop %v2214
    %v2216 = vmul.f32 1.0, %v2215
    %v2217 = vtanh.pop %v2206
    %v2218 = vmul.f32 %v2216, %v1925
    %2220 = vrot.lane.b32.xlu0 %v2217, 112
    %v2221 = vpop.permute.xlu0 %2220
    %v2223 = vmul.f32 %v2216, %v2221
    %2225 = vrot.lane.b32.xlu0 %v2223, 8
    %v2226 = vpop.permute.xlu0 %2225
    %v2228 = vadd.f32 %v2218, %v2226
    %v2229 = vtanh.pop %v2228
    %2231 = vrot.lane.b32.xlu0 %v2229, 16
    %v2232 = vpop.permute.xlu0 %2231
    %v2234 = vmul.f32 %v2216, %v2232
    %2235 = vmatprep.subr.bf16.mxu0 0
    %2236 = vmatpush1.bf16.msra.mxu0 %v403
    %2237 = vmatprep.subr.bf16.mxu0 0
    %2238 = vmatpush1.bf16.msra.mxu0 %v404
    %2239 = vmatprep.subr.bf16.mxu0 0
    %2240 = vmatpush1.bf16.msra.mxu0 0
    %2241 = vmatprep.subr.bf16.mxu0 0
    %2242 = vmatpush1.bf16.msra.mxu0 0
    %2243 = vmatprep.subr.bf16.mxu0 0
    %2244 = vmatpush1.bf16.msra.mxu0 0
    %2245 = vmatprep.subr.bf16.mxu0 0
    %2246 = vmatpush1.bf16.msra.mxu0 0
    %2247 = vmatprep.subr.bf16.mxu0 0
    %2248 = vmatpush1.bf16.msra.mxu0 0
    %2249 = vmatprep.subr.bf16.mxu0 0
    %2250 = vmatpush1.bf16.msra.mxu0 0
    %2251 = vmatprep.subr.bf16.mxu0 0
    %2252 = vmatpush1.bf16.msra.mxu0 0
    %2253 = vmatprep.subr.bf16.mxu0 0
    %2254 = vmatpush1.bf16.msra.mxu0 0
    %2255 = vmatprep.subr.bf16.mxu0 0
    %2256 = vmatpush1.bf16.msra.mxu0 0
    %2257 = vmatprep.subr.bf16.mxu0 0
    %2258 = vmatpush1.bf16.msra.mxu0 0
    %2259 = vmatprep.subr.bf16.mxu0 0
    %2260 = vmatpush1.bf16.msra.mxu0 0
    %2261 = vmatprep.subr.bf16.mxu0 0
    %2262 = vmatpush1.bf16.msra.mxu0 0
    %2263 = vmatprep.subr.bf16.mxu0 0
    %2264 = vmatpush1.bf16.msra.mxu0 0
    %2265 = vmatprep.subr.bf16.mxu0 0
    %2266 = vmatpush1.bf16.msra.mxu0 0
    %2267 = vmatprep.mubr.bf16.mxu0 0
    %2268 = vmatmul.mubr.bf16.gmra.mrb[0].mxu0 %v2098
    %v2269 = vpop.f32.mrb[0].mxu0
    %v2270 = vadd.f32 0.0, %v2269
    %v2271 = vpop.f32.mrb[0].mxu0
    %v2272 = vpop.f32.mrb[0].mxu0
    %v2273 = vpop.f32.mrb[0].mxu0
    %2274 = vdwg.mxu0
    %v2276 = vrot.slane %v2270, 2
    %v2278 = vadd.f32 %v182, %v2276
    %2279 = vmatprep.subr.bf16.mxu0 0
    %2280 = vmatpush1.bf16.msra.mxu0 %v457
    %2281 = vmatprep.subr.bf16.mxu0 0
    %2282 = vmatpush1.bf16.msra.mxu0 0
    %2283 = vmatprep.subr.bf16.mxu0 0
    %2284 = vmatpush1.bf16.msra.mxu0 0
    %2285 = vmatprep.subr.bf16.mxu0 0
    %2286 = vmatpush1.bf16.msra.mxu0 0
    %2287 = vmatprep.subr.bf16.mxu0 0
    %2288 = vmatpush1.bf16.msra.mxu0 0
    %2289 = vmatprep.subr.bf16.mxu0 0
    %2290 = vmatpush1.bf16.msra.mxu0 0
    %2291 = vmatprep.subr.bf16.mxu0 0
    %2292 = vmatpush1.bf16.msra.mxu0 0
    %2293 = vmatprep.subr.bf16.mxu0 0
    %2294 = vmatpush1.bf16.msra.mxu0 0
    %2295 = vmatprep.subr.bf16.mxu0 0
    %2296 = vmatpush1.bf16.msra.mxu0 0
    %2297 = vmatprep.subr.bf16.mxu0 0
    %2298 = vmatpush1.bf16.msra.mxu0 0
    %2299 = vmatprep.subr.bf16.mxu0 0
    %2300 = vmatpush1.bf16.msra.mxu0 0
    %2301 = vmatprep.subr.bf16.mxu0 0
    %2302 = vmatpush1.bf16.msra.mxu0 0
    %2303 = vmatprep.subr.bf16.mxu0 0
    %2304 = vmatpush1.bf16.msra.mxu0 0
    %2305 = vmatprep.subr.bf16.mxu0 0
    %2306 = vmatpush1.bf16.msra.mxu0 0
    %2307 = vmatprep.subr.bf16.mxu0 0
    %2308 = vmatpush1.bf16.msra.mxu0 0
    %2309 = vmatprep.subr.bf16.mxu0 0
    %2310 = vmatpush1.bf16.msra.mxu0 0
    %2311 = vmatprep.mubr.bf16.mxu0 0
    %2312 = vmatmul.mubr.bf16.gmra.mrb[0].mxu0 %v2169
    %v2313 = vpop.f32.mrb[0].mxu0
    %v2314 = vadd.f32 0.0, %v2313
    %v2315 = vpop.f32.mrb[0].mxu0
    %v2316 = vpop.f32.mrb[0].mxu0
    %v2317 = vpop.f32.mrb[0].mxu0
    %2318 = vdwg.mxu0
    %v2319 = vadd.f32 %v190, %v2314
    %v2320 = vpack.c.bf16 %v2234, %v2234
    %2322 = vrot.lane.b32.xlu0 %v2320, 104
    %v2323 = vpop.permute.xlu0 %2322
    %v2325 = vsel %vm505, %v2323, 0
    %2327 = vmatprep.subr.bf16.mxu0 0
    %2328 = vmatpush1.bf16.msra.mxu0 %v511
    %2329 = vmatprep.subr.bf16.mxu0 0
    %2330 = vmatpush1.bf16.msra.mxu0 0
    %2331 = vmatprep.subr.bf16.mxu0 0
    %2332 = vmatpush1.bf16.msra.mxu0 0
    %2333 = vmatprep.subr.bf16.mxu0 0
    %2334 = vmatpush1.bf16.msra.mxu0 0
    %2335 = vmatprep.subr.bf16.mxu0 0
    %2336 = vmatpush1.bf16.msra.mxu0 0
    %2337 = vmatprep.subr.bf16.mxu0 0
    %2338 = vmatpush1.bf16.msra.mxu0 0
    %2339 = vmatprep.subr.bf16.mxu0 0
    %2340 = vmatpush1.bf16.msra.mxu0 0
    %2341 = vmatprep.subr.bf16.mxu0 0
    %2342 = vmatpush1.bf16.msra.mxu0 0
    %2343 = vmatprep.subr.bf16.mxu0 0
    %2344 = vmatpush1.bf16.msra.mxu0 0
    %2345 = vmatprep.subr.bf16.mxu0 0
    %2346 = vmatpush1.bf16.msra.mxu0 0
    %2347 = vmatprep.subr.bf16.mxu0 0
    %2348 = vmatpush1.bf16.msra.mxu0 0
    %2349 = vmatprep.subr.bf16.mxu0 0
    %2350 = vmatpush1.bf16.msra.mxu0 0
    %2351 = vmatprep.subr.bf16.mxu0 0
    %2352 = vmatpush1.bf16.msra.mxu0 0
    %2353 = vmatprep.subr.bf16.mxu0 0
    %2354 = vmatpush1.bf16.msra.mxu0 0
    %2355 = vmatprep.subr.bf16.mxu0 0
    %2356 = vmatpush1.bf16.msra.mxu0 0
    %2357 = vmatprep.subr.bf16.mxu0 0
    %2358 = vmatpush1.bf16.msra.mxu0 0
    %2359 = vmatprep.mubr.bf16.mxu0 0
    %2360 = vmatmul.mubr.bf16.gmra.mrb[0].mxu0 %v2325
    %v2361 = vpop.f32.mrb[0].mxu0
    %v2362 = vadd.f32 0.0, %v2361
    %v2363 = vpop.f32.mrb[0].mxu0
    %v2364 = vpop.f32.mrb[0].mxu0
    %v2365 = vpop.f32.mrb[0].mxu0
    %2366 = vdwg.mxu0
    %v2367 = vadd.f32 %v197, %v2362
    %v2368 = vxor.u32 %v2278, 2147483648
    %v2369 = vmul.f32 %v2368, 1.442695
    %v2370 = vpow.pop %v2369
    %v2371 = vadd.f32 %v2370, 1.0
    %v2372 = vrcp.pop %v2371
    %v2373 = vmul.f32 1.0, %v2372
    %v2374 = vtanh.pop %v2278
    %v2376 = vrot.slane %v2085, 6
    %v2378 = vmul.f32 %v2373, %v2376
    %2380 = vrot.lane.b32.xlu0 %v2374, 64
    %v2381 = vpop.permute.xlu0 %2380
    %v2383 = vmul.f32 %v2373, %v2381
    %2385 = vrot.lane.b32.xlu0 %v2383, 32
    %v2386 = vpop.permute.xlu0 %2385
    %v2388 = vadd.f32 %v2378, %v2386
    %v2389 = vtanh.pop %v2388
    %2391 = vrot.lane.b32.xlu0 %v2389, 64
    %v2392 = vpop.permute.xlu0 %2391
    %v2394 = vmul.f32 %v2373, %v2392
    %v2395 = vpack.c.bf16 %v2394, %v2394
    %v2397 = vrot.slane %v2395, 3
    %2398 = vrot.lane.b32.xlu0 %v2397, 32
    %v2399 = vpop.permute.xlu0 %2398
    %v2401 = vsel %vm243, %v2399, 0
    %2403 = vmatprep.subr.bf16.mxu0 0
    %2404 = vmatpush1.bf16.msra.mxu0 %v239
    %2405 = vmatprep.subr.bf16.mxu0 0
    %2406 = vmatpush1.bf16.msra.mxu0 %v240
    %2407 = vmatprep.subr.bf16.mxu0 0
    %2408 = vmatpush1.bf16.msra.mxu0 0
    %2409 = vmatprep.subr.bf16.mxu0 0
    %2410 = vmatpush1.bf16.msra.mxu0 0
    %2411 = vmatprep.subr.bf16.mxu0 0
    %2412 = vmatpush1.bf16.msra.mxu0 0
    %2413 = vmatprep.subr.bf16.mxu0 0
    %2414 = vmatpush1.bf16.msra.mxu0 0
    %2415 = vmatprep.subr.bf16.mxu0 0
    %2416 = vmatpush1.bf16.msra.mxu0 0
    %2417 = vmatprep.subr.bf16.mxu0 0
    %2418 = vmatpush1.bf16.msra.mxu0 0
    %2419 = vmatprep.subr.bf16.mxu0 0
    %2420 = vmatpush1.bf16.msra.mxu0 0
    %2421 = vmatprep.subr.bf16.mxu0 0
    %2422 = vmatpush1.bf16.msra.mxu0 0
    %2423 = vmatprep.subr.bf16.mxu0 0
    %2424 = vmatpush1.bf16.msra.mxu0 0
    %2425 = vmatprep.subr.bf16.mxu0 0
    %2426 = vmatpush1.bf16.msra.mxu0 0
    %2427 = vmatprep.subr.bf16.mxu0 0
    %2428 = vmatpush1.bf16.msra.mxu0 0
    %2429 = vmatprep.subr.bf16.mxu0 0
    %2430 = vmatpush1.bf16.msra.mxu0 0
    %2431 = vmatprep.subr.bf16.mxu0 0
    %2432 = vmatpush1.bf16.msra.mxu0 0
    %2433 = vmatprep.subr.bf16.mxu0 0
    %2434 = vmatpush1.bf16.msra.mxu0 0
    %2435 = vmatprep.mubr.bf16.mxu0 0
    %2436 = vmatmul.mubr.bf16.gmra.mrb[0].mxu0 %v2401
    %v2437 = vpop.f32.mrb[0].mxu0
    %v2438 = vadd.f32 %v2319, %v2437
    %v2439 = vpop.f32.mrb[0].mxu0
    %v2440 = vpop.f32.mrb[0].mxu0
    %v2441 = vpop.f32.mrb[0].mxu0
    %2442 = vdwg.mxu0
    %v2443 = vxor.u32 %v2438, 2147483648
    %v2444 = vmul.f32 %v2443, 1.442695
    %v2445 = vpow.pop %v2444
    %v2446 = vadd.f32 %v2445, 1.0
    %v2447 = vrcp.pop %v2446
    %v2448 = vmul.f32 1.0, %v2447
    %v2449 = vtanh.pop %v2438
    %v2450 = vmul.f32 %v2448, %v2157
    %2452 = vrot.lane.b32.xlu0 %v2449, 96
    %v2453 = vpop.permute.xlu0 %2452
    %v2455 = vmul.f32 %v2448, %v2453
    %2457 = vrot.lane.b32.xlu0 %v2455, 16
    %v2458 = vpop.permute.xlu0 %2457
    %v2460 = vadd.f32 %v2450, %v2458
    %v2461 = vtanh.pop %v2460
    %2463 = vrot.lane.b32.xlu0 %v2461, 32
    %v2464 = vpop.permute.xlu0 %2463
    %v2466 = vmul.f32 %v2448, %v2464
    %v2467 = vpack.c.bf16 %v2466, %v2466
    %2469 = vrot.lane.b32.xlu0 %v2467, 80
    %v2470 = vpop.permute.xlu0 %2469
    %v2472 = vsel %vm323, %v2470, 0
    %2474 = vmatprep.subr.bf16.mxu0 0
    %2475 = vmatpush1.bf16.msra.mxu0 %v321
    %2476 = vmatprep.subr.bf16.mxu0 0
    %2477 = vmatpush1.bf16.msra.mxu0 0
    %2478 = vmatprep.subr.bf16.mxu0 0
    %2479 = vmatpush1.bf16.msra.mxu0 0
    %2480 = vmatprep.subr.bf16.mxu0 0
    %2481 = vmatpush1.bf16.msra.mxu0 0
    %2482 = vmatprep.subr.bf16.mxu0 0
    %2483 = vmatpush1.bf16.msra.mxu0 0
    %2484 = vmatprep.subr.bf16.mxu0 0
    %2485 = vmatpush1.bf16.msra.mxu0 0
    %2486 = vmatprep.subr.bf16.mxu0 0
    %2487 = vmatpush1.bf16.msra.mxu0 0
    %2488 = vmatprep.subr.bf16.mxu0 0
    %2489 = vmatpush1.bf16.msra.mxu0 0
    %2490 = vmatprep.subr.bf16.mxu0 0
    %2491 = vmatpush1.bf16.msra.mxu0 0
    %2492 = vmatprep.subr.bf16.mxu0 0
    %2493 = vmatpush1.bf16.msra.mxu0 0
    %2494 = vmatprep.subr.bf16.mxu0 0
    %2495 = vmatpush1.bf16.msra.mxu0 0
    %2496 = vmatprep.subr.bf16.mxu0 0
    %2497 = vmatpush1.bf16.msra.mxu0 0
    %2498 = vmatprep.subr.bf16.mxu0 0
    %2499 = vmatpush1.bf16.msra.mxu0 0
    %2500 = vmatprep.subr.bf16.mxu0 0
    %2501 = vmatpush1.bf16.msra.mxu0 0
    %2502 = vmatprep.subr.bf16.mxu0 0
    %2503 = vmatpush1.bf16.msra.mxu0 0
    %2504 = vmatprep.subr.bf16.mxu0 0
    %2505 = vmatpush1.bf16.msra.mxu0 0
    %2506 = vmatprep.mubr.bf16.mxu0 0
    %2507 = vmatmul.mubr.bf16.gmra.mrb[0].mxu0 %v2472
    %v2508 = vpop.f32.mrb[0].mxu0
    %v2509 = vadd.f32 %v2367, %v2508
    %v2510 = vpop.f32.mrb[0].mxu0
    %v2511 = vpop.f32.mrb[0].mxu0
    %v2512 = vpop.f32.mrb[0].mxu0
    %2513 = vdwg.mxu0
    %v2514 = vxor.u32 %v2509, 2147483648
    %v2515 = vmul.f32 %v2514, 1.442695
    %v2516 = vpow.pop %v2515
    %v2517 = vadd.f32 %v2516, 1.0
    %v2518 = vrcp.pop %v2517
    %v2519 = vmul.f32 1.0, %v2518
    %v2520 = vtanh.pop %v2509
    %v2521 = vmul.f32 %v2519, %v2228
    %2523 = vrot.lane.b32.xlu0 %v2520, 112
    %v2524 = vpop.permute.xlu0 %2523
    %v2526 = vmul.f32 %v2519, %v2524
    %2528 = vrot.lane.b32.xlu0 %v2526, 8
    %v2529 = vpop.permute.xlu0 %2528
    %v2531 = vadd.f32 %v2521, %v2529
    %v2532 = vtanh.pop %v2531
    %2534 = vrot.lane.b32.xlu0 %v2532, 16
    %v2535 = vpop.permute.xlu0 %2534
    %v2537 = vmul.f32 %v2519, %v2535
    %v2538 = vpack.c.bf16 %v2537, %v2537
    %v2539 = vld [vmem:[%s10] sm:$0xf]
    %v2540 = vld [vmem:[%s11] sm:$0x1]
    %v2542 = vlaneseq
    %v2543 = vshrl.u32 %v2542, 7
    %v2544 = vsub.s32 0, %v2543
    %v2545 = vrot.slane %v2540, %v2544
    %2548 = vrot.lane.b32.xlu0 %v2538, 104
    %v2549 = vpop.permute.xlu0 %2548
    %v2551 = vsel %vm505, %v2549, 0
    %v2554 = vsel %vm509, %v2539, 0
    %2556 = vmatprep.subr.bf16.mxu0 0
    %2557 = vmatpush1.bf16.msra.mxu0 %v2554
    %2558 = vmatprep.subr.bf16.mxu0 0
    %2559 = vmatpush1.bf16.msra.mxu0 0
    %2560 = vmatprep.subr.bf16.mxu0 0
    %2561 = vmatpush1.bf16.msra.mxu0 0
    %2562 = vmatprep.subr.bf16.mxu0 0
    %2563 = vmatpush1.bf16.msra.mxu0 0
    %2564 = vmatprep.subr.bf16.mxu0 0
    %2565 = vmatpush1.bf16.msra.mxu0 0
    %2566 = vmatprep.subr.bf16.mxu0 0
    %2567 = vmatpush1.bf16.msra.mxu0 0
    %2568 = vmatprep.subr.bf16.mxu0 0
    %2569 = vmatpush1.bf16.msra.mxu0 0
    %2570 = vmatprep.subr.bf16.mxu0 0
    %2571 = vmatpush1.bf16.msra.mxu0 0
    %2572 = vmatprep.subr.bf16.mxu0 0
    %2573 = vmatpush1.bf16.msra.mxu0 0
    %2574 = vmatprep.subr.bf16.mxu0 0
    %2575 = vmatpush1.bf16.msra.mxu0 0
    %2576 = vmatprep.subr.bf16.mxu0 0
    %2577 = vmatpush1.bf16.msra.mxu0 0
    %2578 = vmatprep.subr.bf16.mxu0 0
    %2579 = vmatpush1.bf16.msra.mxu0 0
    %2580 = vmatprep.subr.bf16.mxu0 0
    %2581 = vmatpush1.bf16.msra.mxu0 0
    %2582 = vmatprep.subr.bf16.mxu0 0
    %2583 = vmatpush1.bf16.msra.mxu0 0
    %2584 = vmatprep.subr.bf16.mxu0 0
    %2585 = vmatpush1.bf16.msra.mxu0 0
    %2586 = vmatprep.subr.bf16.mxu0 0
    %2587 = vmatpush1.bf16.msra.mxu0 0
    %2588 = vmatprep.mubr.bf16.mxu0 0
    %2589 = vmatmul.mubr.bf16.gmra.mrb[0].mxu0 %v2551
    %v2590 = vpop.f32.mrb[0].mxu0
    %v2591 = vadd.f32 %v2545, %v2590
    %v2592 = vpop.f32.mrb[0].mxu0
    %v2593 = vpop.f32.mrb[0].mxu0
    %v2594 = vpop.f32.mrb[0].mxu0
    %2595 = vdwg.mxu0
    %v2596 = vmax.f32 %v2591, 0.0
    %v2597 = vpack.c.bf16 %v2596, %v2596
    %v2598 = vld [vmem:[%s12] sm:$0xf]
    %v2599 = vld [vmem:[%s12 + $0x4] sm:$0xf]
    %v2600 = vld [vmem:[%s13] sm:$0x1]
    %v2602 = vlaneseq
    %v2603 = vshrl.u32 %v2602, 7
    %v2604 = vsub.s32 0, %v2603
    %v2605 = vrot.slane %v2600, %v2604
    %v2609 = vunpack.c.l.b16 %v2598
    %v2610 = vunpack.c.l.b16 %v2599
    %v2611 = vpack.c.b16 %v2610, %v2609
    %v2614 = vsel %vm323, %v2597, 0
    %2616 = vmatprep.subr.bf16.mxu0 0
    %2617 = vmatpush1.bf16.msra.mxu0 %v2611
    %2618 = vmatprep.subr.bf16.mxu0 0
    %2619 = vmatpush1.bf16.msra.mxu0 0
    %2620 = vmatprep.subr.bf16.mxu0 0
    %2621 = vmatpush1.bf16.msra.mxu0 0
    %2622 = vmatprep.subr.bf16.mxu0 0
    %2623 = vmatpush1.bf16.msra.mxu0 0
    %2624 = vmatprep.subr.bf16.mxu0 0
    %2625 = vmatpush1.bf16.msra.mxu0 0
    %2626 = vmatprep.subr.bf16.mxu0 0
    %2627 = vmatpush1.bf16.msra.mxu0 0
    %2628 = vmatprep.subr.bf16.mxu0 0
    %2629 = vmatpush1.bf16.msra.mxu0 0
    %2630 = vmatprep.subr.bf16.mxu0 0
    %2631 = vmatpush1.bf16.msra.mxu0 0
    %2632 = vmatprep.subr.bf16.mxu0 0
    %2633 = vmatpush1.bf16.msra.mxu0 0
    %2634 = vmatprep.subr.bf16.mxu0 0
    %2635 = vmatpush1.bf16.msra.mxu0 0
    %2636 = vmatprep.subr.bf16.mxu0 0
    %2637 = vmatpush1.bf16.msra.mxu0 0
    %2638 = vmatprep.subr.bf16.mxu0 0
    %2639 = vmatpush1.bf16.msra.mxu0 0
    %2640 = vmatprep.subr.bf16.mxu0 0
    %2641 = vmatpush1.bf16.msra.mxu0 0
    %2642 = vmatprep.subr.bf16.mxu0 0
    %2643 = vmatpush1.bf16.msra.mxu0 0
    %2644 = vmatprep.subr.bf16.mxu0 0
    %2645 = vmatpush1.bf16.msra.mxu0 0
    %2646 = vmatprep.subr.bf16.mxu0 0
    %2647 = vmatpush1.bf16.msra.mxu0 0
    %2648 = vmatprep.mubr.bf16.mxu0 0
    %2649 = vmatmul.mubr.bf16.gmra.mrb[0].mxu0 %v2614
    %v2650 = vpop.f32.mrb[0].mxu0
    %v2651 = vadd.f32 %v2605, %v2650
    %v2652 = vpop.f32.mrb[0].mxu0
    %v2653 = vpop.f32.mrb[0].mxu0
    %v2654 = vpop.f32.mrb[0].mxu0
    %2655 = vdwg.mxu0
    %2656 = vst [vmem:[#allocation13] sm:$0x3] %v2651
    // Predicated region
    $region82: #{tpu_custom_call.1} parent=1 // pred_check
      _
    $region83: #{tpu_custom_call.1} parent=1 // pred_check_branch
      %2658 = sbr.rel (0) target = $region85
    $region84: #{tpu_custom_call.1} parent=1 // pred_region
      %s2660 = ssub.s32 32, 32
      %2661 = vsyncadd [#allocation4], %s2660
      %s2663 = sshll.u32 [#allocation13], 4
      %s2664 = int_to_ptr.vmem [resolvable:$true] %s2663
      %2666 = dma.vmem_to_hbm [thread:$0]  %s2664, 32, %s14, [#allocation4]
    $region85: #{tpu_custom_call.1} parent=1 // pred_fallthru
      _
    // Predicated region
    $region86: #{tpu_custom_call.1} parent=1 // pred_check
      _
    $region87: #{tpu_custom_call.1} parent=1 // pred_check_branch
      %2668 = sbr.rel (0) target = $region89
    $region88: #{tpu_custom_call.1} parent=1 // pred_region
      %2669 = dma.done [#allocation4], 32
    $region89: #{tpu_custom_call.1} parent=1 // pred_fallthru
      _
    %2670 = vsyncpa [#allocation3], 1
    %2671 = vsyncpa [#allocation6], 1
    %2672 = vsyncpa [#allocation9], 1
    %2673 = vsyncpa [#allocation12], 1
    %2674 = vsyncpa [#allocation4], 1

</llo_original>
